<compile_context>
chip_gen: v7x
topology: tpu7x:2x2x1
jax: 0.10.0
libtpu: 0.0.40
codegen_flags: <defaults>
</compile_context>

<pallas_src>
import functools

import numpy as np
import jax
import jax.numpy as jnp
from jax import lax
from jax.experimental import pallas as pl
from jax.experimental.pallas import tpu as pltpu


# bf16 matmul operands (f32 accumulate) for v6e/v7x; use jnp.float32 for exact match.
MATMUL_DTYPE = jnp.bfloat16


# ---------------------------------------------------------------------------
# The single fused Pallas kernel: whole forward pass for ONE sample.
# ---------------------------------------------------------------------------
def _critic_kernel(col1_ref, w1_ref, b1_ref,
                   s2_ref, w2_ref, b2_ref,
                   s3_ref, w3_ref, b3_ref,
                   wf1_ref, bf1_ref, wf2_ref, bf2_ref,
                   o_ref):
    mm = w1_ref.dtype   # matmul operand dtype (bf16 or f32)

    def conv_from_rows(x, s_ref, w_ref, b_ref):
        # x: (P_in, C_in) activations, rows = spatial positions, in matmul dtype.
        # relu(b + sum_k (S_k @ x) @ W_k): the 0/1 selection matrices S_k gather the
        # stride-k patch rows on the MXU -> no reshapes / strided slices in-kernel.
        n_off = s_ref.shape[0]
        acc = jnp.zeros((s_ref.shape[1], w_ref.shape[2]), jnp.float32)
        for k in range(n_off):                                   # static unroll
            rows = jnp.dot(s_ref[k], x, preferred_element_type=jnp.float32)
            acc = acc + jnp.dot(rows.astype(mm), w_ref[k],
                                preferred_element_type=jnp.float32)
        return jnp.maximum(acc + b_ref[...], 0.0)

    # conv1: input was im2col'ed outside -> a single plain matmul + bias + ReLU
    a1 = jnp.dot(col1_ref[...], w1_ref[...], preferred_element_type=jnp.float32)
    a1 = jnp.maximum(a1 + b1_ref[...], 0.0)                      # (64, 32) f32

    a2 = conv_from_rows(a1.astype(mm), s2_ref, w2_ref, b2_ref)   # (9, 64)
    a3 = conv_from_rows(a2.astype(mm), s3_ref, w3_ref, b3_ref)   # (1, 64) == flatten

    # critic head: Linear(fc_in, 512) + ReLU, Linear(512, 1)
    h = jnp.dot(a3.astype(mm), wf1_ref[...], preferred_element_type=jnp.float32)
    h = jnp.maximum(h + bf1_ref[...], 0.0)                       # (1, 512)
    v = jnp.dot(h.astype(mm), wf2_ref[...], preferred_element_type=jnp.float32)
    o_ref[...] = (v + bf2_ref[...]).astype(o_ref.dtype)          # (1, 1)


# ---------------------------------------------------------------------------
# Host-side helpers (run once per forward / once at init)
# ---------------------------------------------------------------------------
def _im2col_nhwc(x, kh, kw, stride):
    """Per-sample im2col: (N,H,W,C) -> (N, Ho*Wo, KH*KW*C), column order (i,j,cin)."""
    n, h, w, c = x.shape
    ho = (h - kh) // stride + 1
    wo = (w - kw) // stride + 1
    cols = []
    for i in range(kh):
        for j in range(kw):
            cols.append(x[:, i:i + stride * (ho - 1) + 1:stride,
                             j:j + stride * (wo - 1) + 1:stride, :])
    col = jnp.stack(cols, axis=3)                  # (N, Ho, Wo, KH*KW, C)
    return col.reshape(n, ho * wo, kh * kw * c)


def _selection_matrices(h_in, w_in, h_out, w_out, kh, kw, stride):
    """S[k, p_out, p_in] = 1 iff input position p_in is the k-th kernel tap of p_out."""
    s = np.zeros((kh * kw, h_out * w_out, h_in * w_in), np.float32)
    for i in range(kh):
        for j in range(kw):
            k = i * kw + j
            for oh in range(h_out):
                for ow in range(w_out):
                    s[k, oh * w_out + ow,
                      (oh * stride + i) * w_in + (ow * stride + j)] = 1.0
    return s


def _broadcast_spec(shape):
    zeros = (0,) * len(shape)
    return pl.BlockSpec(shape, lambda n, _z=zeros: _z)


def _conv_out_hw(h, w, k, s):
    return (h - k) // s + 1, (w - k) // s + 1


# ---------------------------------------------------------------------------
# Parameters
# ---------------------------------------------------------------------------
def init_params(key, input_dims):
    """Deterministic init, PyTorch-style U(-1/sqrt(fan_in), 1/sqrt(fan_in))."""
    c, hi, wi = input_dims
    assert c == 12, "CriticNetwork conv stack expects 12 input channels"
    keys = jax.random.split(key, 10)

    def u(k, shape, fan_in):
        bound = 1.0 / jnp.sqrt(float(fan_in))
        return jax.random.uniform(k, shape, jnp.float32, -bound, bound)

    p = {
        "w1": u(keys[0], (32, 12, 8, 8), 12 * 8 * 8),
        "b1": u(keys[1], (32,), 12 * 8 * 8),
        "w2": u(keys[2], (64, 32, 4, 4), 32 * 4 * 4),
        "b2": u(keys[3], (64,), 32 * 4 * 4),
        "w3": u(keys[4], (64, 64, 3, 3), 64 * 3 * 3),
        "b3": u(keys[5], (64,), 64 * 3 * 3),
    }
    h1, w1 = _conv_out_hw(hi, wi, 8, 4)
    h2, w2 = _conv_out_hw(h1, w1, 4, 2)
    h3, w3 = _conv_out_hw(h2, w2, 3, 1)
    fc_in = 64 * h3 * w3                    # == self.fc_input_dims in PyTorch
    p["wf1"] = u(keys[6], (fc_in, 512), fc_in)
    p["bf1"] = u(keys[7], (512,), fc_in)
    p["wf2"] = u(keys[8], (512, 1), 512)
    p["bf2"] = u(keys[9], (1,), 512)
    return p, fc_in


def prepare_params(params, input_dims, matmul_dtype=MATMUL_DTYPE):
    """One-time repack of the PyTorch-layout params into kernel-ready operands."""
    _, hi, wi = input_dims
    h1, w1 = _conv_out_hw(hi, wi, 8, 4)
    h2, w2 = _conv_out_hw(h1, w1, 4, 2)
    h3, w3 = _conv_out_hw(h2, w2, 3, 1)
    # PyTorch's (C,H,W) flatten is the identity only when conv3 output is 1x1 spatial.
    assert h3 == 1 and w3 == 1, "fused kernel assumes conv3 output is 1x1 spatial"

    def wcol(w):   # OIHW -> (KH*KW, Cin, Cout) per-offset matrices
        co, ci, kh, kw = w.shape
        return jnp.transpose(w, (2, 3, 1, 0)).reshape(kh * kw, ci, co)

    return {
        "w1col": wcol(params["w1"]).reshape(-1, params["w1"].shape[0]).astype(matmul_dtype),
        "b1": params["b1"].reshape(1, -1).astype(jnp.float32),
        "s2": jnp.asarray(_selection_matrices(h1, w1, h2, w2, 4, 4, 2), matmul_dtype),
        "w2s": wcol(params["w2"]).astype(matmul_dtype),
        "b2": params["b2"].reshape(1, -1).astype(jnp.float32),
        "s3": jnp.asarray(_selection_matrices(h2, w2, h3, w3, 3, 3, 1), matmul_dtype),
        "w3s": wcol(params["w3"]).astype(matmul_dtype),
        "b3": params["b3"].reshape(1, -1).astype(jnp.float32),
        "wf1": params["wf1"].astype(matmul_dtype),
        "bf1": params["bf1"].reshape(1, -1).astype(jnp.float32),
        "wf2": params["wf2"].astype(matmul_dtype),
        "bf2": params["bf2"].reshape(1, -1).astype(jnp.float32),
    }


# ---------------------------------------------------------------------------
# Forward pass (single fused pallas_call)
# ---------------------------------------------------------------------------
def critic_forward(prep, state_nchw):
    """Pallas implementation of CriticNetwork.forward (state is NCHW float32)."""
    x = jnp.transpose(state_nchw, (0, 2, 3, 1))                  # NCHW -> NHWC
    # TODO(synk): conv1's im2col stays as XLA layout glue on the HBM-resident input;
    # moving it in-kernel needs strided VMEM gathers + merge-reshapes that are not
    # worth the lowering risk at this size.
    col1 = _im2col_nhwc(x, kh=8, kw=8, stride=4).astype(prep["w1col"].dtype)
    batch, p1, k1 = col1.shape

    out = pl.pallas_call(
        _critic_kernel,
        out_shape=jax.ShapeDtypeStruct((batch, 1, 1), jnp.float32),
        grid=(batch,),
        in_specs=[
            pl.BlockSpec((None, p1, k1), lambda n: (n, 0, 0)),   # per-sample im2col
            _broadcast_spec(prep["w1col"].shape),
            _broadcast_spec(prep["b1"].shape),
            _broadcast_spec(prep["s2"].shape),
            _broadcast_spec(prep["w2s"].shape),
            _broadcast_spec(prep["b2"].shape),
            _broadcast_spec(prep["s3"].shape),
            _broadcast_spec(prep["w3s"].shape),
            _broadcast_spec(prep["b3"].shape),
            _broadcast_spec(prep["wf1"].shape),
            _broadcast_spec(prep["bf1"].shape),
            _broadcast_spec(prep["wf2"].shape),
            _broadcast_spec(prep["bf2"].shape),
        ],
        out_specs=pl.BlockSpec((None, 1, 1), lambda n: (n, 0, 0)),
        compiler_params=pltpu.CompilerParams(
            dimension_semantics=("parallel",)),    # batch splits across TCs on v7x
    )(col1, prep["w1col"], prep["b1"], prep["s2"], prep["w2s"], prep["b2"],
      prep["s3"], prep["w3s"], prep["b3"], prep["wf1"], prep["bf1"],
      prep["wf2"], prep["bf2"])
    return out.reshape(batch, 1)


# ---------------------------------------------------------------------------
# Pure-JAX f32 reference (validation only)
# ---------------------------------------------------------------------------
def critic_forward_ref(params, state_nchw):
    def conv(x, w, b, s):
        y = lax.conv_general_dilated(
            x, w, (s, s), "VALID", dimension_numbers=("NCHW", "OIHW", "NCHW"))
        return jnp.maximum(y + b[None, :, None, None], 0.0)

    x = conv(state_nchw, params["w1"], params["b1"], 4)
    x = conv(x, params["w2"], params["b2"], 2)
    x = conv(x, params["w3"], params["b3"], 1)
    flat = x.reshape(x.shape[0], -1)
    h = jnp.maximum(flat @ params["wf1"] + params["bf1"], 0.0)
    return h @ params["wf2"] + params["bf2"]


if __name__ == "__main__":
    input_dims = (12, 36, 36)   # (C, H, W): conv stack -> 8x8 -> 3x3 -> 1x1
    batch = 2

    key = jax.random.PRNGKey(0)
    k_param, k_state = jax.random.split(key)
    params, fc_in = init_params(k_param, input_dims)
    prep = prepare_params(params, input_dims, MATMUL_DTYPE)

    state = jax.random.uniform(k_state, (batch,) + input_dims, jnp.float32)

    fwd = jax.jit(critic_forward)
    value = jax.block_until_ready(fwd(prep, state))
    ref = jax.block_until_ready(critic_forward_ref(params, state))

    assert value.shape == (batch, 1), value.shape
    # bf16 matmul operands (f32 accumulate) => ~1e-3 abs error vs f32 reference.
    exact = np.dtype(MATMUL_DTYPE) == np.dtype(jnp.float32)
    tol = 1e-4 if exact else 5e-2
    if not jnp.allclose(value, ref, rtol=tol, atol=tol):
        raise AssertionError(f"mismatch: pallas={value} ref={ref}")

    print("KERNEL_OK")
</pallas_src>

<mosaic_0001>
module attributes {stable_mosaic.version = 11 : i64} {
  func.func @_critic_kernel(%arg0: i32, %arg1: memref<1x64x768xbf16, #tpu.memory_space<vmem>>, %arg2: memref<768x32xbf16, #tpu.memory_space<vmem>>, %arg3: memref<1x32xf32, #tpu.memory_space<vmem>>, %arg4: memref<16x9x64xbf16, #tpu.memory_space<vmem>>, %arg5: memref<16x32x64xbf16, #tpu.memory_space<vmem>>, %arg6: memref<1x64xf32, #tpu.memory_space<vmem>>, %arg7: memref<9x1x9xbf16, #tpu.memory_space<vmem>>, %arg8: memref<9x64x64xbf16, #tpu.memory_space<vmem>>, %arg9: memref<1x64xf32, #tpu.memory_space<vmem>>, %arg10: memref<64x512xbf16, #tpu.memory_space<vmem>>, %arg11: memref<1x512xf32, #tpu.memory_space<vmem>>, %arg12: memref<512x1xbf16, #tpu.memory_space<vmem>>, %arg13: memref<1x1xf32, #tpu.memory_space<vmem>>, %arg14: memref<1x1x1xf32, #tpu.memory_space<vmem>>) attributes {dimension_semantics = [#tpu.dimension_semantics<parallel>], iteration_bounds = array<i64: 2>, scalar_prefetch = 0 : i64, scratch_operands = 0 : i64, tpu.core_type = #tpu.core_type<tc>, window_params = [{transform_indices = @transform_0, window_bounds = array<i64: 1, 64, 768>}, {pipeline_mode = #tpu.pipeline_mode<synchronous>, transform_indices = @transform_1, window_bounds = array<i64: 768, 32>}, {pipeline_mode = #tpu.pipeline_mode<synchronous>, transform_indices = @transform_2, window_bounds = array<i64: 1, 32>}, {pipeline_mode = #tpu.pipeline_mode<synchronous>, transform_indices = @transform_3, window_bounds = array<i64: 16, 9, 64>}, {pipeline_mode = #tpu.pipeline_mode<synchronous>, transform_indices = @transform_4, window_bounds = array<i64: 16, 32, 64>}, {pipeline_mode = #tpu.pipeline_mode<synchronous>, transform_indices = @transform_5, window_bounds = array<i64: 1, 64>}, {pipeline_mode = #tpu.pipeline_mode<synchronous>, transform_indices = @transform_6, window_bounds = array<i64: 9, 1, 9>}, {pipeline_mode = #tpu.pipeline_mode<synchronous>, transform_indices = @transform_7, window_bounds = array<i64: 9, 64, 64>}, {pipeline_mode = #tpu.pipeline_mode<synchronous>, transform_indices = @transform_8, window_bounds = array<i64: 1, 64>}, {pipeline_mode = #tpu.pipeline_mode<synchronous>, transform_indices = @transform_9, window_bounds = array<i64: 64, 512>}, {pipeline_mode = #tpu.pipeline_mode<synchronous>, transform_indices = @transform_10, window_bounds = array<i64: 1, 512>}, {pipeline_mode = #tpu.pipeline_mode<synchronous>, transform_indices = @transform_11, window_bounds = array<i64: 512, 1>}, {pipeline_mode = #tpu.pipeline_mode<synchronous>, transform_indices = @transform_12, window_bounds = array<i64: 1, 1>}, {transform_indices = @transform_13, window_bounds = array<i64: 1, 1, 1>}]} {
    %c0 = arith.constant 0 : index
    %c0_0 = arith.constant 0 : index
    %c0_1 = arith.constant 0 : index
    %0 = vector.load %arg1[%c0, %c0_0, %c0_1] : memref<1x64x768xbf16, #tpu.memory_space<vmem>>, vector<1x64x768xbf16>
    %1 = vector.shape_cast %0 : vector<1x64x768xbf16> to vector<64x768xbf16>
    %c0_2 = arith.constant 0 : index
    %c0_3 = arith.constant 0 : index
    %2 = vector.load %arg2[%c0_2, %c0_3] : memref<768x32xbf16, #tpu.memory_space<vmem>>, vector<768x32xbf16>
    %cst = arith.constant dense<0.000000e+00> : vector<64x32xf32>
    %3 = tpu.matmul %1, %2, %cst {dimension_numbers = #tpu.dot_dimension_numbers<[1], [0], [0], [1], [0, 0, 1, 1], [], []>} : vector<64x768xbf16>, vector<768x32xbf16>, vector<64x32xf32> -> vector<64x32xf32>
    %c0_4 = arith.constant 0 : index
    %c0_5 = arith.constant 0 : index
    %4 = vector.load %arg3[%c0_4, %c0_5] : memref<1x32xf32, #tpu.memory_space<vmem>>, vector<1x32xf32>
    %5 = vector.broadcast %4 : vector<1x32xf32> to vector<64x32xf32>
    %6 = arith.addf %3, %5 : vector<64x32xf32>
    %cst_6 = arith.constant 0.000000e+00 : f32
    %7 = vector.broadcast %cst_6 : f32 to vector<64x32xf32>
    %8 = arith.maximumf %6, %7 : vector<64x32xf32>
    %9 = arith.truncf %8 : vector<64x32xf32> to vector<64x32xbf16>
    %cst_7 = arith.constant 0.000000e+00 : f32
    %10 = vector.broadcast %cst_7 : f32 to vector<9x64xf32>
    %c0_8 = arith.constant 0 : index
    %c0_9 = arith.constant 0 : index
    %c0_10 = arith.constant 0 : index
    %11 = vector.load %arg4[%c0_8, %c0_9, %c0_10] : memref<16x9x64xbf16, #tpu.memory_space<vmem>>, vector<1x9x64xbf16>
    %12 = vector.shape_cast %11 : vector<1x9x64xbf16> to vector<9x64xbf16>
    %cst_11 = arith.constant dense<0.000000e+00> : vector<9x32xf32>
    %13 = tpu.matmul %12, %9, %cst_11 {dimension_numbers = #tpu.dot_dimension_numbers<[1], [0], [0], [1], [0, 0, 1, 1], [], []>} : vector<9x64xbf16>, vector<64x32xbf16>, vector<9x32xf32> -> vector<9x32xf32>
    %14 = arith.truncf %13 : vector<9x32xf32> to vector<9x32xbf16>
    %c0_12 = arith.constant 0 : index
    %c0_13 = arith.constant 0 : index
    %c0_14 = arith.constant 0 : index
    %15 = vector.load %arg5[%c0_12, %c0_13, %c0_14] : memref<16x32x64xbf16, #tpu.memory_space<vmem>>, vector<1x32x64xbf16>
    %16 = vector.shape_cast %15 : vector<1x32x64xbf16> to vector<32x64xbf16>
    %cst_15 = arith.constant dense<0.000000e+00> : vector<9x64xf32>
    %17 = tpu.matmul %14, %16, %cst_15 {dimension_numbers = #tpu.dot_dimension_numbers<[1], [0], [0], [1], [0, 0, 1, 1], [], []>} : vector<9x32xbf16>, vector<32x64xbf16>, vector<9x64xf32> -> vector<9x64xf32>
    %18 = arith.addf %10, %17 : vector<9x64xf32>
    %c1 = arith.constant 1 : index
    %c0_16 = arith.constant 0 : index
    %c0_17 = arith.constant 0 : index
    %19 = vector.load %arg4[%c1, %c0_16, %c0_17] : memref<16x9x64xbf16, #tpu.memory_space<vmem>>, vector<1x9x64xbf16>
    %20 = vector.shape_cast %19 : vector<1x9x64xbf16> to vector<9x64xbf16>
    %cst_18 = arith.constant dense<0.000000e+00> : vector<9x32xf32>
    %21 = tpu.matmul %20, %9, %cst_18 {dimension_numbers = #tpu.dot_dimension_numbers<[1], [0], [0], [1], [0, 0, 1, 1], [], []>} : vector<9x64xbf16>, vector<64x32xbf16>, vector<9x32xf32> -> vector<9x32xf32>
    %22 = arith.truncf %21 : vector<9x32xf32> to vector<9x32xbf16>
    %c1_19 = arith.constant 1 : index
    %c0_20 = arith.constant 0 : index
    %c0_21 = arith.constant 0 : index
    %23 = vector.load %arg5[%c1_19, %c0_20, %c0_21] : memref<16x32x64xbf16, #tpu.memory_space<vmem>>, vector<1x32x64xbf16>
    %24 = vector.shape_cast %23 : vector<1x32x64xbf16> to vector<32x64xbf16>
    %cst_22 = arith.constant dense<0.000000e+00> : vector<9x64xf32>
    %25 = tpu.matmul %22, %24, %cst_22 {dimension_numbers = #tpu.dot_dimension_numbers<[1], [0], [0], [1], [0, 0, 1, 1], [], []>} : vector<9x32xbf16>, vector<32x64xbf16>, vector<9x64xf32> -> vector<9x64xf32>
    %26 = arith.addf %18, %25 : vector<9x64xf32>
    %c2 = arith.constant 2 : index
    %c0_23 = arith.constant 0 : index
    %c0_24 = arith.constant 0 : index
    %27 = vector.load %arg4[%c2, %c0_23, %c0_24] : memref<16x9x64xbf16, #tpu.memory_space<vmem>>, vector<1x9x64xbf16>
    %28 = vector.shape_cast %27 : vector<1x9x64xbf16> to vector<9x64xbf16>
    %cst_25 = arith.constant dense<0.000000e+00> : vector<9x32xf32>
    %29 = tpu.matmul %28, %9, %cst_25 {dimension_numbers = #tpu.dot_dimension_numbers<[1], [0], [0], [1], [0, 0, 1, 1], [], []>} : vector<9x64xbf16>, vector<64x32xbf16>, vector<9x32xf32> -> vector<9x32xf32>
    %30 = arith.truncf %29 : vector<9x32xf32> to vector<9x32xbf16>
    %c2_26 = arith.constant 2 : index
    %c0_27 = arith.constant 0 : index
    %c0_28 = arith.constant 0 : index
    %31 = vector.load %arg5[%c2_26, %c0_27, %c0_28] : memref<16x32x64xbf16, #tpu.memory_space<vmem>>, vector<1x32x64xbf16>
    %32 = vector.shape_cast %31 : vector<1x32x64xbf16> to vector<32x64xbf16>
    %cst_29 = arith.constant dense<0.000000e+00> : vector<9x64xf32>
    %33 = tpu.matmul %30, %32, %cst_29 {dimension_numbers = #tpu.dot_dimension_numbers<[1], [0], [0], [1], [0, 0, 1, 1], [], []>} : vector<9x32xbf16>, vector<32x64xbf16>, vector<9x64xf32> -> vector<9x64xf32>
    %34 = arith.addf %26, %33 : vector<9x64xf32>
    %c3 = arith.constant 3 : index
    %c0_30 = arith.constant 0 : index
    %c0_31 = arith.constant 0 : index
    %35 = vector.load %arg4[%c3, %c0_30, %c0_31] : memref<16x9x64xbf16, #tpu.memory_space<vmem>>, vector<1x9x64xbf16>
    %36 = vector.shape_cast %35 : vector<1x9x64xbf16> to vector<9x64xbf16>
    %cst_32 = arith.constant dense<0.000000e+00> : vector<9x32xf32>
    %37 = tpu.matmul %36, %9, %cst_32 {dimension_numbers = #tpu.dot_dimension_numbers<[1], [0], [0], [1], [0, 0, 1, 1], [], []>} : vector<9x64xbf16>, vector<64x32xbf16>, vector<9x32xf32> -> vector<9x32xf32>
    %38 = arith.truncf %37 : vector<9x32xf32> to vector<9x32xbf16>
    %c3_33 = arith.constant 3 : index
    %c0_34 = arith.constant 0 : index
    %c0_35 = arith.constant 0 : index
    %39 = vector.load %arg5[%c3_33, %c0_34, %c0_35] : memref<16x32x64xbf16, #tpu.memory_space<vmem>>, vector<1x32x64xbf16>
    %40 = vector.shape_cast %39 : vector<1x32x64xbf16> to vector<32x64xbf16>
    %cst_36 = arith.constant dense<0.000000e+00> : vector<9x64xf32>
    %41 = tpu.matmul %38, %40, %cst_36 {dimension_numbers = #tpu.dot_dimension_numbers<[1], [0], [0], [1], [0, 0, 1, 1], [], []>} : vector<9x32xbf16>, vector<32x64xbf16>, vector<9x64xf32> -> vector<9x64xf32>
    %42 = arith.addf %34, %41 : vector<9x64xf32>
    %c4 = arith.constant 4 : index
    %c0_37 = arith.constant 0 : index
    %c0_38 = arith.constant 0 : index
    %43 = vector.load %arg4[%c4, %c0_37, %c0_38] : memref<16x9x64xbf16, #tpu.memory_space<vmem>>, vector<1x9x64xbf16>
    %44 = vector.shape_cast %43 : vector<1x9x64xbf16> to vector<9x64xbf16>
    %cst_39 = arith.constant dense<0.000000e+00> : vector<9x32xf32>
    %45 = tpu.matmul %44, %9, %cst_39 {dimension_numbers = #tpu.dot_dimension_numbers<[1], [0], [0], [1], [0, 0, 1, 1], [], []>} : vector<9x64xbf16>, vector<64x32xbf16>, vector<9x32xf32> -> vector<9x32xf32>
    %46 = arith.truncf %45 : vector<9x32xf32> to vector<9x32xbf16>
    %c4_40 = arith.constant 4 : index
    %c0_41 = arith.constant 0 : index
    %c0_42 = arith.constant 0 : index
    %47 = vector.load %arg5[%c4_40, %c0_41, %c0_42] : memref<16x32x64xbf16, #tpu.memory_space<vmem>>, vector<1x32x64xbf16>
    %48 = vector.shape_cast %47 : vector<1x32x64xbf16> to vector<32x64xbf16>
    %cst_43 = arith.constant dense<0.000000e+00> : vector<9x64xf32>
    %49 = tpu.matmul %46, %48, %cst_43 {dimension_numbers = #tpu.dot_dimension_numbers<[1], [0], [0], [1], [0, 0, 1, 1], [], []>} : vector<9x32xbf16>, vector<32x64xbf16>, vector<9x64xf32> -> vector<9x64xf32>
    %50 = arith.addf %42, %49 : vector<9x64xf32>
    %c5 = arith.constant 5 : index
    %c0_44 = arith.constant 0 : index
    %c0_45 = arith.constant 0 : index
    %51 = vector.load %arg4[%c5, %c0_44, %c0_45] : memref<16x9x64xbf16, #tpu.memory_space<vmem>>, vector<1x9x64xbf16>
    %52 = vector.shape_cast %51 : vector<1x9x64xbf16> to vector<9x64xbf16>
    %cst_46 = arith.constant dense<0.000000e+00> : vector<9x32xf32>
    %53 = tpu.matmul %52, %9, %cst_46 {dimension_numbers = #tpu.dot_dimension_numbers<[1], [0], [0], [1], [0, 0, 1, 1], [], []>} : vector<9x64xbf16>, vector<64x32xbf16>, vector<9x32xf32> -> vector<9x32xf32>
    %54 = arith.truncf %53 : vector<9x32xf32> to vector<9x32xbf16>
    %c5_47 = arith.constant 5 : index
    %c0_48 = arith.constant 0 : index
    %c0_49 = arith.constant 0 : index
    %55 = vector.load %arg5[%c5_47, %c0_48, %c0_49] : memref<16x32x64xbf16, #tpu.memory_space<vmem>>, vector<1x32x64xbf16>
    %56 = vector.shape_cast %55 : vector<1x32x64xbf16> to vector<32x64xbf16>
    %cst_50 = arith.constant dense<0.000000e+00> : vector<9x64xf32>
    %57 = tpu.matmul %54, %56, %cst_50 {dimension_numbers = #tpu.dot_dimension_numbers<[1], [0], [0], [1], [0, 0, 1, 1], [], []>} : vector<9x32xbf16>, vector<32x64xbf16>, vector<9x64xf32> -> vector<9x64xf32>
    %58 = arith.addf %50, %57 : vector<9x64xf32>
    %c6 = arith.constant 6 : index
    %c0_51 = arith.constant 0 : index
    %c0_52 = arith.constant 0 : index
    %59 = vector.load %arg4[%c6, %c0_51, %c0_52] : memref<16x9x64xbf16, #tpu.memory_space<vmem>>, vector<1x9x64xbf16>
    %60 = vector.shape_cast %59 : vector<1x9x64xbf16> to vector<9x64xbf16>
    %cst_53 = arith.constant dense<0.000000e+00> : vector<9x32xf32>
    %61 = tpu.matmul %60, %9, %cst_53 {dimension_numbers = #tpu.dot_dimension_numbers<[1], [0], [0], [1], [0, 0, 1, 1], [], []>} : vector<9x64xbf16>, vector<64x32xbf16>, vector<9x32xf32> -> vector<9x32xf32>
    %62 = arith.truncf %61 : vector<9x32xf32> to vector<9x32xbf16>
    %c6_54 = arith.constant 6 : index
    %c0_55 = arith.constant 0 : index
    %c0_56 = arith.constant 0 : index
    %63 = vector.load %arg5[%c6_54, %c0_55, %c0_56] : memref<16x32x64xbf16, #tpu.memory_space<vmem>>, vector<1x32x64xbf16>
    %64 = vector.shape_cast %63 : vector<1x32x64xbf16> to vector<32x64xbf16>
    %cst_57 = arith.constant dense<0.000000e+00> : vector<9x64xf32>
    %65 = tpu.matmul %62, %64, %cst_57 {dimension_numbers = #tpu.dot_dimension_numbers<[1], [0], [0], [1], [0, 0, 1, 1], [], []>} : vector<9x32xbf16>, vector<32x64xbf16>, vector<9x64xf32> -> vector<9x64xf32>
    %66 = arith.addf %58, %65 : vector<9x64xf32>
    %c7 = arith.constant 7 : index
    %c0_58 = arith.constant 0 : index
    %c0_59 = arith.constant 0 : index
    %67 = vector.load %arg4[%c7, %c0_58, %c0_59] : memref<16x9x64xbf16, #tpu.memory_space<vmem>>, vector<1x9x64xbf16>
    %68 = vector.shape_cast %67 : vector<1x9x64xbf16> to vector<9x64xbf16>
    %cst_60 = arith.constant dense<0.000000e+00> : vector<9x32xf32>
    %69 = tpu.matmul %68, %9, %cst_60 {dimension_numbers = #tpu.dot_dimension_numbers<[1], [0], [0], [1], [0, 0, 1, 1], [], []>} : vector<9x64xbf16>, vector<64x32xbf16>, vector<9x32xf32> -> vector<9x32xf32>
    %70 = arith.truncf %69 : vector<9x32xf32> to vector<9x32xbf16>
    %c7_61 = arith.constant 7 : index
    %c0_62 = arith.constant 0 : index
    %c0_63 = arith.constant 0 : index
    %71 = vector.load %arg5[%c7_61, %c0_62, %c0_63] : memref<16x32x64xbf16, #tpu.memory_space<vmem>>, vector<1x32x64xbf16>
    %72 = vector.shape_cast %71 : vector<1x32x64xbf16> to vector<32x64xbf16>
    %cst_64 = arith.constant dense<0.000000e+00> : vector<9x64xf32>
    %73 = tpu.matmul %70, %72, %cst_64 {dimension_numbers = #tpu.dot_dimension_numbers<[1], [0], [0], [1], [0, 0, 1, 1], [], []>} : vector<9x32xbf16>, vector<32x64xbf16>, vector<9x64xf32> -> vector<9x64xf32>
    %74 = arith.addf %66, %73 : vector<9x64xf32>
    %c8 = arith.constant 8 : index
    %c0_65 = arith.constant 0 : index
    %c0_66 = arith.constant 0 : index
    %75 = vector.load %arg4[%c8, %c0_65, %c0_66] : memref<16x9x64xbf16, #tpu.memory_space<vmem>>, vector<1x9x64xbf16>
    %76 = vector.shape_cast %75 : vector<1x9x64xbf16> to vector<9x64xbf16>
    %cst_67 = arith.constant dense<0.000000e+00> : vector<9x32xf32>
    %77 = tpu.matmul %76, %9, %cst_67 {dimension_numbers = #tpu.dot_dimension_numbers<[1], [0], [0], [1], [0, 0, 1, 1], [], []>} : vector<9x64xbf16>, vector<64x32xbf16>, vector<9x32xf32> -> vector<9x32xf32>
    %78 = arith.truncf %77 : vector<9x32xf32> to vector<9x32xbf16>
    %c8_68 = arith.constant 8 : index
    %c0_69 = arith.constant 0 : index
    %c0_70 = arith.constant 0 : index
    %79 = vector.load %arg5[%c8_68, %c0_69, %c0_70] : memref<16x32x64xbf16, #tpu.memory_space<vmem>>, vector<1x32x64xbf16>
    %80 = vector.shape_cast %79 : vector<1x32x64xbf16> to vector<32x64xbf16>
    %cst_71 = arith.constant dense<0.000000e+00> : vector<9x64xf32>
    %81 = tpu.matmul %78, %80, %cst_71 {dimension_numbers = #tpu.dot_dimension_numbers<[1], [0], [0], [1], [0, 0, 1, 1], [], []>} : vector<9x32xbf16>, vector<32x64xbf16>, vector<9x64xf32> -> vector<9x64xf32>
    %82 = arith.addf %74, %81 : vector<9x64xf32>
    %c9 = arith.constant 9 : index
    %c0_72 = arith.constant 0 : index
    %c0_73 = arith.constant 0 : index
    %83 = vector.load %arg4[%c9, %c0_72, %c0_73] : memref<16x9x64xbf16, #tpu.memory_space<vmem>>, vector<1x9x64xbf16>
    %84 = vector.shape_cast %83 : vector<1x9x64xbf16> to vector<9x64xbf16>
    %cst_74 = arith.constant dense<0.000000e+00> : vector<9x32xf32>
    %85 = tpu.matmul %84, %9, %cst_74 {dimension_numbers = #tpu.dot_dimension_numbers<[1], [0], [0], [1], [0, 0, 1, 1], [], []>} : vector<9x64xbf16>, vector<64x32xbf16>, vector<9x32xf32> -> vector<9x32xf32>
    %86 = arith.truncf %85 : vector<9x32xf32> to vector<9x32xbf16>
    %c9_75 = arith.constant 9 : index
    %c0_76 = arith.constant 0 : index
    %c0_77 = arith.constant 0 : index
    %87 = vector.load %arg5[%c9_75, %c0_76, %c0_77] : memref<16x32x64xbf16, #tpu.memory_space<vmem>>, vector<1x32x64xbf16>
    %88 = vector.shape_cast %87 : vector<1x32x64xbf16> to vector<32x64xbf16>
    %cst_78 = arith.constant dense<0.000000e+00> : vector<9x64xf32>
    %89 = tpu.matmul %86, %88, %cst_78 {dimension_numbers = #tpu.dot_dimension_numbers<[1], [0], [0], [1], [0, 0, 1, 1], [], []>} : vector<9x32xbf16>, vector<32x64xbf16>, vector<9x64xf32> -> vector<9x64xf32>
    %90 = arith.addf %82, %89 : vector<9x64xf32>
    %c10 = arith.constant 10 : index
    %c0_79 = arith.constant 0 : index
    %c0_80 = arith.constant 0 : index
    %91 = vector.load %arg4[%c10, %c0_79, %c0_80] : memref<16x9x64xbf16, #tpu.memory_space<vmem>>, vector<1x9x64xbf16>
    %92 = vector.shape_cast %91 : vector<1x9x64xbf16> to vector<9x64xbf16>
    %cst_81 = arith.constant dense<0.000000e+00> : vector<9x32xf32>
    %93 = tpu.matmul %92, %9, %cst_81 {dimension_numbers = #tpu.dot_dimension_numbers<[1], [0], [0], [1], [0, 0, 1, 1], [], []>} : vector<9x64xbf16>, vector<64x32xbf16>, vector<9x32xf32> -> vector<9x32xf32>
    %94 = arith.truncf %93 : vector<9x32xf32> to vector<9x32xbf16>
    %c10_82 = arith.constant 10 : index
    %c0_83 = arith.constant 0 : index
    %c0_84 = arith.constant 0 : index
    %95 = vector.load %arg5[%c10_82, %c0_83, %c0_84] : memref<16x32x64xbf16, #tpu.memory_space<vmem>>, vector<1x32x64xbf16>
    %96 = vector.shape_cast %95 : vector<1x32x64xbf16> to vector<32x64xbf16>
    %cst_85 = arith.constant dense<0.000000e+00> : vector<9x64xf32>
    %97 = tpu.matmul %94, %96, %cst_85 {dimension_numbers = #tpu.dot_dimension_numbers<[1], [0], [0], [1], [0, 0, 1, 1], [], []>} : vector<9x32xbf16>, vector<32x64xbf16>, vector<9x64xf32> -> vector<9x64xf32>
    %98 = arith.addf %90, %97 : vector<9x64xf32>
    %c11 = arith.constant 11 : index
    %c0_86 = arith.constant 0 : index
    %c0_87 = arith.constant 0 : index
    %99 = vector.load %arg4[%c11, %c0_86, %c0_87] : memref<16x9x64xbf16, #tpu.memory_space<vmem>>, vector<1x9x64xbf16>
    %100 = vector.shape_cast %99 : vector<1x9x64xbf16> to vector<9x64xbf16>
    %cst_88 = arith.constant dense<0.000000e+00> : vector<9x32xf32>
    %101 = tpu.matmul %100, %9, %cst_88 {dimension_numbers = #tpu.dot_dimension_numbers<[1], [0], [0], [1], [0, 0, 1, 1], [], []>} : vector<9x64xbf16>, vector<64x32xbf16>, vector<9x32xf32> -> vector<9x32xf32>
    %102 = arith.truncf %101 : vector<9x32xf32> to vector<9x32xbf16>
    %c11_89 = arith.constant 11 : index
    %c0_90 = arith.constant 0 : index
    %c0_91 = arith.constant 0 : index
    %103 = vector.load %arg5[%c11_89, %c0_90, %c0_91] : memref<16x32x64xbf16, #tpu.memory_space<vmem>>, vector<1x32x64xbf16>
    %104 = vector.shape_cast %103 : vector<1x32x64xbf16> to vector<32x64xbf16>
    %cst_92 = arith.constant dense<0.000000e+00> : vector<9x64xf32>
    %105 = tpu.matmul %102, %104, %cst_92 {dimension_numbers = #tpu.dot_dimension_numbers<[1], [0], [0], [1], [0, 0, 1, 1], [], []>} : vector<9x32xbf16>, vector<32x64xbf16>, vector<9x64xf32> -> vector<9x64xf32>
    %106 = arith.addf %98, %105 : vector<9x64xf32>
    %c12 = arith.constant 12 : index
    %c0_93 = arith.constant 0 : index
    %c0_94 = arith.constant 0 : index
    %107 = vector.load %arg4[%c12, %c0_93, %c0_94] : memref<16x9x64xbf16, #tpu.memory_space<vmem>>, vector<1x9x64xbf16>
    %108 = vector.shape_cast %107 : vector<1x9x64xbf16> to vector<9x64xbf16>
    %cst_95 = arith.constant dense<0.000000e+00> : vector<9x32xf32>
    %109 = tpu.matmul %108, %9, %cst_95 {dimension_numbers = #tpu.dot_dimension_numbers<[1], [0], [0], [1], [0, 0, 1, 1], [], []>} : vector<9x64xbf16>, vector<64x32xbf16>, vector<9x32xf32> -> vector<9x32xf32>
    %110 = arith.truncf %109 : vector<9x32xf32> to vector<9x32xbf16>
    %c12_96 = arith.constant 12 : index
    %c0_97 = arith.constant 0 : index
    %c0_98 = arith.constant 0 : index
    %111 = vector.load %arg5[%c12_96, %c0_97, %c0_98] : memref<16x32x64xbf16, #tpu.memory_space<vmem>>, vector<1x32x64xbf16>
    %112 = vector.shape_cast %111 : vector<1x32x64xbf16> to vector<32x64xbf16>
    %cst_99 = arith.constant dense<0.000000e+00> : vector<9x64xf32>
    %113 = tpu.matmul %110, %112, %cst_99 {dimension_numbers = #tpu.dot_dimension_numbers<[1], [0], [0], [1], [0, 0, 1, 1], [], []>} : vector<9x32xbf16>, vector<32x64xbf16>, vector<9x64xf32> -> vector<9x64xf32>
    %114 = arith.addf %106, %113 : vector<9x64xf32>
    %c13 = arith.constant 13 : index
    %c0_100 = arith.constant 0 : index
    %c0_101 = arith.constant 0 : index
    %115 = vector.load %arg4[%c13, %c0_100, %c0_101] : memref<16x9x64xbf16, #tpu.memory_space<vmem>>, vector<1x9x64xbf16>
    %116 = vector.shape_cast %115 : vector<1x9x64xbf16> to vector<9x64xbf16>
    %cst_102 = arith.constant dense<0.000000e+00> : vector<9x32xf32>
    %117 = tpu.matmul %116, %9, %cst_102 {dimension_numbers = #tpu.dot_dimension_numbers<[1], [0], [0], [1], [0, 0, 1, 1], [], []>} : vector<9x64xbf16>, vector<64x32xbf16>, vector<9x32xf32> -> vector<9x32xf32>
    %118 = arith.truncf %117 : vector<9x32xf32> to vector<9x32xbf16>
    %c13_103 = arith.constant 13 : index
    %c0_104 = arith.constant 0 : index
    %c0_105 = arith.constant 0 : index
    %119 = vector.load %arg5[%c13_103, %c0_104, %c0_105] : memref<16x32x64xbf16, #tpu.memory_space<vmem>>, vector<1x32x64xbf16>
    %120 = vector.shape_cast %119 : vector<1x32x64xbf16> to vector<32x64xbf16>
    %cst_106 = arith.constant dense<0.000000e+00> : vector<9x64xf32>
    %121 = tpu.matmul %118, %120, %cst_106 {dimension_numbers = #tpu.dot_dimension_numbers<[1], [0], [0], [1], [0, 0, 1, 1], [], []>} : vector<9x32xbf16>, vector<32x64xbf16>, vector<9x64xf32> -> vector<9x64xf32>
    %122 = arith.addf %114, %121 : vector<9x64xf32>
    %c14 = arith.constant 14 : index
    %c0_107 = arith.constant 0 : index
    %c0_108 = arith.constant 0 : index
    %123 = vector.load %arg4[%c14, %c0_107, %c0_108] : memref<16x9x64xbf16, #tpu.memory_space<vmem>>, vector<1x9x64xbf16>
    %124 = vector.shape_cast %123 : vector<1x9x64xbf16> to vector<9x64xbf16>
    %cst_109 = arith.constant dense<0.000000e+00> : vector<9x32xf32>
    %125 = tpu.matmul %124, %9, %cst_109 {dimension_numbers = #tpu.dot_dimension_numbers<[1], [0], [0], [1], [0, 0, 1, 1], [], []>} : vector<9x64xbf16>, vector<64x32xbf16>, vector<9x32xf32> -> vector<9x32xf32>
    %126 = arith.truncf %125 : vector<9x32xf32> to vector<9x32xbf16>
    %c14_110 = arith.constant 14 : index
    %c0_111 = arith.constant 0 : index
    %c0_112 = arith.constant 0 : index
    %127 = vector.load %arg5[%c14_110, %c0_111, %c0_112] : memref<16x32x64xbf16, #tpu.memory_space<vmem>>, vector<1x32x64xbf16>
    %128 = vector.shape_cast %127 : vector<1x32x64xbf16> to vector<32x64xbf16>
    %cst_113 = arith.constant dense<0.000000e+00> : vector<9x64xf32>
    %129 = tpu.matmul %126, %128, %cst_113 {dimension_numbers = #tpu.dot_dimension_numbers<[1], [0], [0], [1], [0, 0, 1, 1], [], []>} : vector<9x32xbf16>, vector<32x64xbf16>, vector<9x64xf32> -> vector<9x64xf32>
    %130 = arith.addf %122, %129 : vector<9x64xf32>
    %c15 = arith.constant 15 : index
    %c0_114 = arith.constant 0 : index
    %c0_115 = arith.constant 0 : index
    %131 = vector.load %arg4[%c15, %c0_114, %c0_115] : memref<16x9x64xbf16, #tpu.memory_space<vmem>>, vector<1x9x64xbf16>
    %132 = vector.shape_cast %131 : vector<1x9x64xbf16> to vector<9x64xbf16>
    %cst_116 = arith.constant dense<0.000000e+00> : vector<9x32xf32>
    %133 = tpu.matmul %132, %9, %cst_116 {dimension_numbers = #tpu.dot_dimension_numbers<[1], [0], [0], [1], [0, 0, 1, 1], [], []>} : vector<9x64xbf16>, vector<64x32xbf16>, vector<9x32xf32> -> vector<9x32xf32>
    %134 = arith.truncf %133 : vector<9x32xf32> to vector<9x32xbf16>
    %c15_117 = arith.constant 15 : index
    %c0_118 = arith.constant 0 : index
    %c0_119 = arith.constant 0 : index
    %135 = vector.load %arg5[%c15_117, %c0_118, %c0_119] : memref<16x32x64xbf16, #tpu.memory_space<vmem>>, vector<1x32x64xbf16>
    %136 = vector.shape_cast %135 : vector<1x32x64xbf16> to vector<32x64xbf16>
    %cst_120 = arith.constant dense<0.000000e+00> : vector<9x64xf32>
    %137 = tpu.matmul %134, %136, %cst_120 {dimension_numbers = #tpu.dot_dimension_numbers<[1], [0], [0], [1], [0, 0, 1, 1], [], []>} : vector<9x32xbf16>, vector<32x64xbf16>, vector<9x64xf32> -> vector<9x64xf32>
    %138 = arith.addf %130, %137 : vector<9x64xf32>
    %c0_121 = arith.constant 0 : index
    %c0_122 = arith.constant 0 : index
    %139 = vector.load %arg6[%c0_121, %c0_122] : memref<1x64xf32, #tpu.memory_space<vmem>>, vector<1x64xf32>
    %140 = vector.broadcast %139 : vector<1x64xf32> to vector<9x64xf32>
    %141 = arith.addf %138, %140 : vector<9x64xf32>
    %cst_123 = arith.constant 0.000000e+00 : f32
    %142 = vector.broadcast %cst_123 : f32 to vector<9x64xf32>
    %143 = arith.maximumf %141, %142 : vector<9x64xf32>
    %144 = arith.truncf %143 : vector<9x64xf32> to vector<9x64xbf16>
    %cst_124 = arith.constant 0.000000e+00 : f32
    %145 = vector.broadcast %cst_124 : f32 to vector<1x64xf32>
    %c0_125 = arith.constant 0 : index
    %c0_126 = arith.constant 0 : index
    %c0_127 = arith.constant 0 : index
    %146 = vector.load %arg7[%c0_125, %c0_126, %c0_127] : memref<9x1x9xbf16, #tpu.memory_space<vmem>>, vector<1x1x9xbf16>
    %147 = vector.shape_cast %146 : vector<1x1x9xbf16> to vector<1x9xbf16>
    %cst_128 = arith.constant dense<0.000000e+00> : vector<1x64xf32>
    %148 = tpu.matmul %147, %144, %cst_128 {dimension_numbers = #tpu.dot_dimension_numbers<[1], [0], [0], [1], [0, 0, 1, 1], [], []>} : vector<1x9xbf16>, vector<9x64xbf16>, vector<1x64xf32> -> vector<1x64xf32>
    %149 = arith.truncf %148 : vector<1x64xf32> to vector<1x64xbf16>
    %c0_129 = arith.constant 0 : index
    %c0_130 = arith.constant 0 : index
    %c0_131 = arith.constant 0 : index
    %150 = vector.load %arg8[%c0_129, %c0_130, %c0_131] : memref<9x64x64xbf16, #tpu.memory_space<vmem>>, vector<1x64x64xbf16>
    %151 = vector.shape_cast %150 : vector<1x64x64xbf16> to vector<64x64xbf16>
    %cst_132 = arith.constant dense<0.000000e+00> : vector<1x64xf32>
    %152 = tpu.matmul %149, %151, %cst_132 {dimension_numbers = #tpu.dot_dimension_numbers<[1], [0], [0], [1], [0, 0, 1, 1], [], []>} : vector<1x64xbf16>, vector<64x64xbf16>, vector<1x64xf32> -> vector<1x64xf32>
    %153 = arith.addf %145, %152 : vector<1x64xf32>
    %c1_133 = arith.constant 1 : index
    %c0_134 = arith.constant 0 : index
    %c0_135 = arith.constant 0 : index
    %154 = vector.load %arg7[%c1_133, %c0_134, %c0_135] : memref<9x1x9xbf16, #tpu.memory_space<vmem>>, vector<1x1x9xbf16>
    %155 = vector.shape_cast %154 : vector<1x1x9xbf16> to vector<1x9xbf16>
    %cst_136 = arith.constant dense<0.000000e+00> : vector<1x64xf32>
    %156 = tpu.matmul %155, %144, %cst_136 {dimension_numbers = #tpu.dot_dimension_numbers<[1], [0], [0], [1], [0, 0, 1, 1], [], []>} : vector<1x9xbf16>, vector<9x64xbf16>, vector<1x64xf32> -> vector<1x64xf32>
    %157 = arith.truncf %156 : vector<1x64xf32> to vector<1x64xbf16>
    %c1_137 = arith.constant 1 : index
    %c0_138 = arith.constant 0 : index
    %c0_139 = arith.constant 0 : index
    %158 = vector.load %arg8[%c1_137, %c0_138, %c0_139] : memref<9x64x64xbf16, #tpu.memory_space<vmem>>, vector<1x64x64xbf16>
    %159 = vector.shape_cast %158 : vector<1x64x64xbf16> to vector<64x64xbf16>
    %cst_140 = arith.constant dense<0.000000e+00> : vector<1x64xf32>
    %160 = tpu.matmul %157, %159, %cst_140 {dimension_numbers = #tpu.dot_dimension_numbers<[1], [0], [0], [1], [0, 0, 1, 1], [], []>} : vector<1x64xbf16>, vector<64x64xbf16>, vector<1x64xf32> -> vector<1x64xf32>
    %161 = arith.addf %153, %160 : vector<1x64xf32>
    %c2_141 = arith.constant 2 : index
    %c0_142 = arith.constant 0 : index
    %c0_143 = arith.constant 0 : index
    %162 = vector.load %arg7[%c2_141, %c0_142, %c0_143] : memref<9x1x9xbf16, #tpu.memory_space<vmem>>, vector<1x1x9xbf16>
    %163 = vector.shape_cast %162 : vector<1x1x9xbf16> to vector<1x9xbf16>
    %cst_144 = arith.constant dense<0.000000e+00> : vector<1x64xf32>
    %164 = tpu.matmul %163, %144, %cst_144 {dimension_numbers = #tpu.dot_dimension_numbers<[1], [0], [0], [1], [0, 0, 1, 1], [], []>} : vector<1x9xbf16>, vector<9x64xbf16>, vector<1x64xf32> -> vector<1x64xf32>
    %165 = arith.truncf %164 : vector<1x64xf32> to vector<1x64xbf16>
    %c2_145 = arith.constant 2 : index
    %c0_146 = arith.constant 0 : index
    %c0_147 = arith.constant 0 : index
    %166 = vector.load %arg8[%c2_145, %c0_146, %c0_147] : memref<9x64x64xbf16, #tpu.memory_space<vmem>>, vector<1x64x64xbf16>
    %167 = vector.shape_cast %166 : vector<1x64x64xbf16> to vector<64x64xbf16>
    %cst_148 = arith.constant dense<0.000000e+00> : vector<1x64xf32>
    %168 = tpu.matmul %165, %167, %cst_148 {dimension_numbers = #tpu.dot_dimension_numbers<[1], [0], [0], [1], [0, 0, 1, 1], [], []>} : vector<1x64xbf16>, vector<64x64xbf16>, vector<1x64xf32> -> vector<1x64xf32>
    %169 = arith.addf %161, %168 : vector<1x64xf32>
    %c3_149 = arith.constant 3 : index
    %c0_150 = arith.constant 0 : index
    %c0_151 = arith.constant 0 : index
    %170 = vector.load %arg7[%c3_149, %c0_150, %c0_151] : memref<9x1x9xbf16, #tpu.memory_space<vmem>>, vector<1x1x9xbf16>
    %171 = vector.shape_cast %170 : vector<1x1x9xbf16> to vector<1x9xbf16>
    %cst_152 = arith.constant dense<0.000000e+00> : vector<1x64xf32>
    %172 = tpu.matmul %171, %144, %cst_152 {dimension_numbers = #tpu.dot_dimension_numbers<[1], [0], [0], [1], [0, 0, 1, 1], [], []>} : vector<1x9xbf16>, vector<9x64xbf16>, vector<1x64xf32> -> vector<1x64xf32>
    %173 = arith.truncf %172 : vector<1x64xf32> to vector<1x64xbf16>
    %c3_153 = arith.constant 3 : index
    %c0_154 = arith.constant 0 : index
    %c0_155 = arith.constant 0 : index
    %174 = vector.load %arg8[%c3_153, %c0_154, %c0_155] : memref<9x64x64xbf16, #tpu.memory_space<vmem>>, vector<1x64x64xbf16>
    %175 = vector.shape_cast %174 : vector<1x64x64xbf16> to vector<64x64xbf16>
    %cst_156 = arith.constant dense<0.000000e+00> : vector<1x64xf32>
    %176 = tpu.matmul %173, %175, %cst_156 {dimension_numbers = #tpu.dot_dimension_numbers<[1], [0], [0], [1], [0, 0, 1, 1], [], []>} : vector<1x64xbf16>, vector<64x64xbf16>, vector<1x64xf32> -> vector<1x64xf32>
    %177 = arith.addf %169, %176 : vector<1x64xf32>
    %c4_157 = arith.constant 4 : index
    %c0_158 = arith.constant 0 : index
    %c0_159 = arith.constant 0 : index
    %178 = vector.load %arg7[%c4_157, %c0_158, %c0_159] : memref<9x1x9xbf16, #tpu.memory_space<vmem>>, vector<1x1x9xbf16>
    %179 = vector.shape_cast %178 : vector<1x1x9xbf16> to vector<1x9xbf16>
    %cst_160 = arith.constant dense<0.000000e+00> : vector<1x64xf32>
    %180 = tpu.matmul %179, %144, %cst_160 {dimension_numbers = #tpu.dot_dimension_numbers<[1], [0], [0], [1], [0, 0, 1, 1], [], []>} : vector<1x9xbf16>, vector<9x64xbf16>, vector<1x64xf32> -> vector<1x64xf32>
    %181 = arith.truncf %180 : vector<1x64xf32> to vector<1x64xbf16>
    %c4_161 = arith.constant 4 : index
    %c0_162 = arith.constant 0 : index
    %c0_163 = arith.constant 0 : index
    %182 = vector.load %arg8[%c4_161, %c0_162, %c0_163] : memref<9x64x64xbf16, #tpu.memory_space<vmem>>, vector<1x64x64xbf16>
    %183 = vector.shape_cast %182 : vector<1x64x64xbf16> to vector<64x64xbf16>
    %cst_164 = arith.constant dense<0.000000e+00> : vector<1x64xf32>
    %184 = tpu.matmul %181, %183, %cst_164 {dimension_numbers = #tpu.dot_dimension_numbers<[1], [0], [0], [1], [0, 0, 1, 1], [], []>} : vector<1x64xbf16>, vector<64x64xbf16>, vector<1x64xf32> -> vector<1x64xf32>
    %185 = arith.addf %177, %184 : vector<1x64xf32>
    %c5_165 = arith.constant 5 : index
    %c0_166 = arith.constant 0 : index
    %c0_167 = arith.constant 0 : index
    %186 = vector.load %arg7[%c5_165, %c0_166, %c0_167] : memref<9x1x9xbf16, #tpu.memory_space<vmem>>, vector<1x1x9xbf16>
    %187 = vector.shape_cast %186 : vector<1x1x9xbf16> to vector<1x9xbf16>
    %cst_168 = arith.constant dense<0.000000e+00> : vector<1x64xf32>
    %188 = tpu.matmul %187, %144, %cst_168 {dimension_numbers = #tpu.dot_dimension_numbers<[1], [0], [0], [1], [0, 0, 1, 1], [], []>} : vector<1x9xbf16>, vector<9x64xbf16>, vector<1x64xf32> -> vector<1x64xf32>
    %189 = arith.truncf %188 : vector<1x64xf32> to vector<1x64xbf16>
    %c5_169 = arith.constant 5 : index
    %c0_170 = arith.constant 0 : index
    %c0_171 = arith.constant 0 : index
    %190 = vector.load %arg8[%c5_169, %c0_170, %c0_171] : memref<9x64x64xbf16, #tpu.memory_space<vmem>>, vector<1x64x64xbf16>
    %191 = vector.shape_cast %190 : vector<1x64x64xbf16> to vector<64x64xbf16>
    %cst_172 = arith.constant dense<0.000000e+00> : vector<1x64xf32>
    %192 = tpu.matmul %189, %191, %cst_172 {dimension_numbers = #tpu.dot_dimension_numbers<[1], [0], [0], [1], [0, 0, 1, 1], [], []>} : vector<1x64xbf16>, vector<64x64xbf16>, vector<1x64xf32> -> vector<1x64xf32>
    %193 = arith.addf %185, %192 : vector<1x64xf32>
    %c6_173 = arith.constant 6 : index
    %c0_174 = arith.constant 0 : index
    %c0_175 = arith.constant 0 : index
    %194 = vector.load %arg7[%c6_173, %c0_174, %c0_175] : memref<9x1x9xbf16, #tpu.memory_space<vmem>>, vector<1x1x9xbf16>
    %195 = vector.shape_cast %194 : vector<1x1x9xbf16> to vector<1x9xbf16>
    %cst_176 = arith.constant dense<0.000000e+00> : vector<1x64xf32>
    %196 = tpu.matmul %195, %144, %cst_176 {dimension_numbers = #tpu.dot_dimension_numbers<[1], [0], [0], [1], [0, 0, 1, 1], [], []>} : vector<1x9xbf16>, vector<9x64xbf16>, vector<1x64xf32> -> vector<1x64xf32>
    %197 = arith.truncf %196 : vector<1x64xf32> to vector<1x64xbf16>
    %c6_177 = arith.constant 6 : index
    %c0_178 = arith.constant 0 : index
    %c0_179 = arith.constant 0 : index
    %198 = vector.load %arg8[%c6_177, %c0_178, %c0_179] : memref<9x64x64xbf16, #tpu.memory_space<vmem>>, vector<1x64x64xbf16>
    %199 = vector.shape_cast %198 : vector<1x64x64xbf16> to vector<64x64xbf16>
    %cst_180 = arith.constant dense<0.000000e+00> : vector<1x64xf32>
    %200 = tpu.matmul %197, %199, %cst_180 {dimension_numbers = #tpu.dot_dimension_numbers<[1], [0], [0], [1], [0, 0, 1, 1], [], []>} : vector<1x64xbf16>, vector<64x64xbf16>, vector<1x64xf32> -> vector<1x64xf32>
    %201 = arith.addf %193, %200 : vector<1x64xf32>
    %c7_181 = arith.constant 7 : index
    %c0_182 = arith.constant 0 : index
    %c0_183 = arith.constant 0 : index
    %202 = vector.load %arg7[%c7_181, %c0_182, %c0_183] : memref<9x1x9xbf16, #tpu.memory_space<vmem>>, vector<1x1x9xbf16>
    %203 = vector.shape_cast %202 : vector<1x1x9xbf16> to vector<1x9xbf16>
    %cst_184 = arith.constant dense<0.000000e+00> : vector<1x64xf32>
    %204 = tpu.matmul %203, %144, %cst_184 {dimension_numbers = #tpu.dot_dimension_numbers<[1], [0], [0], [1], [0, 0, 1, 1], [], []>} : vector<1x9xbf16>, vector<9x64xbf16>, vector<1x64xf32> -> vector<1x64xf32>
    %205 = arith.truncf %204 : vector<1x64xf32> to vector<1x64xbf16>
    %c7_185 = arith.constant 7 : index
    %c0_186 = arith.constant 0 : index
    %c0_187 = arith.constant 0 : index
    %206 = vector.load %arg8[%c7_185, %c0_186, %c0_187] : memref<9x64x64xbf16, #tpu.memory_space<vmem>>, vector<1x64x64xbf16>
    %207 = vector.shape_cast %206 : vector<1x64x64xbf16> to vector<64x64xbf16>
    %cst_188 = arith.constant dense<0.000000e+00> : vector<1x64xf32>
    %208 = tpu.matmul %205, %207, %cst_188 {dimension_numbers = #tpu.dot_dimension_numbers<[1], [0], [0], [1], [0, 0, 1, 1], [], []>} : vector<1x64xbf16>, vector<64x64xbf16>, vector<1x64xf32> -> vector<1x64xf32>
    %209 = arith.addf %201, %208 : vector<1x64xf32>
    %c8_189 = arith.constant 8 : index
    %c0_190 = arith.constant 0 : index
    %c0_191 = arith.constant 0 : index
    %210 = vector.load %arg7[%c8_189, %c0_190, %c0_191] : memref<9x1x9xbf16, #tpu.memory_space<vmem>>, vector<1x1x9xbf16>
    %211 = vector.shape_cast %210 : vector<1x1x9xbf16> to vector<1x9xbf16>
    %cst_192 = arith.constant dense<0.000000e+00> : vector<1x64xf32>
    %212 = tpu.matmul %211, %144, %cst_192 {dimension_numbers = #tpu.dot_dimension_numbers<[1], [0], [0], [1], [0, 0, 1, 1], [], []>} : vector<1x9xbf16>, vector<9x64xbf16>, vector<1x64xf32> -> vector<1x64xf32>
    %213 = arith.truncf %212 : vector<1x64xf32> to vector<1x64xbf16>
    %c8_193 = arith.constant 8 : index
    %c0_194 = arith.constant 0 : index
    %c0_195 = arith.constant 0 : index
    %214 = vector.load %arg8[%c8_193, %c0_194, %c0_195] : memref<9x64x64xbf16, #tpu.memory_space<vmem>>, vector<1x64x64xbf16>
    %215 = vector.shape_cast %214 : vector<1x64x64xbf16> to vector<64x64xbf16>
    %cst_196 = arith.constant dense<0.000000e+00> : vector<1x64xf32>
    %216 = tpu.matmul %213, %215, %cst_196 {dimension_numbers = #tpu.dot_dimension_numbers<[1], [0], [0], [1], [0, 0, 1, 1], [], []>} : vector<1x64xbf16>, vector<64x64xbf16>, vector<1x64xf32> -> vector<1x64xf32>
    %217 = arith.addf %209, %216 : vector<1x64xf32>
    %c0_197 = arith.constant 0 : index
    %c0_198 = arith.constant 0 : index
    %218 = vector.load %arg9[%c0_197, %c0_198] : memref<1x64xf32, #tpu.memory_space<vmem>>, vector<1x64xf32>
    %219 = arith.addf %217, %218 : vector<1x64xf32>
    %cst_199 = arith.constant 0.000000e+00 : f32
    %220 = vector.broadcast %cst_199 : f32 to vector<1x64xf32>
    %221 = arith.maximumf %219, %220 : vector<1x64xf32>
    %222 = arith.truncf %221 : vector<1x64xf32> to vector<1x64xbf16>
    %c0_200 = arith.constant 0 : index
    %c0_201 = arith.constant 0 : index
    %223 = vector.load %arg10[%c0_200, %c0_201] : memref<64x512xbf16, #tpu.memory_space<vmem>>, vector<64x512xbf16>
    %cst_202 = arith.constant dense<0.000000e+00> : vector<1x512xf32>
    %224 = tpu.matmul %222, %223, %cst_202 {dimension_numbers = #tpu.dot_dimension_numbers<[1], [0], [0], [1], [0, 0, 1, 1], [], []>} : vector<1x64xbf16>, vector<64x512xbf16>, vector<1x512xf32> -> vector<1x512xf32>
    %c0_203 = arith.constant 0 : index
    %c0_204 = arith.constant 0 : index
    %225 = vector.load %arg11[%c0_203, %c0_204] : memref<1x512xf32, #tpu.memory_space<vmem>>, vector<1x512xf32>
    %226 = arith.addf %224, %225 : vector<1x512xf32>
    %cst_205 = arith.constant 0.000000e+00 : f32
    %227 = vector.broadcast %cst_205 : f32 to vector<1x512xf32>
    %228 = arith.maximumf %226, %227 : vector<1x512xf32>
    %229 = arith.truncf %228 : vector<1x512xf32> to vector<1x512xbf16>
    %c0_206 = arith.constant 0 : index
    %c0_207 = arith.constant 0 : index
    %230 = vector.load %arg12[%c0_206, %c0_207] : memref<512x1xbf16, #tpu.memory_space<vmem>>, vector<512x1xbf16>
    %cst_208 = arith.constant dense<0.000000e+00> : vector<1x1xf32>
    %231 = tpu.matmul %229, %230, %cst_208 {dimension_numbers = #tpu.dot_dimension_numbers<[1], [0], [0], [1], [0, 0, 1, 1], [], []>} : vector<1x512xbf16>, vector<512x1xbf16>, vector<1x1xf32> -> vector<1x1xf32>
    %c0_209 = arith.constant 0 : index
    %c0_210 = arith.constant 0 : index
    %232 = vector.load %arg13[%c0_209, %c0_210] : memref<1x1xf32, #tpu.memory_space<vmem>>, vector<1x1xf32>
    %233 = arith.addf %231, %232 : vector<1x1xf32>
    %c0_211 = arith.constant 0 : index
    %c0_212 = arith.constant 0 : index
    %c0_213 = arith.constant 0 : index
    %234 = vector.load %arg14[%c0_211, %c0_212, %c0_213] : memref<1x1x1xf32, #tpu.memory_space<vmem>>, vector<1x1x1xf32>
    %235 = vector.shape_cast %234 : vector<1x1x1xf32> to vector<1x1xf32>
    %236 = vector.shape_cast %233 : vector<1x1xf32> to vector<1x1x1xf32>
    tpu.vector_store %arg14[%c0_211, %c0_212, %c0_213], %236 {strides = array<i32>} : memref<1x1x1xf32, #tpu.memory_space<vmem>>, vector<1x1x1xf32>,
    return
  }
  func.func @transform_0(%arg0: i32) -> (i32, i32, i32) {
    %c0_i32 = arith.constant 0 : i32
    %c0_i32_0 = arith.constant 0 : i32
    %c0_i32_1 = arith.constant 0 : i32
    return %arg0, %c0_i32, %c0_i32_0 : i32, i32, i32
  }
  func.func @transform_1(%arg0: i32) -> (i32, i32) {
    %c0_i32 = arith.constant 0 : i32
    %c0_i32_0 = arith.constant 0 : i32
    %c0_i32_1 = arith.constant 0 : i32
    return %c0_i32, %c0_i32_0 : i32, i32
  }
  func.func @transform_2(%arg0: i32) -> (i32, i32) {
    %c0_i32 = arith.constant 0 : i32
    %c0_i32_0 = arith.constant 0 : i32
    %c0_i32_1 = arith.constant 0 : i32
    return %c0_i32, %c0_i32_0 : i32, i32
  }
  func.func @transform_3(%arg0: i32) -> (i32, i32, i32) {
    %c0_i32 = arith.constant 0 : i32
    %c0_i32_0 = arith.constant 0 : i32
    %c0_i32_1 = arith.constant 0 : i32
    %c0_i32_2 = arith.constant 0 : i32
    return %c0_i32, %c0_i32_0, %c0_i32_1 : i32, i32, i32
  }
  func.func @transform_4(%arg0: i32) -> (i32, i32, i32) {
    %c0_i32 = arith.constant 0 : i32
    %c0_i32_0 = arith.constant 0 : i32
    %c0_i32_1 = arith.constant 0 : i32
    %c0_i32_2 = arith.constant 0 : i32
    return %c0_i32, %c0_i32_0, %c0_i32_1 : i32, i32, i32
  }
  func.func @transform_5(%arg0: i32) -> (i32, i32) {
    %c0_i32 = arith.constant 0 : i32
    %c0_i32_0 = arith.constant 0 : i32
    %c0_i32_1 = arith.constant 0 : i32
    return %c0_i32, %c0_i32_0 : i32, i32
  }
  func.func @transform_6(%arg0: i32) -> (i32, i32, i32) {
    %c0_i32 = arith.constant 0 : i32
    %c0_i32_0 = arith.constant 0 : i32
    %c0_i32_1 = arith.constant 0 : i32
    %c0_i32_2 = arith.constant 0 : i32
    return %c0_i32, %c0_i32_0, %c0_i32_1 : i32, i32, i32
  }
  func.func @transform_7(%arg0: i32) -> (i32, i32, i32) {
    %c0_i32 = arith.constant 0 : i32
    %c0_i32_0 = arith.constant 0 : i32
    %c0_i32_1 = arith.constant 0 : i32
    %c0_i32_2 = arith.constant 0 : i32
    return %c0_i32, %c0_i32_0, %c0_i32_1 : i32, i32, i32
  }
  func.func @transform_8(%arg0: i32) -> (i32, i32) {
    %c0_i32 = arith.constant 0 : i32
    %c0_i32_0 = arith.constant 0 : i32
    %c0_i32_1 = arith.constant 0 : i32
    return %c0_i32, %c0_i32_0 : i32, i32
  }
  func.func @transform_9(%arg0: i32) -> (i32, i32) {
    %c0_i32 = arith.constant 0 : i32
    %c0_i32_0 = arith.constant 0 : i32
    %c0_i32_1 = arith.constant 0 : i32
    return %c0_i32, %c0_i32_0 : i32, i32
  }
  func.func @transform_10(%arg0: i32) -> (i32, i32) {
    %c0_i32 = arith.constant 0 : i32
    %c0_i32_0 = arith.constant 0 : i32
    %c0_i32_1 = arith.constant 0 : i32
    return %c0_i32, %c0_i32_0 : i32, i32
  }
  func.func @transform_11(%arg0: i32) -> (i32, i32) {
    %c0_i32 = arith.constant 0 : i32
    %c0_i32_0 = arith.constant 0 : i32
    %c0_i32_1 = arith.constant 0 : i32
    return %c0_i32, %c0_i32_0 : i32, i32
  }
  func.func @transform_12(%arg0: i32) -> (i32, i32) {
    %c0_i32 = arith.constant 0 : i32
    %c0_i32_0 = arith.constant 0 : i32
    %c0_i32_1 = arith.constant 0 : i32
    return %c0_i32, %c0_i32_0 : i32, i32
  }
  func.func @transform_13(%arg0: i32) -> (i32, i32, i32) {
    %c0_i32 = arith.constant 0 : i32
    %c0_i32_0 = arith.constant 0 : i32
    %c0_i32_1 = arith.constant 0 : i32
    return %arg0, %c0_i32, %c0_i32_0 : i32, i32, i32
  }
}

</mosaic_0001>

<llo_original>
// kernel: critic_forward.1
$region0: #{critic_forward.1}
  #allocation0 [shape = 'u32[]', space=smem, size = 0x4, offset = 0x4, fixed_abs, tag = 'smem constant byte address 0x4 - core index']
  #allocation1 [shape = 'u32[144,128]{1,0:T(1,128)}', space=vmem, size = 0x12000, scoped, tag = 'internal scratch']
  #allocation2 [shape = 'f32[1,1]{1,0:T(1,128)S(1)}', space=vmem, size = 0x200, scoped, tag = 'scoped memory for critic_forward.1']
  %s0 = inlined_call_operand.vmem [shape: bf16[2,64,768], index: 0, kind: input, shape index: {}]
  %s1 = inlined_call_operand.vmem [shape: bf16[768,32], index: 1, kind: input, shape index: {}]
  %s2 = inlined_call_operand.vmem [shape: f32[1,32], index: 2, kind: input, shape index: {}]
  %s3 = inlined_call_operand.vmem [shape: bf16[16,9,64], index: 3, kind: input, shape index: {}]
  %s4 = inlined_call_operand.vmem [shape: bf16[16,32,64], index: 4, kind: input, shape index: {}]
  %s5 = inlined_call_operand.vmem [shape: f32[1,64], index: 5, kind: input, shape index: {}]
  %s6 = inlined_call_operand.vmem [shape: bf16[9,1,9], index: 6, kind: input, shape index: {}]
  %s7 = inlined_call_operand.vmem [shape: bf16[9,64,64], index: 7, kind: input, shape index: {}]
  %s8 = inlined_call_operand.vmem [shape: f32[1,64], index: 8, kind: input, shape index: {}]
  %s9 = inlined_call_operand.vmem [shape: bf16[64,512], index: 9, kind: input, shape index: {}]
  %s10 = inlined_call_operand.vmem [shape: f32[1,512], index: 10, kind: input, shape index: {}]
  %s11 = inlined_call_operand.vmem [shape: bf16[512,1], index: 11, kind: input, shape index: {}]
  %s12 = inlined_call_operand.<no memory space> [shape: f32[1,1], index: 12, kind: input, shape index: {}]
  %s13 = inlined_call_operand.vmem [shape: f32[2,1,1], index: 13, kind: output, shape index: {}]
  %s14 = sld [smem:[#allocation0]]
  $region85: #{critic_forward.1} parent=0
    _
  %s16 = ssub.s32 1, %s14
  %s17 = scalar_select 0, %s16, %s14
  %v18 = vstv %s12
  %19 = vst [vmem:[#allocation2] sm:$0x1] %v18
  loop: start=0, step=1, limit=4
  $region2: #{critic_forward.1} parent=0 // loop_pre_header
    _
  $region3: #{critic_forward.1} parent=0 // loop_header
    %s21 = sphi 0, %s25
    %p22 = scmp.ge.s32.totalorder %s21, 4
    %s31 = sphi 0, %s33
    %s34 = sphi 0, %s31
    %s35 = sphi 0, %s34
    %s51 = sphi 0, %s35
    %s55 = sphi 0, %s55
    %s57 = sphi 0, %s55
    %s58 = sphi 0, %s57
    %s72 = sphi 0, %s58
    %s76 = sphi 0, %s76
    %s78 = sphi 0, %s76
    %s79 = sphi 0, %s78
    %s93 = sphi 0, %s79
    %s97 = sphi 0, %s97
    %s99 = sphi 0, %s97
    %s100 = sphi 0, %s99
    %s114 = sphi 0, %s100
    %s118 = sphi 0, %s118
    %s120 = sphi 0, %s118
    %s121 = sphi 0, %s120
    %s135 = sphi 0, %s121
    %s139 = sphi 0, %s139
    %s141 = sphi 0, %s139
    %s142 = sphi 0, %s141
    %s156 = sphi 0, %s142
    %s160 = sphi 0, %s160
    %s162 = sphi 0, %s160
    %s163 = sphi 0, %s162
    %s177 = sphi 0, %s163
    %s181 = sphi 0, %s181
    %s183 = sphi 0, %s181
    %s184 = sphi 0, %s183
    %s198 = sphi 0, %s184
    %s202 = sphi 0, %s202
    %s204 = sphi 0, %s202
    %s205 = sphi 0, %s204
    %s219 = sphi 0, %s205
    %s223 = sphi 0, %s223
    %s225 = sphi 0, %s223
    %s226 = sphi 0, %s225
    %s240 = sphi 0, %s226
    %s244 = sphi 0, %s244
    %s246 = sphi 0, %s244
    %s247 = sphi 0, %s246
    %s261 = sphi 0, %s247
    %s265 = sphi 0, %s265
    %s267 = sphi 0, %s265
    %s268 = sphi 0, %s267
    %s282 = sphi 0, %s268
    %s286 = sphi 0, %s286
    %s288 = sphi 0, %s286
    %s289 = sphi 0, %s288
    %s303 = sphi 0, %s289
    %s309 = sphi 0, %s311
    %s312 = sphi 0, %s309
    %s313 = sphi 0, %s312
    %s329 = sphi 0, %s313
  $region4: #{critic_forward.1} parent=0 // loop_header_branch
    %24 = sbr.rel (%p22) target = $region8
  $region5: #{critic_forward.1} parent=0 // loop_body
    %s26 = ssub.s32 %s21, 1
    %s27 = ssub.s32 %s21, 2
    %s28 = sadd.s32 %s21, 1
    %s29 = ssub.s32 %s21, %s28
    %p30 = scmp.eq.s32.totalorder %s29, 0
    %s32 = sadd.s32 %s31, 1
    %s33 = scalar_select %p30, %s31, %s32
    %p36 = pneg %p30
    %p37 = scmp.eq.s32.totalorder %s21, 1
    %p38 = por %p36, %p37
    %p39 = scmp.ne.s32.totalorder %s31, %s34
    %p40 = scmp.eq.s32.totalorder %s21, 0
    %p41 = por %p39, %p40
    %p42 = scmp.ne.s32.totalorder %s31, %s34
    %p43 = scmp.eq.s32.totalorder %s26, 1
    %p44 = por %p42, %p43
    %p45 = scmp.ne.s32.totalorder %s34, %s35
    %p46 = scmp.eq.s32.totalorder %s26, 0
    %p47 = por %p45, %p46
    %p48 = scmp.ne.s32.totalorder %s34, %s35
    %p49 = scmp.eq.s32.totalorder %s27, 1
    %p50 = por %p48, %p49
    %p52 = scmp.ne.s32.totalorder %s35, %s51
    %p53 = scmp.eq.s32.totalorder %s27, 0
    %p54 = por %p52, %p53
    %s56 = sadd.s32 %s55, 1
    %p59 = scmp.eq.s32.totalorder %s21, 1
    %p60 = scmp.ne.s32.totalorder %s55, %s57
    %p61 = scmp.eq.s32.totalorder %s21, 0
    %p62 = por %p60, %p61
    %p63 = scmp.ne.s32.totalorder %s55, %s57
    %p64 = scmp.eq.s32.totalorder %s26, 1
    %p65 = por %p63, %p64
    %p66 = scmp.ne.s32.totalorder %s57, %s58
    %p67 = scmp.eq.s32.totalorder %s26, 0
    %p68 = por %p66, %p67
    %p69 = scmp.ne.s32.totalorder %s57, %s58
    %p70 = scmp.eq.s32.totalorder %s27, 1
    %p71 = por %p69, %p70
    %p73 = scmp.ne.s32.totalorder %s58, %s72
    %p74 = scmp.eq.s32.totalorder %s27, 0
    %p75 = por %p73, %p74
    %s77 = sadd.s32 %s76, 1
    %p80 = scmp.eq.s32.totalorder %s21, 1
    %p81 = scmp.ne.s32.totalorder %s76, %s78
    %p82 = scmp.eq.s32.totalorder %s21, 0
    %p83 = por %p81, %p82
    %p84 = scmp.ne.s32.totalorder %s76, %s78
    %p85 = scmp.eq.s32.totalorder %s26, 1
    %p86 = por %p84, %p85
    %p87 = scmp.ne.s32.totalorder %s78, %s79
    %p88 = scmp.eq.s32.totalorder %s26, 0
    %p89 = por %p87, %p88
    %p90 = scmp.ne.s32.totalorder %s78, %s79
    %p91 = scmp.eq.s32.totalorder %s27, 1
    %p92 = por %p90, %p91
    %p94 = scmp.ne.s32.totalorder %s79, %s93
    %p95 = scmp.eq.s32.totalorder %s27, 0
    %p96 = por %p94, %p95
    %s98 = sadd.s32 %s97, 1
    %p101 = scmp.eq.s32.totalorder %s21, 1
    %p102 = scmp.ne.s32.totalorder %s97, %s99
    %p103 = scmp.eq.s32.totalorder %s21, 0
    %p104 = por %p102, %p103
    %p105 = scmp.ne.s32.totalorder %s97, %s99
    %p106 = scmp.eq.s32.totalorder %s26, 1
    %p107 = por %p105, %p106
    %p108 = scmp.ne.s32.totalorder %s99, %s100
    %p109 = scmp.eq.s32.totalorder %s26, 0
    %p110 = por %p108, %p109
    %p111 = scmp.ne.s32.totalorder %s99, %s100
    %p112 = scmp.eq.s32.totalorder %s27, 1
    %p113 = por %p111, %p112
    %p115 = scmp.ne.s32.totalorder %s100, %s114
    %p116 = scmp.eq.s32.totalorder %s27, 0
    %p117 = por %p115, %p116
    %s119 = sadd.s32 %s118, 1
    %p122 = scmp.eq.s32.totalorder %s21, 1
    %p123 = scmp.ne.s32.totalorder %s118, %s120
    %p124 = scmp.eq.s32.totalorder %s21, 0
    %p125 = por %p123, %p124
    %p126 = scmp.ne.s32.totalorder %s118, %s120
    %p127 = scmp.eq.s32.totalorder %s26, 1
    %p128 = por %p126, %p127
    %p129 = scmp.ne.s32.totalorder %s120, %s121
    %p130 = scmp.eq.s32.totalorder %s26, 0
    %p131 = por %p129, %p130
    %p132 = scmp.ne.s32.totalorder %s120, %s121
    %p133 = scmp.eq.s32.totalorder %s27, 1
    %p134 = por %p132, %p133
    %p136 = scmp.ne.s32.totalorder %s121, %s135
    %p137 = scmp.eq.s32.totalorder %s27, 0
    %p138 = por %p136, %p137
    %s140 = sadd.s32 %s139, 1
    %p143 = scmp.eq.s32.totalorder %s21, 1
    %p144 = scmp.ne.s32.totalorder %s139, %s141
    %p145 = scmp.eq.s32.totalorder %s21, 0
    %p146 = por %p144, %p145
    %p147 = scmp.ne.s32.totalorder %s139, %s141
    %p148 = scmp.eq.s32.totalorder %s26, 1
    %p149 = por %p147, %p148
    %p150 = scmp.ne.s32.totalorder %s141, %s142
    %p151 = scmp.eq.s32.totalorder %s26, 0
    %p152 = por %p150, %p151
    %p153 = scmp.ne.s32.totalorder %s141, %s142
    %p154 = scmp.eq.s32.totalorder %s27, 1
    %p155 = por %p153, %p154
    %p157 = scmp.ne.s32.totalorder %s142, %s156
    %p158 = scmp.eq.s32.totalorder %s27, 0
    %p159 = por %p157, %p158
    %s161 = sadd.s32 %s160, 1
    %p164 = scmp.eq.s32.totalorder %s21, 1
    %p165 = scmp.ne.s32.totalorder %s160, %s162
    %p166 = scmp.eq.s32.totalorder %s21, 0
    %p167 = por %p165, %p166
    %p168 = scmp.ne.s32.totalorder %s160, %s162
    %p169 = scmp.eq.s32.totalorder %s26, 1
    %p170 = por %p168, %p169
    %p171 = scmp.ne.s32.totalorder %s162, %s163
    %p172 = scmp.eq.s32.totalorder %s26, 0
    %p173 = por %p171, %p172
    %p174 = scmp.ne.s32.totalorder %s162, %s163
    %p175 = scmp.eq.s32.totalorder %s27, 1
    %p176 = por %p174, %p175
    %p178 = scmp.ne.s32.totalorder %s163, %s177
    %p179 = scmp.eq.s32.totalorder %s27, 0
    %p180 = por %p178, %p179
    %s182 = sadd.s32 %s181, 1
    %p185 = scmp.eq.s32.totalorder %s21, 1
    %p186 = scmp.ne.s32.totalorder %s181, %s183
    %p187 = scmp.eq.s32.totalorder %s21, 0
    %p188 = por %p186, %p187
    %p189 = scmp.ne.s32.totalorder %s181, %s183
    %p190 = scmp.eq.s32.totalorder %s26, 1
    %p191 = por %p189, %p190
    %p192 = scmp.ne.s32.totalorder %s183, %s184
    %p193 = scmp.eq.s32.totalorder %s26, 0
    %p194 = por %p192, %p193
    %p195 = scmp.ne.s32.totalorder %s183, %s184
    %p196 = scmp.eq.s32.totalorder %s27, 1
    %p197 = por %p195, %p196
    %p199 = scmp.ne.s32.totalorder %s184, %s198
    %p200 = scmp.eq.s32.totalorder %s27, 0
    %p201 = por %p199, %p200
    %s203 = sadd.s32 %s202, 1
    %p206 = scmp.eq.s32.totalorder %s21, 1
    %p207 = scmp.ne.s32.totalorder %s202, %s204
    %p208 = scmp.eq.s32.totalorder %s21, 0
    %p209 = por %p207, %p208
    %p210 = scmp.ne.s32.totalorder %s202, %s204
    %p211 = scmp.eq.s32.totalorder %s26, 1
    %p212 = por %p210, %p211
    %p213 = scmp.ne.s32.totalorder %s204, %s205
    %p214 = scmp.eq.s32.totalorder %s26, 0
    %p215 = por %p213, %p214
    %p216 = scmp.ne.s32.totalorder %s204, %s205
    %p217 = scmp.eq.s32.totalorder %s27, 1
    %p218 = por %p216, %p217
    %p220 = scmp.ne.s32.totalorder %s205, %s219
    %p221 = scmp.eq.s32.totalorder %s27, 0
    %p222 = por %p220, %p221
    %s224 = sadd.s32 %s223, 1
    %p227 = scmp.eq.s32.totalorder %s21, 1
    %p228 = scmp.ne.s32.totalorder %s223, %s225
    %p229 = scmp.eq.s32.totalorder %s21, 0
    %p230 = por %p228, %p229
    %p231 = scmp.ne.s32.totalorder %s223, %s225
    %p232 = scmp.eq.s32.totalorder %s26, 1
    %p233 = por %p231, %p232
    %p234 = scmp.ne.s32.totalorder %s225, %s226
    %p235 = scmp.eq.s32.totalorder %s26, 0
    %p236 = por %p234, %p235
    %p237 = scmp.ne.s32.totalorder %s225, %s226
    %p238 = scmp.eq.s32.totalorder %s27, 1
    %p239 = por %p237, %p238
    %p241 = scmp.ne.s32.totalorder %s226, %s240
    %p242 = scmp.eq.s32.totalorder %s27, 0
    %p243 = por %p241, %p242
    %s245 = sadd.s32 %s244, 1
    %p248 = scmp.eq.s32.totalorder %s21, 1
    %p249 = scmp.ne.s32.totalorder %s244, %s246
    %p250 = scmp.eq.s32.totalorder %s21, 0
    %p251 = por %p249, %p250
    %p252 = scmp.ne.s32.totalorder %s244, %s246
    %p253 = scmp.eq.s32.totalorder %s26, 1
    %p254 = por %p252, %p253
    %p255 = scmp.ne.s32.totalorder %s246, %s247
    %p256 = scmp.eq.s32.totalorder %s26, 0
    %p257 = por %p255, %p256
    %p258 = scmp.ne.s32.totalorder %s246, %s247
    %p259 = scmp.eq.s32.totalorder %s27, 1
    %p260 = por %p258, %p259
    %p262 = scmp.ne.s32.totalorder %s247, %s261
    %p263 = scmp.eq.s32.totalorder %s27, 0
    %p264 = por %p262, %p263
    %s266 = sadd.s32 %s265, 1
    %p269 = scmp.eq.s32.totalorder %s21, 1
    %p270 = scmp.ne.s32.totalorder %s265, %s267
    %p271 = scmp.eq.s32.totalorder %s21, 0
    %p272 = por %p270, %p271
    %p273 = scmp.ne.s32.totalorder %s265, %s267
    %p274 = scmp.eq.s32.totalorder %s26, 1
    %p275 = por %p273, %p274
    %p276 = scmp.ne.s32.totalorder %s267, %s268
    %p277 = scmp.eq.s32.totalorder %s26, 0
    %p278 = por %p276, %p277
    %p279 = scmp.ne.s32.totalorder %s267, %s268
    %p280 = scmp.eq.s32.totalorder %s27, 1
    %p281 = por %p279, %p280
    %p283 = scmp.ne.s32.totalorder %s268, %s282
    %p284 = scmp.eq.s32.totalorder %s27, 0
    %p285 = por %p283, %p284
    %s287 = sadd.s32 %s286, 1
    %p290 = scmp.eq.s32.totalorder %s21, 1
    %p291 = scmp.ne.s32.totalorder %s286, %s288
    %p292 = scmp.eq.s32.totalorder %s21, 0
    %p293 = por %p291, %p292
    %p294 = scmp.ne.s32.totalorder %s286, %s288
    %p295 = scmp.eq.s32.totalorder %s26, 1
    %p296 = por %p294, %p295
    %p297 = scmp.ne.s32.totalorder %s288, %s289
    %p298 = scmp.eq.s32.totalorder %s26, 0
    %p299 = por %p297, %p298
    %p300 = scmp.ne.s32.totalorder %s288, %s289
    %p301 = scmp.eq.s32.totalorder %s27, 1
    %p302 = por %p300, %p301
    %p304 = scmp.ne.s32.totalorder %s289, %s303
    %p305 = scmp.eq.s32.totalorder %s27, 0
    %p306 = por %p304, %p305
    %s307 = ssub.s32 %s21, %s28
    %p308 = scmp.eq.s32.totalorder %s307, 0
    %s310 = sadd.s32 %s309, 1
    %s311 = scalar_select %p308, %s309, %s310
    %p314 = pneg %p308
    %p315 = scmp.eq.s32.totalorder %s21, 1
    %p316 = por %p314, %p315
    %p317 = scmp.ne.s32.totalorder %s309, %s312
    %p318 = scmp.eq.s32.totalorder %s21, 0
    %p319 = por %p317, %p318
    %p320 = scmp.ne.s32.totalorder %s309, %s312
    %p321 = scmp.eq.s32.totalorder %s26, 1
    %p322 = por %p320, %p321
    %p323 = scmp.ne.s32.totalorder %s312, %s313
    %p324 = scmp.eq.s32.totalorder %s26, 0
    %p325 = por %p323, %p324
    %p326 = scmp.ne.s32.totalorder %s312, %s313
    %p327 = scmp.eq.s32.totalorder %s27, 1
    %p328 = por %p326, %p327
    %p330 = scmp.ne.s32.totalorder %s313, %s329
    %p331 = scmp.eq.s32.totalorder %s27, 0
    %p332 = por %p330, %p331
    %p333 = scmp.le.s32.totalorder 1, %s21
    %p334 = scmp.lt.s32.totalorder %s21, 3
    %p335 = pnand %p333, %p334
    %p336 = pneg %p335
    // Predicated region
    $region9: #{critic_forward.1} parent=5 // pred_check
      _
    $region10: #{critic_forward.1} parent=5 // pred_check_branch
      %338 = sbr.rel (%p335) target = $region12
    $region11: #{critic_forward.1} parent=5 // pred_region
      %s339 = ssub.s32 %s21, 1
      // Predicated region
      $region13: #{critic_forward.1} parent=11 // pred_check
        %p340 = pneg %p68
      $region14: #{critic_forward.1} parent=11 // pred_check_branch
        %342 = sbr.rel (%p340) target = $region16
      $region15: #{critic_forward.1} parent=11 // pred_region
        _
      $region16: #{critic_forward.1} parent=11 // pred_fallthru
        _
      // Predicated region
      $region17: #{critic_forward.1} parent=11 // pred_check
        %p343 = pneg %p89
      $region18: #{critic_forward.1} parent=11 // pred_check_branch
        %345 = sbr.rel (%p343) target = $region20
      $region19: #{critic_forward.1} parent=11 // pred_region
        _
      $region20: #{critic_forward.1} parent=11 // pred_fallthru
        _
      // Predicated region
      $region21: #{critic_forward.1} parent=11 // pred_check
        %p346 = pneg %p110
      $region22: #{critic_forward.1} parent=11 // pred_check_branch
        %348 = sbr.rel (%p346) target = $region24
      $region23: #{critic_forward.1} parent=11 // pred_region
        _
      $region24: #{critic_forward.1} parent=11 // pred_fallthru
        _
      // Predicated region
      $region25: #{critic_forward.1} parent=11 // pred_check
        %p349 = pneg %p131
      $region26: #{critic_forward.1} parent=11 // pred_check_branch
        %351 = sbr.rel (%p349) target = $region28
      $region27: #{critic_forward.1} parent=11 // pred_region
        _
      $region28: #{critic_forward.1} parent=11 // pred_fallthru
        _
      // Predicated region
      $region29: #{critic_forward.1} parent=11 // pred_check
        %p352 = pneg %p152
      $region30: #{critic_forward.1} parent=11 // pred_check_branch
        %354 = sbr.rel (%p352) target = $region32
      $region31: #{critic_forward.1} parent=11 // pred_region
        _
      $region32: #{critic_forward.1} parent=11 // pred_fallthru
        _
      // Predicated region
      $region33: #{critic_forward.1} parent=11 // pred_check
        %p355 = pneg %p173
      $region34: #{critic_forward.1} parent=11 // pred_check_branch
        %357 = sbr.rel (%p355) target = $region36
      $region35: #{critic_forward.1} parent=11 // pred_region
        _
      $region36: #{critic_forward.1} parent=11 // pred_fallthru
        _
      // Predicated region
      $region37: #{critic_forward.1} parent=11 // pred_check
        %p358 = pneg %p194
      $region38: #{critic_forward.1} parent=11 // pred_check_branch
        %360 = sbr.rel (%p358) target = $region40
      $region39: #{critic_forward.1} parent=11 // pred_region
        _
      $region40: #{critic_forward.1} parent=11 // pred_fallthru
        _
      // Predicated region
      $region41: #{critic_forward.1} parent=11 // pred_check
        %p361 = pneg %p215
      $region42: #{critic_forward.1} parent=11 // pred_check_branch
        %363 = sbr.rel (%p361) target = $region44
      $region43: #{critic_forward.1} parent=11 // pred_region
        _
      $region44: #{critic_forward.1} parent=11 // pred_fallthru
        _
      // Predicated region
      $region45: #{critic_forward.1} parent=11 // pred_check
        %p364 = pneg %p236
      $region46: #{critic_forward.1} parent=11 // pred_check_branch
        %366 = sbr.rel (%p364) target = $region48
      $region47: #{critic_forward.1} parent=11 // pred_region
        _
      $region48: #{critic_forward.1} parent=11 // pred_fallthru
        _
      // Predicated region
      $region49: #{critic_forward.1} parent=11 // pred_check
        %p367 = pneg %p257
      $region50: #{critic_forward.1} parent=11 // pred_check_branch
        %369 = sbr.rel (%p367) target = $region52
      $region51: #{critic_forward.1} parent=11 // pred_region
        _
      $region52: #{critic_forward.1} parent=11 // pred_fallthru
        _
      // Predicated region
      $region53: #{critic_forward.1} parent=11 // pred_check
        %p370 = pneg %p278
      $region54: #{critic_forward.1} parent=11 // pred_check_branch
        %372 = sbr.rel (%p370) target = $region56
      $region55: #{critic_forward.1} parent=11 // pred_region
        _
      $region56: #{critic_forward.1} parent=11 // pred_fallthru
        _
      // Predicated region
      $region57: #{critic_forward.1} parent=11 // pred_check
        %p373 = pneg %p299
      $region58: #{critic_forward.1} parent=11 // pred_check_branch
        %375 = sbr.rel (%p373) target = $region60
      $region59: #{critic_forward.1} parent=11 // pred_region
        _
      $region60: #{critic_forward.1} parent=11 // pred_fallthru
        _
    $region12: #{critic_forward.1} parent=5 // pred_fallthru
      _
    %p376 = scmp.lt.s32.totalorder %s21, 2
    // Predicated region
    $region61: #{critic_forward.1} parent=5 // pred_check
      %p377 = pneg %p376
    $region62: #{critic_forward.1} parent=5 // pred_check_branch
      %379 = sbr.rel (%p377) target = $region64
    $region63: #{critic_forward.1} parent=5 // pred_region
      // Predicated region
      $region65: #{critic_forward.1} parent=63 // pred_check
        %p380 = pneg %p41
      $region66: #{critic_forward.1} parent=63 // pred_check_branch
        %382 = sbr.rel (%p380) target = $region68
      $region67: #{critic_forward.1} parent=63 // pred_region
        %p383 = scmp.lt.s32.totalorder %s21, 1
        %s384 = scalar_select %p383, %s21, 1
        %s385 = smul.addr %s384, 48
        %s386 = smul.addr %s385, 4
        %s387 = scalar_lea.vmem %s0, %s386
      $region68: #{critic_forward.1} parent=63 // pred_fallthru
        _
    $region64: #{critic_forward.1} parent=5 // pred_fallthru
      _
    %p388 = scmp.le.s32.totalorder 1, %s21
    %p389 = scmp.lt.s32.totalorder %s21, 3
    %p390 = pnand %p388, %p389
    %p391 = pneg %p390
    // Predicated region
    $region69: #{critic_forward.1} parent=5 // pred_check
      _
    $region70: #{critic_forward.1} parent=5 // pred_check_branch
      %393 = sbr.rel (%p390) target = $region72
    $region71: #{critic_forward.1} parent=5 // pred_region
      %s394 = ssub.s32 %s21, 1
      %p395 = scmp.lt.s32.totalorder %s26, 1
      %s396 = scalar_select %p395, %s26, 1
      %s397 = smul.addr %s396, 48
      %s398 = smul.addr %s397, 4
      %s399 = scalar_lea.vmem %s0, %s398
      %p400 = pneg %p47
      %p401 = pneg %p44
      %p402 = pneg %p68
      %p403 = pneg %p65
      %p404 = pneg %p89
      %p405 = pneg %p86
      %p406 = pneg %p110
      %p407 = pneg %p107
      %p408 = pneg %p131
      %p409 = pneg %p128
      %p410 = pneg %p152
      %p411 = pneg %p149
      %p412 = pneg %p173
      %p413 = pneg %p170
      %p414 = pneg %p194
      %p415 = pneg %p191
      %p416 = pneg %p215
      %p417 = pneg %p212
      %p418 = pneg %p236
      %p419 = pneg %p233
      %p420 = pneg %p257
      %p421 = pneg %p254
      %p422 = pneg %p278
      %p423 = pneg %p275
      %p424 = pneg %p299
      %p425 = pneg %p296
      %p426 = pneg %p325
      %p427 = pneg %p322
      %p428 = scmp.lt.s32.totalorder %s26, 1
      %s429 = scalar_select %p428, %s26, 1
      %s430 = scalar_lea.vmem %s13, %s429
      %p431 = scmp.lt.s32.totalorder %s26, 1
      %s432 = scalar_select %p431, %s26, 1
      %s433 = smul.addr %s432, 48
      %s434 = smul.addr %s433, 4
      %s435 = scalar_lea.vmem %s0, %s434
      %p436 = scmp.lt.s32.totalorder %s26, 1
      %s437 = scalar_select %p436, %s26, 1
      %s438 = scalar_lea.vmem %s13, %s437
      %v440 = vld [vmem:[%s435] sm:$0xff]
      %v441 = vld [vmem:[%s435 + $0x8] sm:$0xff]
      %v442 = vld [vmem:[%s435 + $0x10] sm:$0xff]
      %v443 = vld [vmem:[%s435 + $0x18] sm:$0xff]
      %v444 = vld [vmem:[%s435 + $0x20] sm:$0xff]
      %v445 = vld [vmem:[%s435 + $0x28] sm:$0xff]
      %v446 = vld [vmem:[%s435 + $0x30] sm:$0xff]
      %v447 = vld [vmem:[%s435 + $0x38] sm:$0xff]
      %v448 = vld [vmem:[%s435 + $0x40] sm:$0xff]
      %v449 = vld [vmem:[%s435 + $0x48] sm:$0xff]
      %v450 = vld [vmem:[%s435 + $0x50] sm:$0xff]
      %v451 = vld [vmem:[%s435 + $0x58] sm:$0xff]
      %v452 = vld [vmem:[%s435 + $0x60] sm:$0xff]
      %v453 = vld [vmem:[%s435 + $0x68] sm:$0xff]
      %v454 = vld [vmem:[%s435 + $0x70] sm:$0xff]
      %v455 = vld [vmem:[%s435 + $0x78] sm:$0xff]
      %v456 = vld [vmem:[%s435 + $0x80] sm:$0xff]
      %v457 = vld [vmem:[%s435 + $0x88] sm:$0xff]
      %v458 = vld [vmem:[%s435 + $0x90] sm:$0xff]
      %v459 = vld [vmem:[%s435 + $0x98] sm:$0xff]
      %v460 = vld [vmem:[%s435 + $0xa0] sm:$0xff]
      %v461 = vld [vmem:[%s435 + $0xa8] sm:$0xff]
      %v462 = vld [vmem:[%s435 + $0xb0] sm:$0xff]
      %v463 = vld [vmem:[%s435 + $0xb8] sm:$0xff]
      %v464 = vld [vmem:[%s1] sm:$0xf]
      %v465 = vld [vmem:[%s1 + $0x4] sm:$0xf]
      %v466 = vld [vmem:[%s1 + $0x8] sm:$0xf]
      %v467 = vld [vmem:[%s1 + $0xc] sm:$0xf]
      %v468 = vld [vmem:[%s1 + $0x10] sm:$0xf]
      %v469 = vld [vmem:[%s1 + $0x14] sm:$0xf]
      %v470 = vld [vmem:[%s1 + $0x18] sm:$0xf]
      %v471 = vld [vmem:[%s1 + $0x1c] sm:$0xf]
      %v472 = vld [vmem:[%s1 + $0x20] sm:$0xf]
      %v473 = vld [vmem:[%s1 + $0x24] sm:$0xf]
      %v474 = vld [vmem:[%s1 + $0x28] sm:$0xf]
      %v475 = vld [vmem:[%s1 + $0x2c] sm:$0xf]
      %v476 = vld [vmem:[%s1 + $0x30] sm:$0xf]
      %v477 = vld [vmem:[%s1 + $0x34] sm:$0xf]
      %v478 = vld [vmem:[%s1 + $0x38] sm:$0xf]
      %v479 = vld [vmem:[%s1 + $0x3c] sm:$0xf]
      %v480 = vld [vmem:[%s1 + $0x40] sm:$0xf]
      %v481 = vld [vmem:[%s1 + $0x44] sm:$0xf]
      %v482 = vld [vmem:[%s1 + $0x48] sm:$0xf]
      %v483 = vld [vmem:[%s1 + $0x4c] sm:$0xf]
      %v484 = vld [vmem:[%s1 + $0x50] sm:$0xf]
      %v485 = vld [vmem:[%s1 + $0x54] sm:$0xf]
      %v486 = vld [vmem:[%s1 + $0x58] sm:$0xf]
      %v487 = vld [vmem:[%s1 + $0x5c] sm:$0xf]
      %v488 = vld [vmem:[%s1 + $0x60] sm:$0xf]
      %v489 = vld [vmem:[%s1 + $0x64] sm:$0xf]
      %v490 = vld [vmem:[%s1 + $0x68] sm:$0xf]
      %v491 = vld [vmem:[%s1 + $0x6c] sm:$0xf]
      %v492 = vld [vmem:[%s1 + $0x70] sm:$0xf]
      %v493 = vld [vmem:[%s1 + $0x74] sm:$0xf]
      %v494 = vld [vmem:[%s1 + $0x78] sm:$0xf]
      %v495 = vld [vmem:[%s1 + $0x7c] sm:$0xf]
      %v496 = vld [vmem:[%s1 + $0x80] sm:$0xf]
      %v497 = vld [vmem:[%s1 + $0x84] sm:$0xf]
      %v498 = vld [vmem:[%s1 + $0x88] sm:$0xf]
      %v499 = vld [vmem:[%s1 + $0x8c] sm:$0xf]
      %v500 = vld [vmem:[%s1 + $0x90] sm:$0xf]
      %v501 = vld [vmem:[%s1 + $0x94] sm:$0xf]
      %v502 = vld [vmem:[%s1 + $0x98] sm:$0xf]
      %v503 = vld [vmem:[%s1 + $0x9c] sm:$0xf]
      %v504 = vld [vmem:[%s1 + $0xa0] sm:$0xf]
      %v505 = vld [vmem:[%s1 + $0xa4] sm:$0xf]
      %v506 = vld [vmem:[%s1 + $0xa8] sm:$0xf]
      %v507 = vld [vmem:[%s1 + $0xac] sm:$0xf]
      %v508 = vld [vmem:[%s1 + $0xb0] sm:$0xf]
      %v509 = vld [vmem:[%s1 + $0xb4] sm:$0xf]
      %v510 = vld [vmem:[%s1 + $0xb8] sm:$0xf]
      %v511 = vld [vmem:[%s1 + $0xbc] sm:$0xf]
      %v512 = vld [vmem:[%s1 + $0xc0] sm:$0xf]
      %v513 = vld [vmem:[%s1 + $0xc4] sm:$0xf]
      %v514 = vld [vmem:[%s1 + $0xc8] sm:$0xf]
      %v515 = vld [vmem:[%s1 + $0xcc] sm:$0xf]
      %v516 = vld [vmem:[%s1 + $0xd0] sm:$0xf]
      %v517 = vld [vmem:[%s1 + $0xd4] sm:$0xf]
      %v518 = vld [vmem:[%s1 + $0xd8] sm:$0xf]
      %v519 = vld [vmem:[%s1 + $0xdc] sm:$0xf]
      %v520 = vld [vmem:[%s1 + $0xe0] sm:$0xf]
      %v521 = vld [vmem:[%s1 + $0xe4] sm:$0xf]
      %v522 = vld [vmem:[%s1 + $0xe8] sm:$0xf]
      %v523 = vld [vmem:[%s1 + $0xec] sm:$0xf]
      %v524 = vld [vmem:[%s1 + $0xf0] sm:$0xf]
      %v525 = vld [vmem:[%s1 + $0xf4] sm:$0xf]
      %v526 = vld [vmem:[%s1 + $0xf8] sm:$0xf]
      %v527 = vld [vmem:[%s1 + $0xfc] sm:$0xf]
      %v528 = vld [vmem:[%s1 + $0x100] sm:$0xf]
      %v529 = vld [vmem:[%s1 + $0x104] sm:$0xf]
      %v530 = vld [vmem:[%s1 + $0x108] sm:$0xf]
      %v531 = vld [vmem:[%s1 + $0x10c] sm:$0xf]
      %v532 = vld [vmem:[%s1 + $0x110] sm:$0xf]
      %v533 = vld [vmem:[%s1 + $0x114] sm:$0xf]
      %v534 = vld [vmem:[%s1 + $0x118] sm:$0xf]
      %v535 = vld [vmem:[%s1 + $0x11c] sm:$0xf]
      %v536 = vld [vmem:[%s1 + $0x120] sm:$0xf]
      %v537 = vld [vmem:[%s1 + $0x124] sm:$0xf]
      %v538 = vld [vmem:[%s1 + $0x128] sm:$0xf]
      %v539 = vld [vmem:[%s1 + $0x12c] sm:$0xf]
      %v540 = vld [vmem:[%s1 + $0x130] sm:$0xf]
      %v541 = vld [vmem:[%s1 + $0x134] sm:$0xf]
      %v542 = vld [vmem:[%s1 + $0x138] sm:$0xf]
      %v543 = vld [vmem:[%s1 + $0x13c] sm:$0xf]
      %v544 = vld [vmem:[%s1 + $0x140] sm:$0xf]
      %v545 = vld [vmem:[%s1 + $0x144] sm:$0xf]
      %v546 = vld [vmem:[%s1 + $0x148] sm:$0xf]
      %v547 = vld [vmem:[%s1 + $0x14c] sm:$0xf]
      %v548 = vld [vmem:[%s1 + $0x150] sm:$0xf]
      %v549 = vld [vmem:[%s1 + $0x154] sm:$0xf]
      %v550 = vld [vmem:[%s1 + $0x158] sm:$0xf]
      %v551 = vld [vmem:[%s1 + $0x15c] sm:$0xf]
      %v552 = vld [vmem:[%s1 + $0x160] sm:$0xf]
      %v553 = vld [vmem:[%s1 + $0x164] sm:$0xf]
      %v554 = vld [vmem:[%s1 + $0x168] sm:$0xf]
      %v555 = vld [vmem:[%s1 + $0x16c] sm:$0xf]
      %v556 = vld [vmem:[%s1 + $0x170] sm:$0xf]
      %v557 = vld [vmem:[%s1 + $0x174] sm:$0xf]
      %v558 = vld [vmem:[%s1 + $0x178] sm:$0xf]
      %v559 = vld [vmem:[%s1 + $0x17c] sm:$0xf]
      %v560 = vld [vmem:[%s2] sm:$0x1]
      %v562 = vlaneseq
      %v563 = vshrl.u32 %v562, 7
      %v564 = vsub.s32 0, %v563
      %v565 = vrot.slane %v560, %v564
      %v591 = vunpack.c.l.b16 %v440
      %v592 = vunpack.c.h.b16 %v440
      %v593 = vunpack.c.l.b16 %v441
      %v594 = vunpack.c.h.b16 %v441
      %v595 = vunpack.c.l.b16 %v442
      %v596 = vunpack.c.h.b16 %v442
      %v597 = vunpack.c.l.b16 %v443
      %v598 = vunpack.c.h.b16 %v443
      %v599 = vunpack.c.l.b16 %v444
      %v600 = vunpack.c.h.b16 %v444
      %v601 = vunpack.c.l.b16 %v445
      %v602 = vunpack.c.h.b16 %v445
      %v603 = vunpack.c.l.b16 %v446
      %v604 = vunpack.c.h.b16 %v446
      %v605 = vunpack.c.l.b16 %v447
      %v606 = vunpack.c.h.b16 %v447
      %v607 = vunpack.c.l.b16 %v448
      %v608 = vunpack.c.h.b16 %v448
      %v609 = vunpack.c.l.b16 %v449
      %v610 = vunpack.c.h.b16 %v449
      %v611 = vunpack.c.l.b16 %v450
      %v612 = vunpack.c.h.b16 %v450
      %v613 = vunpack.c.l.b16 %v451
      %v614 = vunpack.c.h.b16 %v451
      %v615 = vunpack.c.l.b16 %v452
      %v616 = vunpack.c.h.b16 %v452
      %v617 = vunpack.c.l.b16 %v453
      %v618 = vunpack.c.h.b16 %v453
      %v619 = vunpack.c.l.b16 %v454
      %v620 = vunpack.c.h.b16 %v454
      %v621 = vunpack.c.l.b16 %v455
      %v622 = vunpack.c.h.b16 %v455
      %v623 = vunpack.c.l.b16 %v456
      %v624 = vunpack.c.h.b16 %v456
      %v625 = vunpack.c.l.b16 %v457
      %v626 = vunpack.c.h.b16 %v457
      %v627 = vunpack.c.l.b16 %v458
      %v628 = vunpack.c.h.b16 %v458
      %v629 = vunpack.c.l.b16 %v459
      %v630 = vunpack.c.h.b16 %v459
      %v631 = vunpack.c.l.b16 %v460
      %v632 = vunpack.c.h.b16 %v460
      %v633 = vunpack.c.l.b16 %v461
      %v634 = vunpack.c.h.b16 %v461
      %v635 = vunpack.c.l.b16 %v462
      %v636 = vunpack.c.h.b16 %v462
      %v637 = vunpack.c.l.b16 %v463
      %v638 = vunpack.c.h.b16 %v463
      %v639 = vpack.c.b16 %v597, %v591
      %v640 = vpack.c.b16 %v598, %v592
      %v641 = vpack.c.b16 %v599, %v593
      %v642 = vpack.c.b16 %v600, %v594
      %v643 = vpack.c.b16 %v601, %v595
      %v644 = vpack.c.b16 %v602, %v596
      %v645 = vpack.c.b16 %v609, %v603
      %v646 = vpack.c.b16 %v610, %v604
      %v647 = vpack.c.b16 %v611, %v605
      %v648 = vpack.c.b16 %v612, %v606
      %v649 = vpack.c.b16 %v613, %v607
      %v650 = vpack.c.b16 %v614, %v608
      %v651 = vpack.c.b16 %v621, %v615
      %v652 = vpack.c.b16 %v622, %v616
      %v653 = vpack.c.b16 %v623, %v617
      %v654 = vpack.c.b16 %v624, %v618
      %v655 = vpack.c.b16 %v625, %v619
      %v656 = vpack.c.b16 %v626, %v620
      %v657 = vpack.c.b16 %v633, %v627
      %v658 = vpack.c.b16 %v634, %v628
      %v659 = vpack.c.b16 %v635, %v629
      %v660 = vpack.c.b16 %v636, %v630
      %v661 = vpack.c.b16 %v637, %v631
      %v662 = vpack.c.b16 %v638, %v632
      %v783 = vunpack.c.l.b16 %v464
      %v784 = vunpack.c.l.b16 %v465
      %v785 = vunpack.c.l.b16 %v466
      %v786 = vunpack.c.l.b16 %v467
      %v787 = vunpack.c.l.b16 %v468
      %v788 = vunpack.c.l.b16 %v469
      %v789 = vunpack.c.l.b16 %v470
      %v790 = vunpack.c.l.b16 %v471
      %v791 = vunpack.c.l.b16 %v472
      %v792 = vunpack.c.l.b16 %v473
      %v793 = vunpack.c.l.b16 %v474
      %v794 = vunpack.c.l.b16 %v475
      %v795 = vunpack.c.l.b16 %v476
      %v796 = vunpack.c.l.b16 %v477
      %v797 = vunpack.c.l.b16 %v478
      %v798 = vunpack.c.l.b16 %v479
      %v799 = vunpack.c.l.b16 %v480
      %v800 = vunpack.c.l.b16 %v481
      %v801 = vunpack.c.l.b16 %v482
      %v802 = vunpack.c.l.b16 %v483
      %v803 = vunpack.c.l.b16 %v484
      %v804 = vunpack.c.l.b16 %v485
      %v805 = vunpack.c.l.b16 %v486
      %v806 = vunpack.c.l.b16 %v487
      %v807 = vunpack.c.l.b16 %v488
      %v808 = vunpack.c.l.b16 %v489
      %v809 = vunpack.c.l.b16 %v490
      %v810 = vunpack.c.l.b16 %v491
      %v811 = vunpack.c.l.b16 %v492
      %v812 = vunpack.c.l.b16 %v493
      %v813 = vunpack.c.l.b16 %v494
      %v814 = vunpack.c.l.b16 %v495
      %v815 = vunpack.c.l.b16 %v496
      %v816 = vunpack.c.l.b16 %v497
      %v817 = vunpack.c.l.b16 %v498
      %v818 = vunpack.c.l.b16 %v499
      %v819 = vunpack.c.l.b16 %v500
      %v820 = vunpack.c.l.b16 %v501
      %v821 = vunpack.c.l.b16 %v502
      %v822 = vunpack.c.l.b16 %v503
      %v823 = vunpack.c.l.b16 %v504
      %v824 = vunpack.c.l.b16 %v505
      %v825 = vunpack.c.l.b16 %v506
      %v826 = vunpack.c.l.b16 %v507
      %v827 = vunpack.c.l.b16 %v508
      %v828 = vunpack.c.l.b16 %v509
      %v829 = vunpack.c.l.b16 %v510
      %v830 = vunpack.c.l.b16 %v511
      %v831 = vunpack.c.l.b16 %v512
      %v832 = vunpack.c.l.b16 %v513
      %v833 = vunpack.c.l.b16 %v514
      %v834 = vunpack.c.l.b16 %v515
      %v835 = vunpack.c.l.b16 %v516
      %v836 = vunpack.c.l.b16 %v517
      %v837 = vunpack.c.l.b16 %v518
      %v838 = vunpack.c.l.b16 %v519
      %v839 = vunpack.c.l.b16 %v520
      %v840 = vunpack.c.l.b16 %v521
      %v841 = vunpack.c.l.b16 %v522
      %v842 = vunpack.c.l.b16 %v523
      %v843 = vunpack.c.l.b16 %v524
      %v844 = vunpack.c.l.b16 %v525
      %v845 = vunpack.c.l.b16 %v526
      %v846 = vunpack.c.l.b16 %v527
      %v847 = vunpack.c.l.b16 %v528
      %v848 = vunpack.c.l.b16 %v529
      %v849 = vunpack.c.l.b16 %v530
      %v850 = vunpack.c.l.b16 %v531
      %v851 = vunpack.c.l.b16 %v532
      %v852 = vunpack.c.l.b16 %v533
      %v853 = vunpack.c.l.b16 %v534
      %v854 = vunpack.c.l.b16 %v535
      %v855 = vunpack.c.l.b16 %v536
      %v856 = vunpack.c.l.b16 %v537
      %v857 = vunpack.c.l.b16 %v538
      %v858 = vunpack.c.l.b16 %v539
      %v859 = vunpack.c.l.b16 %v540
      %v860 = vunpack.c.l.b16 %v541
      %v861 = vunpack.c.l.b16 %v542
      %v862 = vunpack.c.l.b16 %v543
      %v863 = vunpack.c.l.b16 %v544
      %v864 = vunpack.c.l.b16 %v545
      %v865 = vunpack.c.l.b16 %v546
      %v866 = vunpack.c.l.b16 %v547
      %v867 = vunpack.c.l.b16 %v548
      %v868 = vunpack.c.l.b16 %v549
      %v869 = vunpack.c.l.b16 %v550
      %v870 = vunpack.c.l.b16 %v551
      %v871 = vunpack.c.l.b16 %v552
      %v872 = vunpack.c.l.b16 %v553
      %v873 = vunpack.c.l.b16 %v554
      %v874 = vunpack.c.l.b16 %v555
      %v875 = vunpack.c.l.b16 %v556
      %v876 = vunpack.c.l.b16 %v557
      %v877 = vunpack.c.l.b16 %v558
      %v878 = vunpack.c.l.b16 %v559
      %v879 = vpack.c.b16 %v784, %v783
      %v880 = vpack.c.b16 %v786, %v785
      %v881 = vpack.c.b16 %v788, %v787
      %v882 = vpack.c.b16 %v790, %v789
      %v883 = vpack.c.b16 %v792, %v791
      %v884 = vpack.c.b16 %v794, %v793
      %v885 = vpack.c.b16 %v796, %v795
      %v886 = vpack.c.b16 %v798, %v797
      %v887 = vpack.c.b16 %v800, %v799
      %v888 = vpack.c.b16 %v802, %v801
      %v889 = vpack.c.b16 %v804, %v803
      %v890 = vpack.c.b16 %v806, %v805
      %v891 = vpack.c.b16 %v808, %v807
      %v892 = vpack.c.b16 %v810, %v809
      %v893 = vpack.c.b16 %v812, %v811
      %v894 = vpack.c.b16 %v814, %v813
      %v895 = vpack.c.b16 %v816, %v815
      %v896 = vpack.c.b16 %v818, %v817
      %v897 = vpack.c.b16 %v820, %v819
      %v898 = vpack.c.b16 %v822, %v821
      %v899 = vpack.c.b16 %v824, %v823
      %v900 = vpack.c.b16 %v826, %v825
      %v901 = vpack.c.b16 %v828, %v827
      %v902 = vpack.c.b16 %v830, %v829
      %v903 = vpack.c.b16 %v832, %v831
      %v904 = vpack.c.b16 %v834, %v833
      %v905 = vpack.c.b16 %v836, %v835
      %v906 = vpack.c.b16 %v838, %v837
      %v907 = vpack.c.b16 %v840, %v839
      %v908 = vpack.c.b16 %v842, %v841
      %v909 = vpack.c.b16 %v844, %v843
      %v910 = vpack.c.b16 %v846, %v845
      %v911 = vpack.c.b16 %v848, %v847
      %v912 = vpack.c.b16 %v850, %v849
      %v913 = vpack.c.b16 %v852, %v851
      %v914 = vpack.c.b16 %v854, %v853
      %v915 = vpack.c.b16 %v856, %v855
      %v916 = vpack.c.b16 %v858, %v857
      %v917 = vpack.c.b16 %v860, %v859
      %v918 = vpack.c.b16 %v862, %v861
      %v919 = vpack.c.b16 %v864, %v863
      %v920 = vpack.c.b16 %v866, %v865
      %v921 = vpack.c.b16 %v868, %v867
      %v922 = vpack.c.b16 %v870, %v869
      %v923 = vpack.c.b16 %v872, %v871
      %v924 = vpack.c.b16 %v874, %v873
      %v925 = vpack.c.b16 %v876, %v875
      %v926 = vpack.c.b16 %v878, %v877
      %975 = vmatprep.subr.bf16.mxu0 0
      %976 = vmatpush1.bf16.msra.mxu0 %v879
      %977 = vmatprep.subr.bf16.mxu0 0
      %978 = vmatpush1.bf16.msra.mxu0 %v880
      %979 = vmatprep.subr.bf16.mxu0 0
      %980 = vmatpush1.bf16.msra.mxu0 %v881
      %981 = vmatprep.subr.bf16.mxu0 0
      %982 = vmatpush1.bf16.msra.mxu0 %v882
      %983 = vmatprep.subr.bf16.mxu0 0
      %984 = vmatpush1.bf16.msra.mxu0 %v883
      %985 = vmatprep.subr.bf16.mxu0 0
      %986 = vmatpush1.bf16.msra.mxu0 %v884
      %987 = vmatprep.subr.bf16.mxu0 0
      %988 = vmatpush1.bf16.msra.mxu0 %v885
      %989 = vmatprep.subr.bf16.mxu0 0
      %990 = vmatpush1.bf16.msra.mxu0 %v886
      %991 = vmatprep.subr.bf16.mxu0 0
      %992 = vmatpush1.bf16.msra.mxu0 %v887
      %993 = vmatprep.subr.bf16.mxu0 0
      %994 = vmatpush1.bf16.msra.mxu0 %v888
      %995 = vmatprep.subr.bf16.mxu0 0
      %996 = vmatpush1.bf16.msra.mxu0 %v889
      %997 = vmatprep.subr.bf16.mxu0 0
      %998 = vmatpush1.bf16.msra.mxu0 %v890
      %999 = vmatprep.subr.bf16.mxu0 0
      %1000 = vmatpush1.bf16.msra.mxu0 %v891
      %1001 = vmatprep.subr.bf16.mxu0 0
      %1002 = vmatpush1.bf16.msra.mxu0 %v892
      %1003 = vmatprep.subr.bf16.mxu0 0
      %1004 = vmatpush1.bf16.msra.mxu0 %v893
      %1005 = vmatprep.subr.bf16.mxu0 0
      %1006 = vmatpush1.bf16.msra.mxu0 %v894
      %1007 = vmatprep.mubr.bf16.mxu0 %v640
      %1008 = vmatmul.mubr.bf16.gmra.mrb[0].mxu0 %v639
      %v1009 = vpop.f32.mrb[0].mxu0
      %v1010 = vadd.f32 %v565, %v1009
      %v1011 = vpop.f32.mrb[0].mxu0
      %v1012 = vpop.f32.mrb[0].mxu0
      %v1013 = vadd.f32 %v565, %v1012
      %v1014 = vpop.f32.mrb[0].mxu0
      %1015 = vmatprep.mubr.bf16.mxu0 %v646
      %1016 = vmatmul.mubr.bf16.gmra.mrb[0].mxu0 %v645
      %v1017 = vpop.f32.mrb[0].mxu0
      %v1018 = vadd.f32 %v565, %v1017
      %v1019 = vpop.f32.mrb[0].mxu0
      %v1020 = vpop.f32.mrb[0].mxu0
      %v1021 = vadd.f32 %v565, %v1020
      %v1022 = vpop.f32.mrb[0].mxu0
      %1023 = vmatprep.mubr.bf16.mxu0 %v652
      %1024 = vmatmul.mubr.bf16.gmra.mrb[0].mxu0 %v651
      %v1025 = vpop.f32.mrb[0].mxu0
      %v1026 = vadd.f32 %v565, %v1025
      %v1027 = vpop.f32.mrb[0].mxu0
      %v1028 = vpop.f32.mrb[0].mxu0
      %v1029 = vadd.f32 %v565, %v1028
      %v1030 = vpop.f32.mrb[0].mxu0
      %1031 = vmatprep.mubr.bf16.mxu0 %v658
      %1032 = vmatmul.mubr.bf16.gmra.mrb[0].mxu0 %v657
      %v1033 = vpop.f32.mrb[0].mxu0
      %v1034 = vadd.f32 %v565, %v1033
      %v1035 = vpop.f32.mrb[0].mxu0
      %v1036 = vpop.f32.mrb[0].mxu0
      %v1037 = vadd.f32 %v565, %v1036
      %v1038 = vpop.f32.mrb[0].mxu0
      %1039 = vdwg.mxu0
      %1040 = vmatprep.subr.bf16.mxu0 0
      %1041 = vmatpush1.bf16.msra.mxu0 %v895
      %1042 = vmatprep.subr.bf16.mxu0 0
      %1043 = vmatpush1.bf16.msra.mxu0 %v896
      %1044 = vmatprep.subr.bf16.mxu0 0
      %1045 = vmatpush1.bf16.msra.mxu0 %v897
      %1046 = vmatprep.subr.bf16.mxu0 0
      %1047 = vmatpush1.bf16.msra.mxu0 %v898
      %1048 = vmatprep.subr.bf16.mxu0 0
      %1049 = vmatpush1.bf16.msra.mxu0 %v899
      %1050 = vmatprep.subr.bf16.mxu0 0
      %1051 = vmatpush1.bf16.msra.mxu0 %v900
      %1052 = vmatprep.subr.bf16.mxu0 0
      %1053 = vmatpush1.bf16.msra.mxu0 %v901
      %1054 = vmatprep.subr.bf16.mxu0 0
      %1055 = vmatpush1.bf16.msra.mxu0 %v902
      %1056 = vmatprep.subr.bf16.mxu0 0
      %1057 = vmatpush1.bf16.msra.mxu0 %v903
      %1058 = vmatprep.subr.bf16.mxu0 0
      %1059 = vmatpush1.bf16.msra.mxu0 %v904
      %1060 = vmatprep.subr.bf16.mxu0 0
      %1061 = vmatpush1.bf16.msra.mxu0 %v905
      %1062 = vmatprep.subr.bf16.mxu0 0
      %1063 = vmatpush1.bf16.msra.mxu0 %v906
      %1064 = vmatprep.subr.bf16.mxu0 0
      %1065 = vmatpush1.bf16.msra.mxu0 %v907
      %1066 = vmatprep.subr.bf16.mxu0 0
      %1067 = vmatpush1.bf16.msra.mxu0 %v908
      %1068 = vmatprep.subr.bf16.mxu0 0
      %1069 = vmatpush1.bf16.msra.mxu0 %v909
      %1070 = vmatprep.subr.bf16.mxu0 0
      %1071 = vmatpush1.bf16.msra.mxu0 %v910
      %1072 = vmatprep.mubr.bf16.mxu0 %v642
      %1073 = vmatmul.mubr.bf16.gmra.mrb[0].mxu0 %v641
      %v1074 = vpop.f32.mrb[0].mxu0
      %v1075 = vadd.f32 %v1010, %v1074
      %v1076 = vpop.f32.mrb[0].mxu0
      %v1077 = vpop.f32.mrb[0].mxu0
      %v1078 = vadd.f32 %v1013, %v1077
      %v1079 = vpop.f32.mrb[0].mxu0
      %1080 = vmatprep.mubr.bf16.mxu0 %v648
      %1081 = vmatmul.mubr.bf16.gmra.mrb[0].mxu0 %v647
      %v1082 = vpop.f32.mrb[0].mxu0
      %v1083 = vadd.f32 %v1018, %v1082
      %v1084 = vpop.f32.mrb[0].mxu0
      %v1085 = vpop.f32.mrb[0].mxu0
      %v1086 = vadd.f32 %v1021, %v1085
      %v1087 = vpop.f32.mrb[0].mxu0
      %1088 = vmatprep.mubr.bf16.mxu0 %v654
      %1089 = vmatmul.mubr.bf16.gmra.mrb[0].mxu0 %v653
      %v1090 = vpop.f32.mrb[0].mxu0
      %v1091 = vadd.f32 %v1026, %v1090
      %v1092 = vpop.f32.mrb[0].mxu0
      %v1093 = vpop.f32.mrb[0].mxu0
      %v1094 = vadd.f32 %v1029, %v1093
      %v1095 = vpop.f32.mrb[0].mxu0
      %1096 = vmatprep.mubr.bf16.mxu0 %v660
      %1097 = vmatmul.mubr.bf16.gmra.mrb[0].mxu0 %v659
      %v1098 = vpop.f32.mrb[0].mxu0
      %v1099 = vadd.f32 %v1034, %v1098
      %v1100 = vpop.f32.mrb[0].mxu0
      %v1101 = vpop.f32.mrb[0].mxu0
      %v1102 = vadd.f32 %v1037, %v1101
      %v1103 = vpop.f32.mrb[0].mxu0
      %1104 = vdwg.mxu0
      %1105 = vmatprep.subr.bf16.mxu0 0
      %1106 = vmatpush1.bf16.msra.mxu0 %v911
      %1107 = vmatprep.subr.bf16.mxu0 0
      %1108 = vmatpush1.bf16.msra.mxu0 %v912
      %1109 = vmatprep.subr.bf16.mxu0 0
      %1110 = vmatpush1.bf16.msra.mxu0 %v913
      %1111 = vmatprep.subr.bf16.mxu0 0
      %1112 = vmatpush1.bf16.msra.mxu0 %v914
      %1113 = vmatprep.subr.bf16.mxu0 0
      %1114 = vmatpush1.bf16.msra.mxu0 %v915
      %1115 = vmatprep.subr.bf16.mxu0 0
      %1116 = vmatpush1.bf16.msra.mxu0 %v916
      %1117 = vmatprep.subr.bf16.mxu0 0
      %1118 = vmatpush1.bf16.msra.mxu0 %v917
      %1119 = vmatprep.subr.bf16.mxu0 0
      %1120 = vmatpush1.bf16.msra.mxu0 %v918
      %1121 = vmatprep.subr.bf16.mxu0 0
      %1122 = vmatpush1.bf16.msra.mxu0 %v919
      %1123 = vmatprep.subr.bf16.mxu0 0
      %1124 = vmatpush1.bf16.msra.mxu0 %v920
      %1125 = vmatprep.subr.bf16.mxu0 0
      %1126 = vmatpush1.bf16.msra.mxu0 %v921
      %1127 = vmatprep.subr.bf16.mxu0 0
      %1128 = vmatpush1.bf16.msra.mxu0 %v922
      %1129 = vmatprep.subr.bf16.mxu0 0
      %1130 = vmatpush1.bf16.msra.mxu0 %v923
      %1131 = vmatprep.subr.bf16.mxu0 0
      %1132 = vmatpush1.bf16.msra.mxu0 %v924
      %1133 = vmatprep.subr.bf16.mxu0 0
      %1134 = vmatpush1.bf16.msra.mxu0 %v925
      %1135 = vmatprep.subr.bf16.mxu0 0
      %1136 = vmatpush1.bf16.msra.mxu0 %v926
      %1137 = vmatprep.mubr.bf16.mxu0 %v644
      %1138 = vmatmul.mubr.bf16.gmra.mrb[0].mxu0 %v643
      %v1139 = vpop.f32.mrb[0].mxu0
      %v1140 = vadd.f32 %v1075, %v1139
      %v1141 = vpop.f32.mrb[0].mxu0
      %v1142 = vpop.f32.mrb[0].mxu0
      %v1143 = vadd.f32 %v1078, %v1142
      %v1144 = vpop.f32.mrb[0].mxu0
      %1145 = vmatprep.mubr.bf16.mxu0 %v650
      %1146 = vmatmul.mubr.bf16.gmra.mrb[0].mxu0 %v649
      %v1147 = vpop.f32.mrb[0].mxu0
      %v1148 = vadd.f32 %v1083, %v1147
      %v1149 = vpop.f32.mrb[0].mxu0
      %v1150 = vpop.f32.mrb[0].mxu0
      %v1151 = vadd.f32 %v1086, %v1150
      %v1152 = vpop.f32.mrb[0].mxu0
      %1153 = vmatprep.mubr.bf16.mxu0 %v656
      %1154 = vmatmul.mubr.bf16.gmra.mrb[0].mxu0 %v655
      %v1155 = vpop.f32.mrb[0].mxu0
      %v1156 = vadd.f32 %v1091, %v1155
      %v1157 = vpop.f32.mrb[0].mxu0
      %v1158 = vpop.f32.mrb[0].mxu0
      %v1159 = vadd.f32 %v1094, %v1158
      %v1160 = vpop.f32.mrb[0].mxu0
      %1161 = vmatprep.mubr.bf16.mxu0 %v662
      %1162 = vmatmul.mubr.bf16.gmra.mrb[0].mxu0 %v661
      %v1163 = vpop.f32.mrb[0].mxu0
      %v1164 = vadd.f32 %v1099, %v1163
      %v1165 = vpop.f32.mrb[0].mxu0
      %v1166 = vpop.f32.mrb[0].mxu0
      %v1167 = vadd.f32 %v1102, %v1166
      %v1168 = vpop.f32.mrb[0].mxu0
      %1169 = vdwg.mxu0
      %v1170 = vmax.f32 %v1140, 0.0
      %v1171 = vmax.f32 %v1143, 0.0
      %v1172 = vmax.f32 %v1148, 0.0
      %v1173 = vmax.f32 %v1151, 0.0
      %v1174 = vmax.f32 %v1156, 0.0
      %v1175 = vmax.f32 %v1159, 0.0
      %v1176 = vmax.f32 %v1164, 0.0
      %v1177 = vmax.f32 %v1167, 0.0
      %v1178 = vpack.c.bf16 %v1171, %v1170
      %v1179 = vpack.c.bf16 %v1173, %v1172
      %v1180 = vpack.c.bf16 %v1175, %v1174
      %v1181 = vpack.c.bf16 %v1177, %v1176
      %v1182 = vld [vmem:[%s3] sm:$0xf]
      %v1183 = vld [vmem:[%s3 + $0x4] sm:$0x1]
      %v1186 = vunpack.c.l.b16 %v1182
      %v1187 = vunpack.c.l.b16 %v1183
      %v1188 = vpack.c.b16 %v1187, %v1186
      %vm1189 = vcmask 523264
      %v1191 = vsel %vm1189, %v1188, 0
      %1193 = vmatprep.subr.bf16.mxu0 0
      %1194 = vmatpush1.bf16.msra.mxu0 %v1178
      %1195 = vmatprep.subr.bf16.mxu0 0
      %1196 = vmatpush1.bf16.msra.mxu0 %v1179
      %1197 = vmatprep.subr.bf16.mxu0 0
      %1198 = vmatpush1.bf16.msra.mxu0 %v1180
      %1199 = vmatprep.subr.bf16.mxu0 0
      %1200 = vmatpush1.bf16.msra.mxu0 %v1181
      %1201 = vmatprep.subr.bf16.mxu0 0
      %1202 = vmatpush1.bf16.msra.mxu0 0
      %1203 = vmatprep.subr.bf16.mxu0 0
      %1204 = vmatpush1.bf16.msra.mxu0 0
      %1205 = vmatprep.subr.bf16.mxu0 0
      %1206 = vmatpush1.bf16.msra.mxu0 0
      %1207 = vmatprep.subr.bf16.mxu0 0
      %1208 = vmatpush1.bf16.msra.mxu0 0
      %1209 = vmatprep.subr.bf16.mxu0 0
      %1210 = vmatpush1.bf16.msra.mxu0 0
      %1211 = vmatprep.subr.bf16.mxu0 0
      %1212 = vmatpush1.bf16.msra.mxu0 0
      %1213 = vmatprep.subr.bf16.mxu0 0
      %1214 = vmatpush1.bf16.msra.mxu0 0
      %1215 = vmatprep.subr.bf16.mxu0 0
      %1216 = vmatpush1.bf16.msra.mxu0 0
      %1217 = vmatprep.subr.bf16.mxu0 0
      %1218 = vmatpush1.bf16.msra.mxu0 0
      %1219 = vmatprep.subr.bf16.mxu0 0
      %1220 = vmatpush1.bf16.msra.mxu0 0
      %1221 = vmatprep.subr.bf16.mxu0 0
      %1222 = vmatpush1.bf16.msra.mxu0 0
      %1223 = vmatprep.subr.bf16.mxu0 0
      %1224 = vmatpush1.bf16.msra.mxu0 0
      %1225 = vmatprep.mubr.bf16.mxu0 0
      %1226 = vmatmul.mubr.bf16.gmra.mrb[0].mxu0 %v1191
      %v1227 = vpop.f32.mrb[0].mxu0
      %v1228 = vadd.f32 0.0, %v1227
      %v1229 = vpop.f32.mrb[0].mxu0
      %v1230 = vpop.f32.mrb[0].mxu0
      %v1231 = vadd.f32 0.0, %v1230
      %v1232 = vpop.f32.mrb[0].mxu0
      %1233 = vdwg.mxu0
      %v1234 = vpack.c.bf16 %v1231, %v1228
      %v1235 = vld [vmem:[%s4] sm:$0xf]
      %v1236 = vld [vmem:[%s4 + $0x4] sm:$0xf]
      %v1237 = vld [vmem:[%s4 + $0x8] sm:$0xf]
      %v1238 = vld [vmem:[%s4 + $0xc] sm:$0xf]
      %s1239 = scalar_lea.vmem %s3, 8
      %v1240 = vld [vmem:[%s1239] sm:$0xf]
      %v1241 = vld [vmem:[%s1239 + $0x4] sm:$0x1]
      %v1244 = vunpack.c.l.b16 %v1240
      %v1245 = vunpack.c.l.b16 %v1241
      %v1246 = vpack.c.b16 %v1245, %v1244
      %v1248 = vsel %vm1189, %v1246, 0
      %1250 = vmatprep.subr.bf16.mxu0 0
      %1251 = vmatpush1.bf16.msra.mxu0 %v1178
      %1252 = vmatprep.subr.bf16.mxu0 0
      %1253 = vmatpush1.bf16.msra.mxu0 %v1179
      %1254 = vmatprep.subr.bf16.mxu0 0
      %1255 = vmatpush1.bf16.msra.mxu0 %v1180
      %1256 = vmatprep.subr.bf16.mxu0 0
      %1257 = vmatpush1.bf16.msra.mxu0 %v1181
      %1258 = vmatprep.subr.bf16.mxu0 0
      %1259 = vmatpush1.bf16.msra.mxu0 0
      %1260 = vmatprep.subr.bf16.mxu0 0
      %1261 = vmatpush1.bf16.msra.mxu0 0
      %1262 = vmatprep.subr.bf16.mxu0 0
      %1263 = vmatpush1.bf16.msra.mxu0 0
      %1264 = vmatprep.subr.bf16.mxu0 0
      %1265 = vmatpush1.bf16.msra.mxu0 0
      %1266 = vmatprep.subr.bf16.mxu0 0
      %1267 = vmatpush1.bf16.msra.mxu0 0
      %1268 = vmatprep.subr.bf16.mxu0 0
      %1269 = vmatpush1.bf16.msra.mxu0 0
      %1270 = vmatprep.subr.bf16.mxu0 0
      %1271 = vmatpush1.bf16.msra.mxu0 0
      %1272 = vmatprep.subr.bf16.mxu0 0
      %1273 = vmatpush1.bf16.msra.mxu0 0
      %1274 = vmatprep.subr.bf16.mxu0 0
      %1275 = vmatpush1.bf16.msra.mxu0 0
      %1276 = vmatprep.subr.bf16.mxu0 0
      %1277 = vmatpush1.bf16.msra.mxu0 0
      %1278 = vmatprep.subr.bf16.mxu0 0
      %1279 = vmatpush1.bf16.msra.mxu0 0
      %1280 = vmatprep.subr.bf16.mxu0 0
      %1281 = vmatpush1.bf16.msra.mxu0 0
      %1282 = vmatprep.mubr.bf16.mxu0 0
      %1283 = vmatmul.mubr.bf16.gmra.mrb[0].mxu0 %v1248
      %v1284 = vpop.f32.mrb[0].mxu0
      %v1285 = vadd.f32 0.0, %v1284
      %v1286 = vpop.f32.mrb[0].mxu0
      %v1287 = vpop.f32.mrb[0].mxu0
      %v1288 = vadd.f32 0.0, %v1287
      %v1289 = vpop.f32.mrb[0].mxu0
      %1290 = vdwg.mxu0
      %v1291 = vpack.c.bf16 %v1288, %v1285
      %s1292 = scalar_lea.vmem %s4, 16
      %v1293 = vld [vmem:[%s1292] sm:$0xf]
      %v1294 = vld [vmem:[%s1292 + $0x4] sm:$0xf]
      %v1295 = vld [vmem:[%s1292 + $0x8] sm:$0xf]
      %v1296 = vld [vmem:[%s1292 + $0xc] sm:$0xf]
      %v1301 = vunpack.c.l.b16 %v1293
      %v1302 = vunpack.c.l.b16 %v1294
      %v1303 = vunpack.c.l.b16 %v1295
      %v1304 = vunpack.c.l.b16 %v1296
      %v1305 = vpack.c.b16 %v1302, %v1301
      %v1306 = vpack.c.b16 %v1304, %v1303
      %vm1309 = vcmask 261120
      %v1311 = vsel %vm1309, %v1291, 0
      %1313 = vmatprep.subr.bf16.mxu0 0
      %1314 = vmatpush1.bf16.msra.mxu0 %v1305
      %1315 = vmatprep.subr.bf16.mxu0 0
      %1316 = vmatpush1.bf16.msra.mxu0 %v1306
      %1317 = vmatprep.subr.bf16.mxu0 0
      %1318 = vmatpush1.bf16.msra.mxu0 0
      %1319 = vmatprep.subr.bf16.mxu0 0
      %1320 = vmatpush1.bf16.msra.mxu0 0
      %1321 = vmatprep.subr.bf16.mxu0 0
      %1322 = vmatpush1.bf16.msra.mxu0 0
      %1323 = vmatprep.subr.bf16.mxu0 0
      %1324 = vmatpush1.bf16.msra.mxu0 0
      %1325 = vmatprep.subr.bf16.mxu0 0
      %1326 = vmatpush1.bf16.msra.mxu0 0
      %1327 = vmatprep.subr.bf16.mxu0 0
      %1328 = vmatpush1.bf16.msra.mxu0 0
      %1329 = vmatprep.subr.bf16.mxu0 0
      %1330 = vmatpush1.bf16.msra.mxu0 0
      %1331 = vmatprep.subr.bf16.mxu0 0
      %1332 = vmatpush1.bf16.msra.mxu0 0
      %1333 = vmatprep.subr.bf16.mxu0 0
      %1334 = vmatpush1.bf16.msra.mxu0 0
      %1335 = vmatprep.subr.bf16.mxu0 0
      %1336 = vmatpush1.bf16.msra.mxu0 0
      %1337 = vmatprep.subr.bf16.mxu0 0
      %1338 = vmatpush1.bf16.msra.mxu0 0
      %1339 = vmatprep.subr.bf16.mxu0 0
      %1340 = vmatpush1.bf16.msra.mxu0 0
      %1341 = vmatprep.subr.bf16.mxu0 0
      %1342 = vmatpush1.bf16.msra.mxu0 0
      %1343 = vmatprep.subr.bf16.mxu0 0
      %1344 = vmatpush1.bf16.msra.mxu0 0
      %1345 = vmatprep.mubr.bf16.mxu0 0
      %1346 = vmatmul.mubr.bf16.gmra.mrb[0].mxu0 %v1311
      %v1347 = vpop.f32.mrb[0].mxu0
      %v1348 = vadd.f32 0.0, %v1347
      %v1349 = vpop.f32.mrb[0].mxu0
      %v1350 = vpop.f32.mrb[0].mxu0
      %v1351 = vadd.f32 0.0, %v1350
      %v1352 = vpop.f32.mrb[0].mxu0
      %1353 = vdwg.mxu0
      %v1358 = vunpack.c.l.b16 %v1235
      %v1359 = vunpack.c.l.b16 %v1236
      %v1360 = vunpack.c.l.b16 %v1237
      %v1361 = vunpack.c.l.b16 %v1238
      %v1362 = vpack.c.b16 %v1359, %v1358
      %v1363 = vpack.c.b16 %v1361, %v1360
      %v1367 = vsel %vm1309, %v1234, 0
      %1369 = vmatprep.subr.bf16.mxu0 0
      %1370 = vmatpush1.bf16.msra.mxu0 %v1362
      %1371 = vmatprep.subr.bf16.mxu0 0
      %1372 = vmatpush1.bf16.msra.mxu0 %v1363
      %1373 = vmatprep.subr.bf16.mxu0 0
      %1374 = vmatpush1.bf16.msra.mxu0 0
      %1375 = vmatprep.subr.bf16.mxu0 0
      %1376 = vmatpush1.bf16.msra.mxu0 0
      %1377 = vmatprep.subr.bf16.mxu0 0
      %1378 = vmatpush1.bf16.msra.mxu0 0
      %1379 = vmatprep.subr.bf16.mxu0 0
      %1380 = vmatpush1.bf16.msra.mxu0 0
      %1381 = vmatprep.subr.bf16.mxu0 0
      %1382 = vmatpush1.bf16.msra.mxu0 0
      %1383 = vmatprep.subr.bf16.mxu0 0
      %1384 = vmatpush1.bf16.msra.mxu0 0
      %1385 = vmatprep.subr.bf16.mxu0 0
      %1386 = vmatpush1.bf16.msra.mxu0 0
      %1387 = vmatprep.subr.bf16.mxu0 0
      %1388 = vmatpush1.bf16.msra.mxu0 0
      %1389 = vmatprep.subr.bf16.mxu0 0
      %1390 = vmatpush1.bf16.msra.mxu0 0
      %1391 = vmatprep.subr.bf16.mxu0 0
      %1392 = vmatpush1.bf16.msra.mxu0 0
      %1393 = vmatprep.subr.bf16.mxu0 0
      %1394 = vmatpush1.bf16.msra.mxu0 0
      %1395 = vmatprep.subr.bf16.mxu0 0
      %1396 = vmatpush1.bf16.msra.mxu0 0
      %1397 = vmatprep.subr.bf16.mxu0 0
      %1398 = vmatpush1.bf16.msra.mxu0 0
      %1399 = vmatprep.subr.bf16.mxu0 0
      %1400 = vmatpush1.bf16.msra.mxu0 0
      %1401 = vmatprep.mubr.bf16.mxu0 0
      %1402 = vmatmul.mubr.bf16.gmra.mrb[0].mxu0 %v1367
      %v1403 = vpop.f32.mrb[0].mxu0
      %v1404 = vadd.f32 %v1348, %v1403
      %v1405 = vpop.f32.mrb[0].mxu0
      %v1406 = vpop.f32.mrb[0].mxu0
      %v1407 = vadd.f32 %v1351, %v1406
      %v1408 = vpop.f32.mrb[0].mxu0
      %1409 = vdwg.mxu0
      %s1410 = scalar_lea.vmem %s3, 16
      %v1411 = vld [vmem:[%s1410] sm:$0xf]
      %v1412 = vld [vmem:[%s1410 + $0x4] sm:$0x1]
      %v1415 = vunpack.c.l.b16 %v1411
      %v1416 = vunpack.c.l.b16 %v1412
      %v1417 = vpack.c.b16 %v1416, %v1415
      %v1419 = vsel %vm1189, %v1417, 0
      %1421 = vmatprep.subr.bf16.mxu0 0
      %1422 = vmatpush1.bf16.msra.mxu0 %v1178
      %1423 = vmatprep.subr.bf16.mxu0 0
      %1424 = vmatpush1.bf16.msra.mxu0 %v1179
      %1425 = vmatprep.subr.bf16.mxu0 0
      %1426 = vmatpush1.bf16.msra.mxu0 %v1180
      %1427 = vmatprep.subr.bf16.mxu0 0
      %1428 = vmatpush1.bf16.msra.mxu0 %v1181
      %1429 = vmatprep.subr.bf16.mxu0 0
      %1430 = vmatpush1.bf16.msra.mxu0 0
      %1431 = vmatprep.subr.bf16.mxu0 0
      %1432 = vmatpush1.bf16.msra.mxu0 0
      %1433 = vmatprep.subr.bf16.mxu0 0
      %1434 = vmatpush1.bf16.msra.mxu0 0
      %1435 = vmatprep.subr.bf16.mxu0 0
      %1436 = vmatpush1.bf16.msra.mxu0 0
      %1437 = vmatprep.subr.bf16.mxu0 0
      %1438 = vmatpush1.bf16.msra.mxu0 0
      %1439 = vmatprep.subr.bf16.mxu0 0
      %1440 = vmatpush1.bf16.msra.mxu0 0
      %1441 = vmatprep.subr.bf16.mxu0 0
      %1442 = vmatpush1.bf16.msra.mxu0 0
      %1443 = vmatprep.subr.bf16.mxu0 0
      %1444 = vmatpush1.bf16.msra.mxu0 0
      %1445 = vmatprep.subr.bf16.mxu0 0
      %1446 = vmatpush1.bf16.msra.mxu0 0
      %1447 = vmatprep.subr.bf16.mxu0 0
      %1448 = vmatpush1.bf16.msra.mxu0 0
      %1449 = vmatprep.subr.bf16.mxu0 0
      %1450 = vmatpush1.bf16.msra.mxu0 0
      %1451 = vmatprep.subr.bf16.mxu0 0
      %1452 = vmatpush1.bf16.msra.mxu0 0
      %1453 = vmatprep.mubr.bf16.mxu0 0
      %1454 = vmatmul.mubr.bf16.gmra.mrb[0].mxu0 %v1419
      %v1455 = vpop.f32.mrb[0].mxu0
      %v1456 = vadd.f32 0.0, %v1455
      %v1457 = vpop.f32.mrb[0].mxu0
      %v1458 = vpop.f32.mrb[0].mxu0
      %v1459 = vadd.f32 0.0, %v1458
      %v1460 = vpop.f32.mrb[0].mxu0
      %1461 = vdwg.mxu0
      %v1462 = vpack.c.bf16 %v1459, %v1456
      %s1463 = scalar_lea.vmem %s4, 32
      %v1464 = vld [vmem:[%s1463] sm:$0xf]
      %v1465 = vld [vmem:[%s1463 + $0x4] sm:$0xf]
      %v1466 = vld [vmem:[%s1463 + $0x8] sm:$0xf]
      %v1467 = vld [vmem:[%s1463 + $0xc] sm:$0xf]
      %v1472 = vunpack.c.l.b16 %v1464
      %v1473 = vunpack.c.l.b16 %v1465
      %v1474 = vunpack.c.l.b16 %v1466
      %v1475 = vunpack.c.l.b16 %v1467
      %v1476 = vpack.c.b16 %v1473, %v1472
      %v1477 = vpack.c.b16 %v1475, %v1474
      %v1481 = vsel %vm1309, %v1462, 0
      %1483 = vmatprep.subr.bf16.mxu0 0
      %1484 = vmatpush1.bf16.msra.mxu0 %v1476
      %1485 = vmatprep.subr.bf16.mxu0 0
      %1486 = vmatpush1.bf16.msra.mxu0 %v1477
      %1487 = vmatprep.subr.bf16.mxu0 0
      %1488 = vmatpush1.bf16.msra.mxu0 0
      %1489 = vmatprep.subr.bf16.mxu0 0
      %1490 = vmatpush1.bf16.msra.mxu0 0
      %1491 = vmatprep.subr.bf16.mxu0 0
      %1492 = vmatpush1.bf16.msra.mxu0 0
      %1493 = vmatprep.subr.bf16.mxu0 0
      %1494 = vmatpush1.bf16.msra.mxu0 0
      %1495 = vmatprep.subr.bf16.mxu0 0
      %1496 = vmatpush1.bf16.msra.mxu0 0
      %1497 = vmatprep.subr.bf16.mxu0 0
      %1498 = vmatpush1.bf16.msra.mxu0 0
      %1499 = vmatprep.subr.bf16.mxu0 0
      %1500 = vmatpush1.bf16.msra.mxu0 0
      %1501 = vmatprep.subr.bf16.mxu0 0
      %1502 = vmatpush1.bf16.msra.mxu0 0
      %1503 = vmatprep.subr.bf16.mxu0 0
      %1504 = vmatpush1.bf16.msra.mxu0 0
      %1505 = vmatprep.subr.bf16.mxu0 0
      %1506 = vmatpush1.bf16.msra.mxu0 0
      %1507 = vmatprep.subr.bf16.mxu0 0
      %1508 = vmatpush1.bf16.msra.mxu0 0
      %1509 = vmatprep.subr.bf16.mxu0 0
      %1510 = vmatpush1.bf16.msra.mxu0 0
      %1511 = vmatprep.subr.bf16.mxu0 0
      %1512 = vmatpush1.bf16.msra.mxu0 0
      %1513 = vmatprep.subr.bf16.mxu0 0
      %1514 = vmatpush1.bf16.msra.mxu0 0
      %1515 = vmatprep.mubr.bf16.mxu0 0
      %1516 = vmatmul.mubr.bf16.gmra.mrb[0].mxu0 %v1481
      %v1517 = vpop.f32.mrb[0].mxu0
      %v1518 = vadd.f32 0.0, %v1517
      %v1519 = vpop.f32.mrb[0].mxu0
      %v1520 = vpop.f32.mrb[0].mxu0
      %v1521 = vadd.f32 0.0, %v1520
      %v1522 = vpop.f32.mrb[0].mxu0
      %1523 = vdwg.mxu0
      %v1524 = vadd.f32 %v1404, %v1518
      %v1525 = vadd.f32 %v1407, %v1521
      %s1526 = scalar_lea.vmem %s3, 24
      %v1527 = vld [vmem:[%s1526] sm:$0xf]
      %v1528 = vld [vmem:[%s1526 + $0x4] sm:$0x1]
      %v1531 = vunpack.c.l.b16 %v1527
      %v1532 = vunpack.c.l.b16 %v1528
      %v1533 = vpack.c.b16 %v1532, %v1531
      %v1535 = vsel %vm1189, %v1533, 0
      %1537 = vmatprep.subr.bf16.mxu0 0
      %1538 = vmatpush1.bf16.msra.mxu0 %v1178
      %1539 = vmatprep.subr.bf16.mxu0 0
      %1540 = vmatpush1.bf16.msra.mxu0 %v1179
      %1541 = vmatprep.subr.bf16.mxu0 0
      %1542 = vmatpush1.bf16.msra.mxu0 %v1180
      %1543 = vmatprep.subr.bf16.mxu0 0
      %1544 = vmatpush1.bf16.msra.mxu0 %v1181
      %1545 = vmatprep.subr.bf16.mxu0 0
      %1546 = vmatpush1.bf16.msra.mxu0 0
      %1547 = vmatprep.subr.bf16.mxu0 0
      %1548 = vmatpush1.bf16.msra.mxu0 0
      %1549 = vmatprep.subr.bf16.mxu0 0
      %1550 = vmatpush1.bf16.msra.mxu0 0
      %1551 = vmatprep.subr.bf16.mxu0 0
      %1552 = vmatpush1.bf16.msra.mxu0 0
      %1553 = vmatprep.subr.bf16.mxu0 0
      %1554 = vmatpush1.bf16.msra.mxu0 0
      %1555 = vmatprep.subr.bf16.mxu0 0
      %1556 = vmatpush1.bf16.msra.mxu0 0
      %1557 = vmatprep.subr.bf16.mxu0 0
      %1558 = vmatpush1.bf16.msra.mxu0 0
      %1559 = vmatprep.subr.bf16.mxu0 0
      %1560 = vmatpush1.bf16.msra.mxu0 0
      %1561 = vmatprep.subr.bf16.mxu0 0
      %1562 = vmatpush1.bf16.msra.mxu0 0
      %1563 = vmatprep.subr.bf16.mxu0 0
      %1564 = vmatpush1.bf16.msra.mxu0 0
      %1565 = vmatprep.subr.bf16.mxu0 0
      %1566 = vmatpush1.bf16.msra.mxu0 0
      %1567 = vmatprep.subr.bf16.mxu0 0
      %1568 = vmatpush1.bf16.msra.mxu0 0
      %1569 = vmatprep.mubr.bf16.mxu0 0
      %1570 = vmatmul.mubr.bf16.gmra.mrb[0].mxu0 %v1535
      %v1571 = vpop.f32.mrb[0].mxu0
      %v1572 = vadd.f32 0.0, %v1571
      %v1573 = vpop.f32.mrb[0].mxu0
      %v1574 = vpop.f32.mrb[0].mxu0
      %v1575 = vadd.f32 0.0, %v1574
      %v1576 = vpop.f32.mrb[0].mxu0
      %1577 = vdwg.mxu0
      %v1578 = vpack.c.bf16 %v1575, %v1572
      %s1579 = scalar_lea.vmem %s4, 48
      %v1580 = vld [vmem:[%s1579] sm:$0xf]
      %v1581 = vld [vmem:[%s1579 + $0x4] sm:$0xf]
      %v1582 = vld [vmem:[%s1579 + $0x8] sm:$0xf]
      %v1583 = vld [vmem:[%s1579 + $0xc] sm:$0xf]
      %v1588 = vunpack.c.l.b16 %v1580
      %v1589 = vunpack.c.l.b16 %v1581
      %v1590 = vunpack.c.l.b16 %v1582
      %v1591 = vunpack.c.l.b16 %v1583
      %v1592 = vpack.c.b16 %v1589, %v1588
      %v1593 = vpack.c.b16 %v1591, %v1590
      %v1597 = vsel %vm1309, %v1578, 0
      %1599 = vmatprep.subr.bf16.mxu0 0
      %1600 = vmatpush1.bf16.msra.mxu0 %v1592
      %1601 = vmatprep.subr.bf16.mxu0 0
      %1602 = vmatpush1.bf16.msra.mxu0 %v1593
      %1603 = vmatprep.subr.bf16.mxu0 0
      %1604 = vmatpush1.bf16.msra.mxu0 0
      %1605 = vmatprep.subr.bf16.mxu0 0
      %1606 = vmatpush1.bf16.msra.mxu0 0
      %1607 = vmatprep.subr.bf16.mxu0 0
      %1608 = vmatpush1.bf16.msra.mxu0 0
      %1609 = vmatprep.subr.bf16.mxu0 0
      %1610 = vmatpush1.bf16.msra.mxu0 0
      %1611 = vmatprep.subr.bf16.mxu0 0
      %1612 = vmatpush1.bf16.msra.mxu0 0
      %1613 = vmatprep.subr.bf16.mxu0 0
      %1614 = vmatpush1.bf16.msra.mxu0 0
      %1615 = vmatprep.subr.bf16.mxu0 0
      %1616 = vmatpush1.bf16.msra.mxu0 0
      %1617 = vmatprep.subr.bf16.mxu0 0
      %1618 = vmatpush1.bf16.msra.mxu0 0
      %1619 = vmatprep.subr.bf16.mxu0 0
      %1620 = vmatpush1.bf16.msra.mxu0 0
      %1621 = vmatprep.subr.bf16.mxu0 0
      %1622 = vmatpush1.bf16.msra.mxu0 0
      %1623 = vmatprep.subr.bf16.mxu0 0
      %1624 = vmatpush1.bf16.msra.mxu0 0
      %1625 = vmatprep.subr.bf16.mxu0 0
      %1626 = vmatpush1.bf16.msra.mxu0 0
      %1627 = vmatprep.subr.bf16.mxu0 0
      %1628 = vmatpush1.bf16.msra.mxu0 0
      %1629 = vmatprep.subr.bf16.mxu0 0
      %1630 = vmatpush1.bf16.msra.mxu0 0
      %1631 = vmatprep.mubr.bf16.mxu0 0
      %1632 = vmatmul.mubr.bf16.gmra.mrb[0].mxu0 %v1597
      %v1633 = vpop.f32.mrb[0].mxu0
      %v1634 = vadd.f32 0.0, %v1633
      %v1635 = vpop.f32.mrb[0].mxu0
      %v1636 = vpop.f32.mrb[0].mxu0
      %v1637 = vadd.f32 0.0, %v1636
      %v1638 = vpop.f32.mrb[0].mxu0
      %1639 = vdwg.mxu0
      %v1640 = vadd.f32 %v1524, %v1634
      %v1641 = vadd.f32 %v1525, %v1637
      %s1642 = scalar_lea.vmem %s3, 32
      %v1643 = vld [vmem:[%s1642] sm:$0xf]
      %v1644 = vld [vmem:[%s1642 + $0x4] sm:$0x1]
      %v1647 = vunpack.c.l.b16 %v1643
      %v1648 = vunpack.c.l.b16 %v1644
      %v1649 = vpack.c.b16 %v1648, %v1647
      %v1651 = vsel %vm1189, %v1649, 0
      %1653 = vmatprep.subr.bf16.mxu0 0
      %1654 = vmatpush1.bf16.msra.mxu0 %v1178
      %1655 = vmatprep.subr.bf16.mxu0 0
      %1656 = vmatpush1.bf16.msra.mxu0 %v1179
      %1657 = vmatprep.subr.bf16.mxu0 0
      %1658 = vmatpush1.bf16.msra.mxu0 %v1180
      %1659 = vmatprep.subr.bf16.mxu0 0
      %1660 = vmatpush1.bf16.msra.mxu0 %v1181
      %1661 = vmatprep.subr.bf16.mxu0 0
      %1662 = vmatpush1.bf16.msra.mxu0 0
      %1663 = vmatprep.subr.bf16.mxu0 0
      %1664 = vmatpush1.bf16.msra.mxu0 0
      %1665 = vmatprep.subr.bf16.mxu0 0
      %1666 = vmatpush1.bf16.msra.mxu0 0
      %1667 = vmatprep.subr.bf16.mxu0 0
      %1668 = vmatpush1.bf16.msra.mxu0 0
      %1669 = vmatprep.subr.bf16.mxu0 0
      %1670 = vmatpush1.bf16.msra.mxu0 0
      %1671 = vmatprep.subr.bf16.mxu0 0
      %1672 = vmatpush1.bf16.msra.mxu0 0
      %1673 = vmatprep.subr.bf16.mxu0 0
      %1674 = vmatpush1.bf16.msra.mxu0 0
      %1675 = vmatprep.subr.bf16.mxu0 0
      %1676 = vmatpush1.bf16.msra.mxu0 0
      %1677 = vmatprep.subr.bf16.mxu0 0
      %1678 = vmatpush1.bf16.msra.mxu0 0
      %1679 = vmatprep.subr.bf16.mxu0 0
      %1680 = vmatpush1.bf16.msra.mxu0 0
      %1681 = vmatprep.subr.bf16.mxu0 0
      %1682 = vmatpush1.bf16.msra.mxu0 0
      %1683 = vmatprep.subr.bf16.mxu0 0
      %1684 = vmatpush1.bf16.msra.mxu0 0
      %1685 = vmatprep.mubr.bf16.mxu0 0
      %1686 = vmatmul.mubr.bf16.gmra.mrb[0].mxu0 %v1651
      %v1687 = vpop.f32.mrb[0].mxu0
      %v1688 = vadd.f32 0.0, %v1687
      %v1689 = vpop.f32.mrb[0].mxu0
      %v1690 = vpop.f32.mrb[0].mxu0
      %v1691 = vadd.f32 0.0, %v1690
      %v1692 = vpop.f32.mrb[0].mxu0
      %1693 = vdwg.mxu0
      %v1694 = vpack.c.bf16 %v1691, %v1688
      %s1695 = scalar_lea.vmem %s4, 64
      %v1696 = vld [vmem:[%s1695] sm:$0xf]
      %v1697 = vld [vmem:[%s1695 + $0x4] sm:$0xf]
      %v1698 = vld [vmem:[%s1695 + $0x8] sm:$0xf]
      %v1699 = vld [vmem:[%s1695 + $0xc] sm:$0xf]
      %v1704 = vunpack.c.l.b16 %v1696
      %v1705 = vunpack.c.l.b16 %v1697
      %v1706 = vunpack.c.l.b16 %v1698
      %v1707 = vunpack.c.l.b16 %v1699
      %v1708 = vpack.c.b16 %v1705, %v1704
      %v1709 = vpack.c.b16 %v1707, %v1706
      %v1713 = vsel %vm1309, %v1694, 0
      %1715 = vmatprep.subr.bf16.mxu0 0
      %1716 = vmatpush1.bf16.msra.mxu0 %v1708
      %1717 = vmatprep.subr.bf16.mxu0 0
      %1718 = vmatpush1.bf16.msra.mxu0 %v1709
      %1719 = vmatprep.subr.bf16.mxu0 0
      %1720 = vmatpush1.bf16.msra.mxu0 0
      %1721 = vmatprep.subr.bf16.mxu0 0
      %1722 = vmatpush1.bf16.msra.mxu0 0
      %1723 = vmatprep.subr.bf16.mxu0 0
      %1724 = vmatpush1.bf16.msra.mxu0 0
      %1725 = vmatprep.subr.bf16.mxu0 0
      %1726 = vmatpush1.bf16.msra.mxu0 0
      %1727 = vmatprep.subr.bf16.mxu0 0
      %1728 = vmatpush1.bf16.msra.mxu0 0
      %1729 = vmatprep.subr.bf16.mxu0 0
      %1730 = vmatpush1.bf16.msra.mxu0 0
      %1731 = vmatprep.subr.bf16.mxu0 0
      %1732 = vmatpush1.bf16.msra.mxu0 0
      %1733 = vmatprep.subr.bf16.mxu0 0
      %1734 = vmatpush1.bf16.msra.mxu0 0
      %1735 = vmatprep.subr.bf16.mxu0 0
      %1736 = vmatpush1.bf16.msra.mxu0 0
      %1737 = vmatprep.subr.bf16.mxu0 0
      %1738 = vmatpush1.bf16.msra.mxu0 0
      %1739 = vmatprep.subr.bf16.mxu0 0
      %1740 = vmatpush1.bf16.msra.mxu0 0
      %1741 = vmatprep.subr.bf16.mxu0 0
      %1742 = vmatpush1.bf16.msra.mxu0 0
      %1743 = vmatprep.subr.bf16.mxu0 0
      %1744 = vmatpush1.bf16.msra.mxu0 0
      %1745 = vmatprep.subr.bf16.mxu0 0
      %1746 = vmatpush1.bf16.msra.mxu0 0
      %1747 = vmatprep.mubr.bf16.mxu0 0
      %1748 = vmatmul.mubr.bf16.gmra.mrb[0].mxu0 %v1713
      %v1749 = vpop.f32.mrb[0].mxu0
      %v1750 = vadd.f32 0.0, %v1749
      %v1751 = vpop.f32.mrb[0].mxu0
      %v1752 = vpop.f32.mrb[0].mxu0
      %v1753 = vadd.f32 0.0, %v1752
      %v1754 = vpop.f32.mrb[0].mxu0
      %1755 = vdwg.mxu0
      %v1756 = vadd.f32 %v1640, %v1750
      %v1757 = vadd.f32 %v1641, %v1753
      %s1758 = scalar_lea.vmem %s3, 40
      %v1759 = vld [vmem:[%s1758] sm:$0xf]
      %v1760 = vld [vmem:[%s1758 + $0x4] sm:$0x1]
      %v1763 = vunpack.c.l.b16 %v1759
      %v1764 = vunpack.c.l.b16 %v1760
      %v1765 = vpack.c.b16 %v1764, %v1763
      %v1767 = vsel %vm1189, %v1765, 0
      %1769 = vmatprep.subr.bf16.mxu0 0
      %1770 = vmatpush1.bf16.msra.mxu0 %v1178
      %1771 = vmatprep.subr.bf16.mxu0 0
      %1772 = vmatpush1.bf16.msra.mxu0 %v1179
      %1773 = vmatprep.subr.bf16.mxu0 0
      %1774 = vmatpush1.bf16.msra.mxu0 %v1180
      %1775 = vmatprep.subr.bf16.mxu0 0
      %1776 = vmatpush1.bf16.msra.mxu0 %v1181
      %1777 = vmatprep.subr.bf16.mxu0 0
      %1778 = vmatpush1.bf16.msra.mxu0 0
      %1779 = vmatprep.subr.bf16.mxu0 0
      %1780 = vmatpush1.bf16.msra.mxu0 0
      %1781 = vmatprep.subr.bf16.mxu0 0
      %1782 = vmatpush1.bf16.msra.mxu0 0
      %1783 = vmatprep.subr.bf16.mxu0 0
      %1784 = vmatpush1.bf16.msra.mxu0 0
      %1785 = vmatprep.subr.bf16.mxu0 0
      %1786 = vmatpush1.bf16.msra.mxu0 0
      %1787 = vmatprep.subr.bf16.mxu0 0
      %1788 = vmatpush1.bf16.msra.mxu0 0
      %1789 = vmatprep.subr.bf16.mxu0 0
      %1790 = vmatpush1.bf16.msra.mxu0 0
      %1791 = vmatprep.subr.bf16.mxu0 0
      %1792 = vmatpush1.bf16.msra.mxu0 0
      %1793 = vmatprep.subr.bf16.mxu0 0
      %1794 = vmatpush1.bf16.msra.mxu0 0
      %1795 = vmatprep.subr.bf16.mxu0 0
      %1796 = vmatpush1.bf16.msra.mxu0 0
      %1797 = vmatprep.subr.bf16.mxu0 0
      %1798 = vmatpush1.bf16.msra.mxu0 0
      %1799 = vmatprep.subr.bf16.mxu0 0
      %1800 = vmatpush1.bf16.msra.mxu0 0
      %1801 = vmatprep.mubr.bf16.mxu0 0
      %1802 = vmatmul.mubr.bf16.gmra.mrb[0].mxu0 %v1767
      %v1803 = vpop.f32.mrb[0].mxu0
      %v1804 = vadd.f32 0.0, %v1803
      %v1805 = vpop.f32.mrb[0].mxu0
      %v1806 = vpop.f32.mrb[0].mxu0
      %v1807 = vadd.f32 0.0, %v1806
      %v1808 = vpop.f32.mrb[0].mxu0
      %1809 = vdwg.mxu0
      %v1810 = vpack.c.bf16 %v1807, %v1804
      %s1811 = scalar_lea.vmem %s4, 80
      %v1812 = vld [vmem:[%s1811] sm:$0xf]
      %v1813 = vld [vmem:[%s1811 + $0x4] sm:$0xf]
      %v1814 = vld [vmem:[%s1811 + $0x8] sm:$0xf]
      %v1815 = vld [vmem:[%s1811 + $0xc] sm:$0xf]
      %v1820 = vunpack.c.l.b16 %v1812
      %v1821 = vunpack.c.l.b16 %v1813
      %v1822 = vunpack.c.l.b16 %v1814
      %v1823 = vunpack.c.l.b16 %v1815
      %v1824 = vpack.c.b16 %v1821, %v1820
      %v1825 = vpack.c.b16 %v1823, %v1822
      %v1829 = vsel %vm1309, %v1810, 0
      %1831 = vmatprep.subr.bf16.mxu0 0
      %1832 = vmatpush1.bf16.msra.mxu0 %v1824
      %1833 = vmatprep.subr.bf16.mxu0 0
      %1834 = vmatpush1.bf16.msra.mxu0 %v1825
      %1835 = vmatprep.subr.bf16.mxu0 0
      %1836 = vmatpush1.bf16.msra.mxu0 0
      %1837 = vmatprep.subr.bf16.mxu0 0
      %1838 = vmatpush1.bf16.msra.mxu0 0
      %1839 = vmatprep.subr.bf16.mxu0 0
      %1840 = vmatpush1.bf16.msra.mxu0 0
      %1841 = vmatprep.subr.bf16.mxu0 0
      %1842 = vmatpush1.bf16.msra.mxu0 0
      %1843 = vmatprep.subr.bf16.mxu0 0
      %1844 = vmatpush1.bf16.msra.mxu0 0
      %1845 = vmatprep.subr.bf16.mxu0 0
      %1846 = vmatpush1.bf16.msra.mxu0 0
      %1847 = vmatprep.subr.bf16.mxu0 0
      %1848 = vmatpush1.bf16.msra.mxu0 0
      %1849 = vmatprep.subr.bf16.mxu0 0
      %1850 = vmatpush1.bf16.msra.mxu0 0
      %1851 = vmatprep.subr.bf16.mxu0 0
      %1852 = vmatpush1.bf16.msra.mxu0 0
      %1853 = vmatprep.subr.bf16.mxu0 0
      %1854 = vmatpush1.bf16.msra.mxu0 0
      %1855 = vmatprep.subr.bf16.mxu0 0
      %1856 = vmatpush1.bf16.msra.mxu0 0
      %1857 = vmatprep.subr.bf16.mxu0 0
      %1858 = vmatpush1.bf16.msra.mxu0 0
      %1859 = vmatprep.subr.bf16.mxu0 0
      %1860 = vmatpush1.bf16.msra.mxu0 0
      %1861 = vmatprep.subr.bf16.mxu0 0
      %1862 = vmatpush1.bf16.msra.mxu0 0
      %1863 = vmatprep.mubr.bf16.mxu0 0
      %1864 = vmatmul.mubr.bf16.gmra.mrb[0].mxu0 %v1829
      %v1865 = vpop.f32.mrb[0].mxu0
      %v1866 = vadd.f32 0.0, %v1865
      %v1867 = vpop.f32.mrb[0].mxu0
      %v1868 = vpop.f32.mrb[0].mxu0
      %v1869 = vadd.f32 0.0, %v1868
      %v1870 = vpop.f32.mrb[0].mxu0
      %1871 = vdwg.mxu0
      %v1872 = vadd.f32 %v1756, %v1866
      %v1873 = vadd.f32 %v1757, %v1869
      %s1874 = scalar_lea.vmem %s3, 48
      %v1875 = vld [vmem:[%s1874] sm:$0xf]
      %v1876 = vld [vmem:[%s1874 + $0x4] sm:$0x1]
      %v1879 = vunpack.c.l.b16 %v1875
      %v1880 = vunpack.c.l.b16 %v1876
      %v1881 = vpack.c.b16 %v1880, %v1879
      %v1883 = vsel %vm1189, %v1881, 0
      %1885 = vmatprep.subr.bf16.mxu0 0
      %1886 = vmatpush1.bf16.msra.mxu0 %v1178
      %1887 = vmatprep.subr.bf16.mxu0 0
      %1888 = vmatpush1.bf16.msra.mxu0 %v1179
      %1889 = vmatprep.subr.bf16.mxu0 0
      %1890 = vmatpush1.bf16.msra.mxu0 %v1180
      %1891 = vmatprep.subr.bf16.mxu0 0
      %1892 = vmatpush1.bf16.msra.mxu0 %v1181
      %1893 = vmatprep.subr.bf16.mxu0 0
      %1894 = vmatpush1.bf16.msra.mxu0 0
      %1895 = vmatprep.subr.bf16.mxu0 0
      %1896 = vmatpush1.bf16.msra.mxu0 0
      %1897 = vmatprep.subr.bf16.mxu0 0
      %1898 = vmatpush1.bf16.msra.mxu0 0
      %1899 = vmatprep.subr.bf16.mxu0 0
      %1900 = vmatpush1.bf16.msra.mxu0 0
      %1901 = vmatprep.subr.bf16.mxu0 0
      %1902 = vmatpush1.bf16.msra.mxu0 0
      %1903 = vmatprep.subr.bf16.mxu0 0
      %1904 = vmatpush1.bf16.msra.mxu0 0
      %1905 = vmatprep.subr.bf16.mxu0 0
      %1906 = vmatpush1.bf16.msra.mxu0 0
      %1907 = vmatprep.subr.bf16.mxu0 0
      %1908 = vmatpush1.bf16.msra.mxu0 0
      %1909 = vmatprep.subr.bf16.mxu0 0
      %1910 = vmatpush1.bf16.msra.mxu0 0
      %1911 = vmatprep.subr.bf16.mxu0 0
      %1912 = vmatpush1.bf16.msra.mxu0 0
      %1913 = vmatprep.subr.bf16.mxu0 0
      %1914 = vmatpush1.bf16.msra.mxu0 0
      %1915 = vmatprep.subr.bf16.mxu0 0
      %1916 = vmatpush1.bf16.msra.mxu0 0
      %1917 = vmatprep.mubr.bf16.mxu0 0
      %1918 = vmatmul.mubr.bf16.gmra.mrb[0].mxu0 %v1883
      %v1919 = vpop.f32.mrb[0].mxu0
      %v1920 = vadd.f32 0.0, %v1919
      %v1921 = vpop.f32.mrb[0].mxu0
      %v1922 = vpop.f32.mrb[0].mxu0
      %v1923 = vadd.f32 0.0, %v1922
      %v1924 = vpop.f32.mrb[0].mxu0
      %1925 = vdwg.mxu0
      %v1926 = vpack.c.bf16 %v1923, %v1920
      %s1927 = scalar_lea.vmem %s4, 96
      %v1928 = vld [vmem:[%s1927] sm:$0xf]
      %v1929 = vld [vmem:[%s1927 + $0x4] sm:$0xf]
      %v1930 = vld [vmem:[%s1927 + $0x8] sm:$0xf]
      %v1931 = vld [vmem:[%s1927 + $0xc] sm:$0xf]
      %v1936 = vunpack.c.l.b16 %v1928
      %v1937 = vunpack.c.l.b16 %v1929
      %v1938 = vunpack.c.l.b16 %v1930
      %v1939 = vunpack.c.l.b16 %v1931
      %v1940 = vpack.c.b16 %v1937, %v1936
      %v1941 = vpack.c.b16 %v1939, %v1938
      %v1945 = vsel %vm1309, %v1926, 0
      %1947 = vmatprep.subr.bf16.mxu0 0
      %1948 = vmatpush1.bf16.msra.mxu0 %v1940
      %1949 = vmatprep.subr.bf16.mxu0 0
      %1950 = vmatpush1.bf16.msra.mxu0 %v1941
      %1951 = vmatprep.subr.bf16.mxu0 0
      %1952 = vmatpush1.bf16.msra.mxu0 0
      %1953 = vmatprep.subr.bf16.mxu0 0
      %1954 = vmatpush1.bf16.msra.mxu0 0
      %1955 = vmatprep.subr.bf16.mxu0 0
      %1956 = vmatpush1.bf16.msra.mxu0 0
      %1957 = vmatprep.subr.bf16.mxu0 0
      %1958 = vmatpush1.bf16.msra.mxu0 0
      %1959 = vmatprep.subr.bf16.mxu0 0
      %1960 = vmatpush1.bf16.msra.mxu0 0
      %1961 = vmatprep.subr.bf16.mxu0 0
      %1962 = vmatpush1.bf16.msra.mxu0 0
      %1963 = vmatprep.subr.bf16.mxu0 0
      %1964 = vmatpush1.bf16.msra.mxu0 0
      %1965 = vmatprep.subr.bf16.mxu0 0
      %1966 = vmatpush1.bf16.msra.mxu0 0
      %1967 = vmatprep.subr.bf16.mxu0 0
      %1968 = vmatpush1.bf16.msra.mxu0 0
      %1969 = vmatprep.subr.bf16.mxu0 0
      %1970 = vmatpush1.bf16.msra.mxu0 0
      %1971 = vmatprep.subr.bf16.mxu0 0
      %1972 = vmatpush1.bf16.msra.mxu0 0
      %1973 = vmatprep.subr.bf16.mxu0 0
      %1974 = vmatpush1.bf16.msra.mxu0 0
      %1975 = vmatprep.subr.bf16.mxu0 0
      %1976 = vmatpush1.bf16.msra.mxu0 0
      %1977 = vmatprep.subr.bf16.mxu0 0
      %1978 = vmatpush1.bf16.msra.mxu0 0
      %1979 = vmatprep.mubr.bf16.mxu0 0
      %1980 = vmatmul.mubr.bf16.gmra.mrb[0].mxu0 %v1945
      %v1981 = vpop.f32.mrb[0].mxu0
      %v1982 = vadd.f32 0.0, %v1981
      %v1983 = vpop.f32.mrb[0].mxu0
      %v1984 = vpop.f32.mrb[0].mxu0
      %v1985 = vadd.f32 0.0, %v1984
      %v1986 = vpop.f32.mrb[0].mxu0
      %1987 = vdwg.mxu0
      %v1988 = vadd.f32 %v1872, %v1982
      %v1989 = vadd.f32 %v1873, %v1985
      %s1990 = scalar_lea.vmem %s3, 56
      %v1991 = vld [vmem:[%s1990] sm:$0xf]
      %v1992 = vld [vmem:[%s1990 + $0x4] sm:$0x1]
      %v1995 = vunpack.c.l.b16 %v1991
      %v1996 = vunpack.c.l.b16 %v1992
      %v1997 = vpack.c.b16 %v1996, %v1995
      %v1999 = vsel %vm1189, %v1997, 0
      %2001 = vmatprep.subr.bf16.mxu0 0
      %2002 = vmatpush1.bf16.msra.mxu0 %v1178
      %2003 = vmatprep.subr.bf16.mxu0 0
      %2004 = vmatpush1.bf16.msra.mxu0 %v1179
      %2005 = vmatprep.subr.bf16.mxu0 0
      %2006 = vmatpush1.bf16.msra.mxu0 %v1180
      %2007 = vmatprep.subr.bf16.mxu0 0
      %2008 = vmatpush1.bf16.msra.mxu0 %v1181
      %2009 = vmatprep.subr.bf16.mxu0 0
      %2010 = vmatpush1.bf16.msra.mxu0 0
      %2011 = vmatprep.subr.bf16.mxu0 0
      %2012 = vmatpush1.bf16.msra.mxu0 0
      %2013 = vmatprep.subr.bf16.mxu0 0
      %2014 = vmatpush1.bf16.msra.mxu0 0
      %2015 = vmatprep.subr.bf16.mxu0 0
      %2016 = vmatpush1.bf16.msra.mxu0 0
      %2017 = vmatprep.subr.bf16.mxu0 0
      %2018 = vmatpush1.bf16.msra.mxu0 0
      %2019 = vmatprep.subr.bf16.mxu0 0
      %2020 = vmatpush1.bf16.msra.mxu0 0
      %2021 = vmatprep.subr.bf16.mxu0 0
      %2022 = vmatpush1.bf16.msra.mxu0 0
      %2023 = vmatprep.subr.bf16.mxu0 0
      %2024 = vmatpush1.bf16.msra.mxu0 0
      %2025 = vmatprep.subr.bf16.mxu0 0
      %2026 = vmatpush1.bf16.msra.mxu0 0
      %2027 = vmatprep.subr.bf16.mxu0 0
      %2028 = vmatpush1.bf16.msra.mxu0 0
      %2029 = vmatprep.subr.bf16.mxu0 0
      %2030 = vmatpush1.bf16.msra.mxu0 0
      %2031 = vmatprep.subr.bf16.mxu0 0
      %2032 = vmatpush1.bf16.msra.mxu0 0
      %2033 = vmatprep.mubr.bf16.mxu0 0
      %2034 = vmatmul.mubr.bf16.gmra.mrb[0].mxu0 %v1999
      %v2035 = vpop.f32.mrb[0].mxu0
      %v2036 = vadd.f32 0.0, %v2035
      %v2037 = vpop.f32.mrb[0].mxu0
      %v2038 = vpop.f32.mrb[0].mxu0
      %v2039 = vadd.f32 0.0, %v2038
      %v2040 = vpop.f32.mrb[0].mxu0
      %2041 = vdwg.mxu0
      %v2042 = vpack.c.bf16 %v2039, %v2036
      %s2043 = scalar_lea.vmem %s4, 112
      %v2044 = vld [vmem:[%s2043] sm:$0xf]
      %v2045 = vld [vmem:[%s2043 + $0x4] sm:$0xf]
      %v2046 = vld [vmem:[%s2043 + $0x8] sm:$0xf]
      %v2047 = vld [vmem:[%s2043 + $0xc] sm:$0xf]
      %v2052 = vunpack.c.l.b16 %v2044
      %v2053 = vunpack.c.l.b16 %v2045
      %v2054 = vunpack.c.l.b16 %v2046
      %v2055 = vunpack.c.l.b16 %v2047
      %v2056 = vpack.c.b16 %v2053, %v2052
      %v2057 = vpack.c.b16 %v2055, %v2054
      %v2061 = vsel %vm1309, %v2042, 0
      %2063 = vmatprep.subr.bf16.mxu0 0
      %2064 = vmatpush1.bf16.msra.mxu0 %v2056
      %2065 = vmatprep.subr.bf16.mxu0 0
      %2066 = vmatpush1.bf16.msra.mxu0 %v2057
      %2067 = vmatprep.subr.bf16.mxu0 0
      %2068 = vmatpush1.bf16.msra.mxu0 0
      %2069 = vmatprep.subr.bf16.mxu0 0
      %2070 = vmatpush1.bf16.msra.mxu0 0
      %2071 = vmatprep.subr.bf16.mxu0 0
      %2072 = vmatpush1.bf16.msra.mxu0 0
      %2073 = vmatprep.subr.bf16.mxu0 0
      %2074 = vmatpush1.bf16.msra.mxu0 0
      %2075 = vmatprep.subr.bf16.mxu0 0
      %2076 = vmatpush1.bf16.msra.mxu0 0
      %2077 = vmatprep.subr.bf16.mxu0 0
      %2078 = vmatpush1.bf16.msra.mxu0 0
      %2079 = vmatprep.subr.bf16.mxu0 0
      %2080 = vmatpush1.bf16.msra.mxu0 0
      %2081 = vmatprep.subr.bf16.mxu0 0
      %2082 = vmatpush1.bf16.msra.mxu0 0
      %2083 = vmatprep.subr.bf16.mxu0 0
      %2084 = vmatpush1.bf16.msra.mxu0 0
      %2085 = vmatprep.subr.bf16.mxu0 0
      %2086 = vmatpush1.bf16.msra.mxu0 0
      %2087 = vmatprep.subr.bf16.mxu0 0
      %2088 = vmatpush1.bf16.msra.mxu0 0
      %2089 = vmatprep.subr.bf16.mxu0 0
      %2090 = vmatpush1.bf16.msra.mxu0 0
      %2091 = vmatprep.subr.bf16.mxu0 0
      %2092 = vmatpush1.bf16.msra.mxu0 0
      %2093 = vmatprep.subr.bf16.mxu0 0
      %2094 = vmatpush1.bf16.msra.mxu0 0
      %2095 = vmatprep.mubr.bf16.mxu0 0
      %2096 = vmatmul.mubr.bf16.gmra.mrb[0].mxu0 %v2061
      %v2097 = vpop.f32.mrb[0].mxu0
      %v2098 = vadd.f32 0.0, %v2097
      %v2099 = vpop.f32.mrb[0].mxu0
      %v2100 = vpop.f32.mrb[0].mxu0
      %v2101 = vadd.f32 0.0, %v2100
      %v2102 = vpop.f32.mrb[0].mxu0
      %2103 = vdwg.mxu0
      %v2104 = vadd.f32 %v1988, %v2098
      %v2105 = vadd.f32 %v1989, %v2101
      %s2106 = scalar_lea.vmem %s3, 64
      %v2107 = vld [vmem:[%s2106] sm:$0xf]
      %v2108 = vld [vmem:[%s2106 + $0x4] sm:$0x1]
      %v2111 = vunpack.c.l.b16 %v2107
      %v2112 = vunpack.c.l.b16 %v2108
      %v2113 = vpack.c.b16 %v2112, %v2111
      %v2115 = vsel %vm1189, %v2113, 0
      %2117 = vmatprep.subr.bf16.mxu0 0
      %2118 = vmatpush1.bf16.msra.mxu0 %v1178
      %2119 = vmatprep.subr.bf16.mxu0 0
      %2120 = vmatpush1.bf16.msra.mxu0 %v1179
      %2121 = vmatprep.subr.bf16.mxu0 0
      %2122 = vmatpush1.bf16.msra.mxu0 %v1180
      %2123 = vmatprep.subr.bf16.mxu0 0
      %2124 = vmatpush1.bf16.msra.mxu0 %v1181
      %2125 = vmatprep.subr.bf16.mxu0 0
      %2126 = vmatpush1.bf16.msra.mxu0 0
      %2127 = vmatprep.subr.bf16.mxu0 0
      %2128 = vmatpush1.bf16.msra.mxu0 0
      %2129 = vmatprep.subr.bf16.mxu0 0
      %2130 = vmatpush1.bf16.msra.mxu0 0
      %2131 = vmatprep.subr.bf16.mxu0 0
      %2132 = vmatpush1.bf16.msra.mxu0 0
      %2133 = vmatprep.subr.bf16.mxu0 0
      %2134 = vmatpush1.bf16.msra.mxu0 0
      %2135 = vmatprep.subr.bf16.mxu0 0
      %2136 = vmatpush1.bf16.msra.mxu0 0
      %2137 = vmatprep.subr.bf16.mxu0 0
      %2138 = vmatpush1.bf16.msra.mxu0 0
      %2139 = vmatprep.subr.bf16.mxu0 0
      %2140 = vmatpush1.bf16.msra.mxu0 0
      %2141 = vmatprep.subr.bf16.mxu0 0
      %2142 = vmatpush1.bf16.msra.mxu0 0
      %2143 = vmatprep.subr.bf16.mxu0 0
      %2144 = vmatpush1.bf16.msra.mxu0 0
      %2145 = vmatprep.subr.bf16.mxu0 0
      %2146 = vmatpush1.bf16.msra.mxu0 0
      %2147 = vmatprep.subr.bf16.mxu0 0
      %2148 = vmatpush1.bf16.msra.mxu0 0
      %2149 = vmatprep.mubr.bf16.mxu0 0
      %2150 = vmatmul.mubr.bf16.gmra.mrb[0].mxu0 %v2115
      %v2151 = vpop.f32.mrb[0].mxu0
      %v2152 = vadd.f32 0.0, %v2151
      %v2153 = vpop.f32.mrb[0].mxu0
      %v2154 = vpop.f32.mrb[0].mxu0
      %v2155 = vadd.f32 0.0, %v2154
      %v2156 = vpop.f32.mrb[0].mxu0
      %2157 = vdwg.mxu0
      %v2158 = vpack.c.bf16 %v2155, %v2152
      %s2159 = scalar_lea.vmem %s4, 128
      %v2160 = vld [vmem:[%s2159] sm:$0xf]
      %v2161 = vld [vmem:[%s2159 + $0x4] sm:$0xf]
      %v2162 = vld [vmem:[%s2159 + $0x8] sm:$0xf]
      %v2163 = vld [vmem:[%s2159 + $0xc] sm:$0xf]
      %v2168 = vunpack.c.l.b16 %v2160
      %v2169 = vunpack.c.l.b16 %v2161
      %v2170 = vunpack.c.l.b16 %v2162
      %v2171 = vunpack.c.l.b16 %v2163
      %v2172 = vpack.c.b16 %v2169, %v2168
      %v2173 = vpack.c.b16 %v2171, %v2170
      %v2177 = vsel %vm1309, %v2158, 0
      %2179 = vmatprep.subr.bf16.mxu0 0
      %2180 = vmatpush1.bf16.msra.mxu0 %v2172
      %2181 = vmatprep.subr.bf16.mxu0 0
      %2182 = vmatpush1.bf16.msra.mxu0 %v2173
      %2183 = vmatprep.subr.bf16.mxu0 0
      %2184 = vmatpush1.bf16.msra.mxu0 0
      %2185 = vmatprep.subr.bf16.mxu0 0
      %2186 = vmatpush1.bf16.msra.mxu0 0
      %2187 = vmatprep.subr.bf16.mxu0 0
      %2188 = vmatpush1.bf16.msra.mxu0 0
      %2189 = vmatprep.subr.bf16.mxu0 0
      %2190 = vmatpush1.bf16.msra.mxu0 0
      %2191 = vmatprep.subr.bf16.mxu0 0
      %2192 = vmatpush1.bf16.msra.mxu0 0
      %2193 = vmatprep.subr.bf16.mxu0 0
      %2194 = vmatpush1.bf16.msra.mxu0 0
      %2195 = vmatprep.subr.bf16.mxu0 0
      %2196 = vmatpush1.bf16.msra.mxu0 0
      %2197 = vmatprep.subr.bf16.mxu0 0
      %2198 = vmatpush1.bf16.msra.mxu0 0
      %2199 = vmatprep.subr.bf16.mxu0 0
      %2200 = vmatpush1.bf16.msra.mxu0 0
      %2201 = vmatprep.subr.bf16.mxu0 0
      %2202 = vmatpush1.bf16.msra.mxu0 0
      %2203 = vmatprep.subr.bf16.mxu0 0
      %2204 = vmatpush1.bf16.msra.mxu0 0
      %2205 = vmatprep.subr.bf16.mxu0 0
      %2206 = vmatpush1.bf16.msra.mxu0 0
      %2207 = vmatprep.subr.bf16.mxu0 0
      %2208 = vmatpush1.bf16.msra.mxu0 0
      %2209 = vmatprep.subr.bf16.mxu0 0
      %2210 = vmatpush1.bf16.msra.mxu0 0
      %2211 = vmatprep.mubr.bf16.mxu0 0
      %2212 = vmatmul.mubr.bf16.gmra.mrb[0].mxu0 %v2177
      %v2213 = vpop.f32.mrb[0].mxu0
      %v2214 = vadd.f32 0.0, %v2213
      %v2215 = vpop.f32.mrb[0].mxu0
      %v2216 = vpop.f32.mrb[0].mxu0
      %v2217 = vadd.f32 0.0, %v2216
      %v2218 = vpop.f32.mrb[0].mxu0
      %2219 = vdwg.mxu0
      %v2220 = vadd.f32 %v2104, %v2214
      %v2221 = vadd.f32 %v2105, %v2217
      %s2222 = scalar_lea.vmem %s3, 72
      %v2223 = vld [vmem:[%s2222] sm:$0xf]
      %v2224 = vld [vmem:[%s2222 + $0x4] sm:$0x1]
      %v2227 = vunpack.c.l.b16 %v2223
      %v2228 = vunpack.c.l.b16 %v2224
      %v2229 = vpack.c.b16 %v2228, %v2227
      %v2231 = vsel %vm1189, %v2229, 0
      %2233 = vmatprep.subr.bf16.mxu0 0
      %2234 = vmatpush1.bf16.msra.mxu0 %v1178
      %2235 = vmatprep.subr.bf16.mxu0 0
      %2236 = vmatpush1.bf16.msra.mxu0 %v1179
      %2237 = vmatprep.subr.bf16.mxu0 0
      %2238 = vmatpush1.bf16.msra.mxu0 %v1180
      %2239 = vmatprep.subr.bf16.mxu0 0
      %2240 = vmatpush1.bf16.msra.mxu0 %v1181
      %2241 = vmatprep.subr.bf16.mxu0 0
      %2242 = vmatpush1.bf16.msra.mxu0 0
      %2243 = vmatprep.subr.bf16.mxu0 0
      %2244 = vmatpush1.bf16.msra.mxu0 0
      %2245 = vmatprep.subr.bf16.mxu0 0
      %2246 = vmatpush1.bf16.msra.mxu0 0
      %2247 = vmatprep.subr.bf16.mxu0 0
      %2248 = vmatpush1.bf16.msra.mxu0 0
      %2249 = vmatprep.subr.bf16.mxu0 0
      %2250 = vmatpush1.bf16.msra.mxu0 0
      %2251 = vmatprep.subr.bf16.mxu0 0
      %2252 = vmatpush1.bf16.msra.mxu0 0
      %2253 = vmatprep.subr.bf16.mxu0 0
      %2254 = vmatpush1.bf16.msra.mxu0 0
      %2255 = vmatprep.subr.bf16.mxu0 0
      %2256 = vmatpush1.bf16.msra.mxu0 0
      %2257 = vmatprep.subr.bf16.mxu0 0
      %2258 = vmatpush1.bf16.msra.mxu0 0
      %2259 = vmatprep.subr.bf16.mxu0 0
      %2260 = vmatpush1.bf16.msra.mxu0 0
      %2261 = vmatprep.subr.bf16.mxu0 0
      %2262 = vmatpush1.bf16.msra.mxu0 0
      %2263 = vmatprep.subr.bf16.mxu0 0
      %2264 = vmatpush1.bf16.msra.mxu0 0
      %2265 = vmatprep.mubr.bf16.mxu0 0
      %2266 = vmatmul.mubr.bf16.gmra.mrb[0].mxu0 %v2231
      %v2267 = vpop.f32.mrb[0].mxu0
      %v2268 = vadd.f32 0.0, %v2267
      %v2269 = vpop.f32.mrb[0].mxu0
      %v2270 = vpop.f32.mrb[0].mxu0
      %v2271 = vadd.f32 0.0, %v2270
      %v2272 = vpop.f32.mrb[0].mxu0
      %2273 = vdwg.mxu0
      %v2274 = vpack.c.bf16 %v2271, %v2268
      %s2275 = scalar_lea.vmem %s4, 144
      %v2276 = vld [vmem:[%s2275] sm:$0xf]
      %v2277 = vld [vmem:[%s2275 + $0x4] sm:$0xf]
      %v2278 = vld [vmem:[%s2275 + $0x8] sm:$0xf]
      %v2279 = vld [vmem:[%s2275 + $0xc] sm:$0xf]
      %v2284 = vunpack.c.l.b16 %v2276
      %v2285 = vunpack.c.l.b16 %v2277
      %v2286 = vunpack.c.l.b16 %v2278
      %v2287 = vunpack.c.l.b16 %v2279
      %v2288 = vpack.c.b16 %v2285, %v2284
      %v2289 = vpack.c.b16 %v2287, %v2286
      %v2293 = vsel %vm1309, %v2274, 0
      %2295 = vmatprep.subr.bf16.mxu0 0
      %2296 = vmatpush1.bf16.msra.mxu0 %v2288
      %2297 = vmatprep.subr.bf16.mxu0 0
      %2298 = vmatpush1.bf16.msra.mxu0 %v2289
      %2299 = vmatprep.subr.bf16.mxu0 0
      %2300 = vmatpush1.bf16.msra.mxu0 0
      %2301 = vmatprep.subr.bf16.mxu0 0
      %2302 = vmatpush1.bf16.msra.mxu0 0
      %2303 = vmatprep.subr.bf16.mxu0 0
      %2304 = vmatpush1.bf16.msra.mxu0 0
      %2305 = vmatprep.subr.bf16.mxu0 0
      %2306 = vmatpush1.bf16.msra.mxu0 0
      %2307 = vmatprep.subr.bf16.mxu0 0
      %2308 = vmatpush1.bf16.msra.mxu0 0
      %2309 = vmatprep.subr.bf16.mxu0 0
      %2310 = vmatpush1.bf16.msra.mxu0 0
      %2311 = vmatprep.subr.bf16.mxu0 0
      %2312 = vmatpush1.bf16.msra.mxu0 0
      %2313 = vmatprep.subr.bf16.mxu0 0
      %2314 = vmatpush1.bf16.msra.mxu0 0
      %2315 = vmatprep.subr.bf16.mxu0 0
      %2316 = vmatpush1.bf16.msra.mxu0 0
      %2317 = vmatprep.subr.bf16.mxu0 0
      %2318 = vmatpush1.bf16.msra.mxu0 0
      %2319 = vmatprep.subr.bf16.mxu0 0
      %2320 = vmatpush1.bf16.msra.mxu0 0
      %2321 = vmatprep.subr.bf16.mxu0 0
      %2322 = vmatpush1.bf16.msra.mxu0 0
      %2323 = vmatprep.subr.bf16.mxu0 0
      %2324 = vmatpush1.bf16.msra.mxu0 0
      %2325 = vmatprep.subr.bf16.mxu0 0
      %2326 = vmatpush1.bf16.msra.mxu0 0
      %2327 = vmatprep.mubr.bf16.mxu0 0
      %2328 = vmatmul.mubr.bf16.gmra.mrb[0].mxu0 %v2293
      %v2329 = vpop.f32.mrb[0].mxu0
      %v2330 = vadd.f32 0.0, %v2329
      %v2331 = vpop.f32.mrb[0].mxu0
      %v2332 = vpop.f32.mrb[0].mxu0
      %v2333 = vadd.f32 0.0, %v2332
      %v2334 = vpop.f32.mrb[0].mxu0
      %2335 = vdwg.mxu0
      %v2336 = vadd.f32 %v2220, %v2330
      %v2337 = vadd.f32 %v2221, %v2333
      %s2338 = scalar_lea.vmem %s3, 80
      %v2339 = vld [vmem:[%s2338] sm:$0xf]
      %v2340 = vld [vmem:[%s2338 + $0x4] sm:$0x1]
      %v2343 = vunpack.c.l.b16 %v2339
      %v2344 = vunpack.c.l.b16 %v2340
      %v2345 = vpack.c.b16 %v2344, %v2343
      %v2347 = vsel %vm1189, %v2345, 0
      %2349 = vmatprep.subr.bf16.mxu0 0
      %2350 = vmatpush1.bf16.msra.mxu0 %v1178
      %2351 = vmatprep.subr.bf16.mxu0 0
      %2352 = vmatpush1.bf16.msra.mxu0 %v1179
      %2353 = vmatprep.subr.bf16.mxu0 0
      %2354 = vmatpush1.bf16.msra.mxu0 %v1180
      %2355 = vmatprep.subr.bf16.mxu0 0
      %2356 = vmatpush1.bf16.msra.mxu0 %v1181
      %2357 = vmatprep.subr.bf16.mxu0 0
      %2358 = vmatpush1.bf16.msra.mxu0 0
      %2359 = vmatprep.subr.bf16.mxu0 0
      %2360 = vmatpush1.bf16.msra.mxu0 0
      %2361 = vmatprep.subr.bf16.mxu0 0
      %2362 = vmatpush1.bf16.msra.mxu0 0
      %2363 = vmatprep.subr.bf16.mxu0 0
      %2364 = vmatpush1.bf16.msra.mxu0 0
      %2365 = vmatprep.subr.bf16.mxu0 0
      %2366 = vmatpush1.bf16.msra.mxu0 0
      %2367 = vmatprep.subr.bf16.mxu0 0
      %2368 = vmatpush1.bf16.msra.mxu0 0
      %2369 = vmatprep.subr.bf16.mxu0 0
      %2370 = vmatpush1.bf16.msra.mxu0 0
      %2371 = vmatprep.subr.bf16.mxu0 0
      %2372 = vmatpush1.bf16.msra.mxu0 0
      %2373 = vmatprep.subr.bf16.mxu0 0
      %2374 = vmatpush1.bf16.msra.mxu0 0
      %2375 = vmatprep.subr.bf16.mxu0 0
      %2376 = vmatpush1.bf16.msra.mxu0 0
      %2377 = vmatprep.subr.bf16.mxu0 0
      %2378 = vmatpush1.bf16.msra.mxu0 0
      %2379 = vmatprep.subr.bf16.mxu0 0
      %2380 = vmatpush1.bf16.msra.mxu0 0
      %2381 = vmatprep.mubr.bf16.mxu0 0
      %2382 = vmatmul.mubr.bf16.gmra.mrb[0].mxu0 %v2347
      %v2383 = vpop.f32.mrb[0].mxu0
      %v2384 = vadd.f32 0.0, %v2383
      %v2385 = vpop.f32.mrb[0].mxu0
      %v2386 = vpop.f32.mrb[0].mxu0
      %v2387 = vadd.f32 0.0, %v2386
      %v2388 = vpop.f32.mrb[0].mxu0
      %2389 = vdwg.mxu0
      %v2390 = vpack.c.bf16 %v2387, %v2384
      %s2391 = scalar_lea.vmem %s4, 160
      %v2392 = vld [vmem:[%s2391] sm:$0xf]
      %v2393 = vld [vmem:[%s2391 + $0x4] sm:$0xf]
      %v2394 = vld [vmem:[%s2391 + $0x8] sm:$0xf]
      %v2395 = vld [vmem:[%s2391 + $0xc] sm:$0xf]
      %v2400 = vunpack.c.l.b16 %v2392
      %v2401 = vunpack.c.l.b16 %v2393
      %v2402 = vunpack.c.l.b16 %v2394
      %v2403 = vunpack.c.l.b16 %v2395
      %v2404 = vpack.c.b16 %v2401, %v2400
      %v2405 = vpack.c.b16 %v2403, %v2402
      %v2409 = vsel %vm1309, %v2390, 0
      %2411 = vmatprep.subr.bf16.mxu0 0
      %2412 = vmatpush1.bf16.msra.mxu0 %v2404
      %2413 = vmatprep.subr.bf16.mxu0 0
      %2414 = vmatpush1.bf16.msra.mxu0 %v2405
      %2415 = vmatprep.subr.bf16.mxu0 0
      %2416 = vmatpush1.bf16.msra.mxu0 0
      %2417 = vmatprep.subr.bf16.mxu0 0
      %2418 = vmatpush1.bf16.msra.mxu0 0
      %2419 = vmatprep.subr.bf16.mxu0 0
      %2420 = vmatpush1.bf16.msra.mxu0 0
      %2421 = vmatprep.subr.bf16.mxu0 0
      %2422 = vmatpush1.bf16.msra.mxu0 0
      %2423 = vmatprep.subr.bf16.mxu0 0
      %2424 = vmatpush1.bf16.msra.mxu0 0
      %2425 = vmatprep.subr.bf16.mxu0 0
      %2426 = vmatpush1.bf16.msra.mxu0 0
      %2427 = vmatprep.subr.bf16.mxu0 0
      %2428 = vmatpush1.bf16.msra.mxu0 0
      %2429 = vmatprep.subr.bf16.mxu0 0
      %2430 = vmatpush1.bf16.msra.mxu0 0
      %2431 = vmatprep.subr.bf16.mxu0 0
      %2432 = vmatpush1.bf16.msra.mxu0 0
      %2433 = vmatprep.subr.bf16.mxu0 0
      %2434 = vmatpush1.bf16.msra.mxu0 0
      %2435 = vmatprep.subr.bf16.mxu0 0
      %2436 = vmatpush1.bf16.msra.mxu0 0
      %2437 = vmatprep.subr.bf16.mxu0 0
      %2438 = vmatpush1.bf16.msra.mxu0 0
      %2439 = vmatprep.subr.bf16.mxu0 0
      %2440 = vmatpush1.bf16.msra.mxu0 0
      %2441 = vmatprep.subr.bf16.mxu0 0
      %2442 = vmatpush1.bf16.msra.mxu0 0
      %2443 = vmatprep.mubr.bf16.mxu0 0
      %2444 = vmatmul.mubr.bf16.gmra.mrb[0].mxu0 %v2409
      %v2445 = vpop.f32.mrb[0].mxu0
      %v2446 = vadd.f32 0.0, %v2445
      %v2447 = vpop.f32.mrb[0].mxu0
      %v2448 = vpop.f32.mrb[0].mxu0
      %v2449 = vadd.f32 0.0, %v2448
      %v2450 = vpop.f32.mrb[0].mxu0
      %2451 = vdwg.mxu0
      %v2452 = vadd.f32 %v2336, %v2446
      %v2453 = vadd.f32 %v2337, %v2449
      %s2454 = scalar_lea.vmem %s3, 88
      %v2455 = vld [vmem:[%s2454] sm:$0xf]
      %v2456 = vld [vmem:[%s2454 + $0x4] sm:$0x1]
      %v2459 = vunpack.c.l.b16 %v2455
      %v2460 = vunpack.c.l.b16 %v2456
      %v2461 = vpack.c.b16 %v2460, %v2459
      %v2463 = vsel %vm1189, %v2461, 0
      %2465 = vmatprep.subr.bf16.mxu0 0
      %2466 = vmatpush1.bf16.msra.mxu0 %v1178
      %2467 = vmatprep.subr.bf16.mxu0 0
      %2468 = vmatpush1.bf16.msra.mxu0 %v1179
      %2469 = vmatprep.subr.bf16.mxu0 0
      %2470 = vmatpush1.bf16.msra.mxu0 %v1180
      %2471 = vmatprep.subr.bf16.mxu0 0
      %2472 = vmatpush1.bf16.msra.mxu0 %v1181
      %2473 = vmatprep.subr.bf16.mxu0 0
      %2474 = vmatpush1.bf16.msra.mxu0 0
      %2475 = vmatprep.subr.bf16.mxu0 0
      %2476 = vmatpush1.bf16.msra.mxu0 0
      %2477 = vmatprep.subr.bf16.mxu0 0
      %2478 = vmatpush1.bf16.msra.mxu0 0
      %2479 = vmatprep.subr.bf16.mxu0 0
      %2480 = vmatpush1.bf16.msra.mxu0 0
      %2481 = vmatprep.subr.bf16.mxu0 0
      %2482 = vmatpush1.bf16.msra.mxu0 0
      %2483 = vmatprep.subr.bf16.mxu0 0
      %2484 = vmatpush1.bf16.msra.mxu0 0
      %2485 = vmatprep.subr.bf16.mxu0 0
      %2486 = vmatpush1.bf16.msra.mxu0 0
      %2487 = vmatprep.subr.bf16.mxu0 0
      %2488 = vmatpush1.bf16.msra.mxu0 0
      %2489 = vmatprep.subr.bf16.mxu0 0
      %2490 = vmatpush1.bf16.msra.mxu0 0
      %2491 = vmatprep.subr.bf16.mxu0 0
      %2492 = vmatpush1.bf16.msra.mxu0 0
      %2493 = vmatprep.subr.bf16.mxu0 0
      %2494 = vmatpush1.bf16.msra.mxu0 0
      %2495 = vmatprep.subr.bf16.mxu0 0
      %2496 = vmatpush1.bf16.msra.mxu0 0
      %2497 = vmatprep.mubr.bf16.mxu0 0
      %2498 = vmatmul.mubr.bf16.gmra.mrb[0].mxu0 %v2463
      %v2499 = vpop.f32.mrb[0].mxu0
      %v2500 = vadd.f32 0.0, %v2499
      %v2501 = vpop.f32.mrb[0].mxu0
      %v2502 = vpop.f32.mrb[0].mxu0
      %v2503 = vadd.f32 0.0, %v2502
      %v2504 = vpop.f32.mrb[0].mxu0
      %2505 = vdwg.mxu0
      %v2506 = vpack.c.bf16 %v2503, %v2500
      %s2507 = scalar_lea.vmem %s4, 176
      %v2508 = vld [vmem:[%s2507] sm:$0xf]
      %v2509 = vld [vmem:[%s2507 + $0x4] sm:$0xf]
      %v2510 = vld [vmem:[%s2507 + $0x8] sm:$0xf]
      %v2511 = vld [vmem:[%s2507 + $0xc] sm:$0xf]
      %v2516 = vunpack.c.l.b16 %v2508
      %v2517 = vunpack.c.l.b16 %v2509
      %v2518 = vunpack.c.l.b16 %v2510
      %v2519 = vunpack.c.l.b16 %v2511
      %v2520 = vpack.c.b16 %v2517, %v2516
      %v2521 = vpack.c.b16 %v2519, %v2518
      %v2525 = vsel %vm1309, %v2506, 0
      %2527 = vmatprep.subr.bf16.mxu0 0
      %2528 = vmatpush1.bf16.msra.mxu0 %v2520
      %2529 = vmatprep.subr.bf16.mxu0 0
      %2530 = vmatpush1.bf16.msra.mxu0 %v2521
      %2531 = vmatprep.subr.bf16.mxu0 0
      %2532 = vmatpush1.bf16.msra.mxu0 0
      %2533 = vmatprep.subr.bf16.mxu0 0
      %2534 = vmatpush1.bf16.msra.mxu0 0
      %2535 = vmatprep.subr.bf16.mxu0 0
      %2536 = vmatpush1.bf16.msra.mxu0 0
      %2537 = vmatprep.subr.bf16.mxu0 0
      %2538 = vmatpush1.bf16.msra.mxu0 0
      %2539 = vmatprep.subr.bf16.mxu0 0
      %2540 = vmatpush1.bf16.msra.mxu0 0
      %2541 = vmatprep.subr.bf16.mxu0 0
      %2542 = vmatpush1.bf16.msra.mxu0 0
      %2543 = vmatprep.subr.bf16.mxu0 0
      %2544 = vmatpush1.bf16.msra.mxu0 0
      %2545 = vmatprep.subr.bf16.mxu0 0
      %2546 = vmatpush1.bf16.msra.mxu0 0
      %2547 = vmatprep.subr.bf16.mxu0 0
      %2548 = vmatpush1.bf16.msra.mxu0 0
      %2549 = vmatprep.subr.bf16.mxu0 0
      %2550 = vmatpush1.bf16.msra.mxu0 0
      %2551 = vmatprep.subr.bf16.mxu0 0
      %2552 = vmatpush1.bf16.msra.mxu0 0
      %2553 = vmatprep.subr.bf16.mxu0 0
      %2554 = vmatpush1.bf16.msra.mxu0 0
      %2555 = vmatprep.subr.bf16.mxu0 0
      %2556 = vmatpush1.bf16.msra.mxu0 0
      %2557 = vmatprep.subr.bf16.mxu0 0
      %2558 = vmatpush1.bf16.msra.mxu0 0
      %2559 = vmatprep.mubr.bf16.mxu0 0
      %2560 = vmatmul.mubr.bf16.gmra.mrb[0].mxu0 %v2525
      %v2561 = vpop.f32.mrb[0].mxu0
      %v2562 = vadd.f32 0.0, %v2561
      %v2563 = vpop.f32.mrb[0].mxu0
      %v2564 = vpop.f32.mrb[0].mxu0
      %v2565 = vadd.f32 0.0, %v2564
      %v2566 = vpop.f32.mrb[0].mxu0
      %2567 = vdwg.mxu0
      %v2568 = vadd.f32 %v2452, %v2562
      %v2569 = vadd.f32 %v2453, %v2565
      %s2570 = scalar_lea.vmem %s3, 96
      %v2571 = vld [vmem:[%s2570] sm:$0xf]
      %v2572 = vld [vmem:[%s2570 + $0x4] sm:$0x1]
      %v2575 = vunpack.c.l.b16 %v2571
      %v2576 = vunpack.c.l.b16 %v2572
      %v2577 = vpack.c.b16 %v2576, %v2575
      %v2579 = vsel %vm1189, %v2577, 0
      %2581 = vmatprep.subr.bf16.mxu0 0
      %2582 = vmatpush1.bf16.msra.mxu0 %v1178
      %2583 = vmatprep.subr.bf16.mxu0 0
      %2584 = vmatpush1.bf16.msra.mxu0 %v1179
      %2585 = vmatprep.subr.bf16.mxu0 0
      %2586 = vmatpush1.bf16.msra.mxu0 %v1180
      %2587 = vmatprep.subr.bf16.mxu0 0
      %2588 = vmatpush1.bf16.msra.mxu0 %v1181
      %2589 = vmatprep.subr.bf16.mxu0 0
      %2590 = vmatpush1.bf16.msra.mxu0 0
      %2591 = vmatprep.subr.bf16.mxu0 0
      %2592 = vmatpush1.bf16.msra.mxu0 0
      %2593 = vmatprep.subr.bf16.mxu0 0
      %2594 = vmatpush1.bf16.msra.mxu0 0
      %2595 = vmatprep.subr.bf16.mxu0 0
      %2596 = vmatpush1.bf16.msra.mxu0 0
      %2597 = vmatprep.subr.bf16.mxu0 0
      %2598 = vmatpush1.bf16.msra.mxu0 0
      %2599 = vmatprep.subr.bf16.mxu0 0
      %2600 = vmatpush1.bf16.msra.mxu0 0
      %2601 = vmatprep.subr.bf16.mxu0 0
      %2602 = vmatpush1.bf16.msra.mxu0 0
      %2603 = vmatprep.subr.bf16.mxu0 0
      %2604 = vmatpush1.bf16.msra.mxu0 0
      %2605 = vmatprep.subr.bf16.mxu0 0
      %2606 = vmatpush1.bf16.msra.mxu0 0
      %2607 = vmatprep.subr.bf16.mxu0 0
      %2608 = vmatpush1.bf16.msra.mxu0 0
      %2609 = vmatprep.subr.bf16.mxu0 0
      %2610 = vmatpush1.bf16.msra.mxu0 0
      %2611 = vmatprep.subr.bf16.mxu0 0
      %2612 = vmatpush1.bf16.msra.mxu0 0
      %2613 = vmatprep.mubr.bf16.mxu0 0
      %2614 = vmatmul.mubr.bf16.gmra.mrb[0].mxu0 %v2579
      %v2615 = vpop.f32.mrb[0].mxu0
      %v2616 = vadd.f32 0.0, %v2615
      %v2617 = vpop.f32.mrb[0].mxu0
      %v2618 = vpop.f32.mrb[0].mxu0
      %v2619 = vadd.f32 0.0, %v2618
      %v2620 = vpop.f32.mrb[0].mxu0
      %2621 = vdwg.mxu0
      %v2622 = vpack.c.bf16 %v2619, %v2616
      %s2623 = scalar_lea.vmem %s4, 192
      %v2624 = vld [vmem:[%s2623] sm:$0xf]
      %v2625 = vld [vmem:[%s2623 + $0x4] sm:$0xf]
      %v2626 = vld [vmem:[%s2623 + $0x8] sm:$0xf]
      %v2627 = vld [vmem:[%s2623 + $0xc] sm:$0xf]
      %v2632 = vunpack.c.l.b16 %v2624
      %v2633 = vunpack.c.l.b16 %v2625
      %v2634 = vunpack.c.l.b16 %v2626
      %v2635 = vunpack.c.l.b16 %v2627
      %v2636 = vpack.c.b16 %v2633, %v2632
      %v2637 = vpack.c.b16 %v2635, %v2634
      %v2641 = vsel %vm1309, %v2622, 0
      %2643 = vmatprep.subr.bf16.mxu0 0
      %2644 = vmatpush1.bf16.msra.mxu0 %v2636
      %2645 = vmatprep.subr.bf16.mxu0 0
      %2646 = vmatpush1.bf16.msra.mxu0 %v2637
      %2647 = vmatprep.subr.bf16.mxu0 0
      %2648 = vmatpush1.bf16.msra.mxu0 0
      %2649 = vmatprep.subr.bf16.mxu0 0
      %2650 = vmatpush1.bf16.msra.mxu0 0
      %2651 = vmatprep.subr.bf16.mxu0 0
      %2652 = vmatpush1.bf16.msra.mxu0 0
      %2653 = vmatprep.subr.bf16.mxu0 0
      %2654 = vmatpush1.bf16.msra.mxu0 0
      %2655 = vmatprep.subr.bf16.mxu0 0
      %2656 = vmatpush1.bf16.msra.mxu0 0
      %2657 = vmatprep.subr.bf16.mxu0 0
      %2658 = vmatpush1.bf16.msra.mxu0 0
      %2659 = vmatprep.subr.bf16.mxu0 0
      %2660 = vmatpush1.bf16.msra.mxu0 0
      %2661 = vmatprep.subr.bf16.mxu0 0
      %2662 = vmatpush1.bf16.msra.mxu0 0
      %2663 = vmatprep.subr.bf16.mxu0 0
      %2664 = vmatpush1.bf16.msra.mxu0 0
      %2665 = vmatprep.subr.bf16.mxu0 0
      %2666 = vmatpush1.bf16.msra.mxu0 0
      %2667 = vmatprep.subr.bf16.mxu0 0
      %2668 = vmatpush1.bf16.msra.mxu0 0
      %2669 = vmatprep.subr.bf16.mxu0 0
      %2670 = vmatpush1.bf16.msra.mxu0 0
      %2671 = vmatprep.subr.bf16.mxu0 0
      %2672 = vmatpush1.bf16.msra.mxu0 0
      %2673 = vmatprep.subr.bf16.mxu0 0
      %2674 = vmatpush1.bf16.msra.mxu0 0
      %2675 = vmatprep.mubr.bf16.mxu0 0
      %2676 = vmatmul.mubr.bf16.gmra.mrb[0].mxu0 %v2641
      %v2677 = vpop.f32.mrb[0].mxu0
      %v2678 = vadd.f32 0.0, %v2677
      %v2679 = vpop.f32.mrb[0].mxu0
      %v2680 = vpop.f32.mrb[0].mxu0
      %v2681 = vadd.f32 0.0, %v2680
      %v2682 = vpop.f32.mrb[0].mxu0
      %2683 = vdwg.mxu0
      %v2684 = vadd.f32 %v2568, %v2678
      %v2685 = vadd.f32 %v2569, %v2681
      %s2686 = scalar_lea.vmem %s3, 104
      %v2687 = vld [vmem:[%s2686] sm:$0xf]
      %v2688 = vld [vmem:[%s2686 + $0x4] sm:$0x1]
      %v2691 = vunpack.c.l.b16 %v2687
      %v2692 = vunpack.c.l.b16 %v2688
      %v2693 = vpack.c.b16 %v2692, %v2691
      %v2695 = vsel %vm1189, %v2693, 0
      %2697 = vmatprep.subr.bf16.mxu0 0
      %2698 = vmatpush1.bf16.msra.mxu0 %v1178
      %2699 = vmatprep.subr.bf16.mxu0 0
      %2700 = vmatpush1.bf16.msra.mxu0 %v1179
      %2701 = vmatprep.subr.bf16.mxu0 0
      %2702 = vmatpush1.bf16.msra.mxu0 %v1180
      %2703 = vmatprep.subr.bf16.mxu0 0
      %2704 = vmatpush1.bf16.msra.mxu0 %v1181
      %2705 = vmatprep.subr.bf16.mxu0 0
      %2706 = vmatpush1.bf16.msra.mxu0 0
      %2707 = vmatprep.subr.bf16.mxu0 0
      %2708 = vmatpush1.bf16.msra.mxu0 0
      %2709 = vmatprep.subr.bf16.mxu0 0
      %2710 = vmatpush1.bf16.msra.mxu0 0
      %2711 = vmatprep.subr.bf16.mxu0 0
      %2712 = vmatpush1.bf16.msra.mxu0 0
      %2713 = vmatprep.subr.bf16.mxu0 0
      %2714 = vmatpush1.bf16.msra.mxu0 0
      %2715 = vmatprep.subr.bf16.mxu0 0
      %2716 = vmatpush1.bf16.msra.mxu0 0
      %2717 = vmatprep.subr.bf16.mxu0 0
      %2718 = vmatpush1.bf16.msra.mxu0 0
      %2719 = vmatprep.subr.bf16.mxu0 0
      %2720 = vmatpush1.bf16.msra.mxu0 0
      %2721 = vmatprep.subr.bf16.mxu0 0
      %2722 = vmatpush1.bf16.msra.mxu0 0
      %2723 = vmatprep.subr.bf16.mxu0 0
      %2724 = vmatpush1.bf16.msra.mxu0 0
      %2725 = vmatprep.subr.bf16.mxu0 0
      %2726 = vmatpush1.bf16.msra.mxu0 0
      %2727 = vmatprep.subr.bf16.mxu0 0
      %2728 = vmatpush1.bf16.msra.mxu0 0
      %2729 = vmatprep.mubr.bf16.mxu0 0
      %2730 = vmatmul.mubr.bf16.gmra.mrb[0].mxu0 %v2695
      %v2731 = vpop.f32.mrb[0].mxu0
      %v2732 = vadd.f32 0.0, %v2731
      %v2733 = vpop.f32.mrb[0].mxu0
      %v2734 = vpop.f32.mrb[0].mxu0
      %v2735 = vadd.f32 0.0, %v2734
      %v2736 = vpop.f32.mrb[0].mxu0
      %2737 = vdwg.mxu0
      %v2738 = vpack.c.bf16 %v2735, %v2732
      %s2739 = scalar_lea.vmem %s4, 208
      %v2740 = vld [vmem:[%s2739] sm:$0xf]
      %v2741 = vld [vmem:[%s2739 + $0x4] sm:$0xf]
      %v2742 = vld [vmem:[%s2739 + $0x8] sm:$0xf]
      %v2743 = vld [vmem:[%s2739 + $0xc] sm:$0xf]
      %v2748 = vunpack.c.l.b16 %v2740
      %v2749 = vunpack.c.l.b16 %v2741
      %v2750 = vunpack.c.l.b16 %v2742
      %v2751 = vunpack.c.l.b16 %v2743
      %v2752 = vpack.c.b16 %v2749, %v2748
      %v2753 = vpack.c.b16 %v2751, %v2750
      %v2757 = vsel %vm1309, %v2738, 0
      %2759 = vmatprep.subr.bf16.mxu0 0
      %2760 = vmatpush1.bf16.msra.mxu0 %v2752
      %2761 = vmatprep.subr.bf16.mxu0 0
      %2762 = vmatpush1.bf16.msra.mxu0 %v2753
      %2763 = vmatprep.subr.bf16.mxu0 0
      %2764 = vmatpush1.bf16.msra.mxu0 0
      %2765 = vmatprep.subr.bf16.mxu0 0
      %2766 = vmatpush1.bf16.msra.mxu0 0
      %2767 = vmatprep.subr.bf16.mxu0 0
      %2768 = vmatpush1.bf16.msra.mxu0 0
      %2769 = vmatprep.subr.bf16.mxu0 0
      %2770 = vmatpush1.bf16.msra.mxu0 0
      %2771 = vmatprep.subr.bf16.mxu0 0
      %2772 = vmatpush1.bf16.msra.mxu0 0
      %2773 = vmatprep.subr.bf16.mxu0 0
      %2774 = vmatpush1.bf16.msra.mxu0 0
      %2775 = vmatprep.subr.bf16.mxu0 0
      %2776 = vmatpush1.bf16.msra.mxu0 0
      %2777 = vmatprep.subr.bf16.mxu0 0
      %2778 = vmatpush1.bf16.msra.mxu0 0
      %2779 = vmatprep.subr.bf16.mxu0 0
      %2780 = vmatpush1.bf16.msra.mxu0 0
      %2781 = vmatprep.subr.bf16.mxu0 0
      %2782 = vmatpush1.bf16.msra.mxu0 0
      %2783 = vmatprep.subr.bf16.mxu0 0
      %2784 = vmatpush1.bf16.msra.mxu0 0
      %2785 = vmatprep.subr.bf16.mxu0 0
      %2786 = vmatpush1.bf16.msra.mxu0 0
      %2787 = vmatprep.subr.bf16.mxu0 0
      %2788 = vmatpush1.bf16.msra.mxu0 0
      %2789 = vmatprep.subr.bf16.mxu0 0
      %2790 = vmatpush1.bf16.msra.mxu0 0
      %2791 = vmatprep.mubr.bf16.mxu0 0
      %2792 = vmatmul.mubr.bf16.gmra.mrb[0].mxu0 %v2757
      %v2793 = vpop.f32.mrb[0].mxu0
      %v2794 = vadd.f32 0.0, %v2793
      %v2795 = vpop.f32.mrb[0].mxu0
      %v2796 = vpop.f32.mrb[0].mxu0
      %v2797 = vadd.f32 0.0, %v2796
      %v2798 = vpop.f32.mrb[0].mxu0
      %2799 = vdwg.mxu0
      %v2800 = vadd.f32 %v2684, %v2794
      %v2801 = vadd.f32 %v2685, %v2797
      %s2802 = scalar_lea.vmem %s3, 112
      %v2803 = vld [vmem:[%s2802] sm:$0xf]
      %v2804 = vld [vmem:[%s2802 + $0x4] sm:$0x1]
      %v2807 = vunpack.c.l.b16 %v2803
      %v2808 = vunpack.c.l.b16 %v2804
      %v2809 = vpack.c.b16 %v2808, %v2807
      %v2811 = vsel %vm1189, %v2809, 0
      %2813 = vmatprep.subr.bf16.mxu0 0
      %2814 = vmatpush1.bf16.msra.mxu0 %v1178
      %2815 = vmatprep.subr.bf16.mxu0 0
      %2816 = vmatpush1.bf16.msra.mxu0 %v1179
      %2817 = vmatprep.subr.bf16.mxu0 0
      %2818 = vmatpush1.bf16.msra.mxu0 %v1180
      %2819 = vmatprep.subr.bf16.mxu0 0
      %2820 = vmatpush1.bf16.msra.mxu0 %v1181
      %2821 = vmatprep.subr.bf16.mxu0 0
      %2822 = vmatpush1.bf16.msra.mxu0 0
      %2823 = vmatprep.subr.bf16.mxu0 0
      %2824 = vmatpush1.bf16.msra.mxu0 0
      %2825 = vmatprep.subr.bf16.mxu0 0
      %2826 = vmatpush1.bf16.msra.mxu0 0
      %2827 = vmatprep.subr.bf16.mxu0 0
      %2828 = vmatpush1.bf16.msra.mxu0 0
      %2829 = vmatprep.subr.bf16.mxu0 0
      %2830 = vmatpush1.bf16.msra.mxu0 0
      %2831 = vmatprep.subr.bf16.mxu0 0
      %2832 = vmatpush1.bf16.msra.mxu0 0
      %2833 = vmatprep.subr.bf16.mxu0 0
      %2834 = vmatpush1.bf16.msra.mxu0 0
      %2835 = vmatprep.subr.bf16.mxu0 0
      %2836 = vmatpush1.bf16.msra.mxu0 0
      %2837 = vmatprep.subr.bf16.mxu0 0
      %2838 = vmatpush1.bf16.msra.mxu0 0
      %2839 = vmatprep.subr.bf16.mxu0 0
      %2840 = vmatpush1.bf16.msra.mxu0 0
      %2841 = vmatprep.subr.bf16.mxu0 0
      %2842 = vmatpush1.bf16.msra.mxu0 0
      %2843 = vmatprep.subr.bf16.mxu0 0
      %2844 = vmatpush1.bf16.msra.mxu0 0
      %2845 = vmatprep.mubr.bf16.mxu0 0
      %2846 = vmatmul.mubr.bf16.gmra.mrb[0].mxu0 %v2811
      %v2847 = vpop.f32.mrb[0].mxu0
      %v2848 = vadd.f32 0.0, %v2847
      %v2849 = vpop.f32.mrb[0].mxu0
      %v2850 = vpop.f32.mrb[0].mxu0
      %v2851 = vadd.f32 0.0, %v2850
      %v2852 = vpop.f32.mrb[0].mxu0
      %2853 = vdwg.mxu0
      %v2854 = vpack.c.bf16 %v2851, %v2848
      %s2855 = scalar_lea.vmem %s4, 224
      %v2856 = vld [vmem:[%s2855] sm:$0xf]
      %v2857 = vld [vmem:[%s2855 + $0x4] sm:$0xf]
      %v2858 = vld [vmem:[%s2855 + $0x8] sm:$0xf]
      %v2859 = vld [vmem:[%s2855 + $0xc] sm:$0xf]
      %v2864 = vunpack.c.l.b16 %v2856
      %v2865 = vunpack.c.l.b16 %v2857
      %v2866 = vunpack.c.l.b16 %v2858
      %v2867 = vunpack.c.l.b16 %v2859
      %v2868 = vpack.c.b16 %v2865, %v2864
      %v2869 = vpack.c.b16 %v2867, %v2866
      %v2873 = vsel %vm1309, %v2854, 0
      %2875 = vmatprep.subr.bf16.mxu0 0
      %2876 = vmatpush1.bf16.msra.mxu0 %v2868
      %2877 = vmatprep.subr.bf16.mxu0 0
      %2878 = vmatpush1.bf16.msra.mxu0 %v2869
      %2879 = vmatprep.subr.bf16.mxu0 0
      %2880 = vmatpush1.bf16.msra.mxu0 0
      %2881 = vmatprep.subr.bf16.mxu0 0
      %2882 = vmatpush1.bf16.msra.mxu0 0
      %2883 = vmatprep.subr.bf16.mxu0 0
      %2884 = vmatpush1.bf16.msra.mxu0 0
      %2885 = vmatprep.subr.bf16.mxu0 0
      %2886 = vmatpush1.bf16.msra.mxu0 0
      %2887 = vmatprep.subr.bf16.mxu0 0
      %2888 = vmatpush1.bf16.msra.mxu0 0
      %2889 = vmatprep.subr.bf16.mxu0 0
      %2890 = vmatpush1.bf16.msra.mxu0 0
      %2891 = vmatprep.subr.bf16.mxu0 0
      %2892 = vmatpush1.bf16.msra.mxu0 0
      %2893 = vmatprep.subr.bf16.mxu0 0
      %2894 = vmatpush1.bf16.msra.mxu0 0
      %2895 = vmatprep.subr.bf16.mxu0 0
      %2896 = vmatpush1.bf16.msra.mxu0 0
      %2897 = vmatprep.subr.bf16.mxu0 0
      %2898 = vmatpush1.bf16.msra.mxu0 0
      %2899 = vmatprep.subr.bf16.mxu0 0
      %2900 = vmatpush1.bf16.msra.mxu0 0
      %2901 = vmatprep.subr.bf16.mxu0 0
      %2902 = vmatpush1.bf16.msra.mxu0 0
      %2903 = vmatprep.subr.bf16.mxu0 0
      %2904 = vmatpush1.bf16.msra.mxu0 0
      %2905 = vmatprep.subr.bf16.mxu0 0
      %2906 = vmatpush1.bf16.msra.mxu0 0
      %2907 = vmatprep.mubr.bf16.mxu0 0
      %2908 = vmatmul.mubr.bf16.gmra.mrb[0].mxu0 %v2873
      %v2909 = vpop.f32.mrb[0].mxu0
      %v2910 = vadd.f32 0.0, %v2909
      %v2911 = vpop.f32.mrb[0].mxu0
      %v2912 = vpop.f32.mrb[0].mxu0
      %v2913 = vadd.f32 0.0, %v2912
      %v2914 = vpop.f32.mrb[0].mxu0
      %2915 = vdwg.mxu0
      %v2916 = vadd.f32 %v2800, %v2910
      %v2917 = vadd.f32 %v2801, %v2913
      %s2918 = scalar_lea.vmem %s3, 120
      %v2919 = vld [vmem:[%s2918] sm:$0xf]
      %v2920 = vld [vmem:[%s2918 + $0x4] sm:$0x1]
      %v2923 = vunpack.c.l.b16 %v2919
      %v2924 = vunpack.c.l.b16 %v2920
      %v2925 = vpack.c.b16 %v2924, %v2923
      %v2927 = vsel %vm1189, %v2925, 0
      %2929 = vmatprep.subr.bf16.mxu0 0
      %2930 = vmatpush1.bf16.msra.mxu0 %v1178
      %2931 = vmatprep.subr.bf16.mxu0 0
      %2932 = vmatpush1.bf16.msra.mxu0 %v1179
      %2933 = vmatprep.subr.bf16.mxu0 0
      %2934 = vmatpush1.bf16.msra.mxu0 %v1180
      %2935 = vmatprep.subr.bf16.mxu0 0
      %2936 = vmatpush1.bf16.msra.mxu0 %v1181
      %2937 = vmatprep.subr.bf16.mxu0 0
      %2938 = vmatpush1.bf16.msra.mxu0 0
      %2939 = vmatprep.subr.bf16.mxu0 0
      %2940 = vmatpush1.bf16.msra.mxu0 0
      %2941 = vmatprep.subr.bf16.mxu0 0
      %2942 = vmatpush1.bf16.msra.mxu0 0
      %2943 = vmatprep.subr.bf16.mxu0 0
      %2944 = vmatpush1.bf16.msra.mxu0 0
      %2945 = vmatprep.subr.bf16.mxu0 0
      %2946 = vmatpush1.bf16.msra.mxu0 0
      %2947 = vmatprep.subr.bf16.mxu0 0
      %2948 = vmatpush1.bf16.msra.mxu0 0
      %2949 = vmatprep.subr.bf16.mxu0 0
      %2950 = vmatpush1.bf16.msra.mxu0 0
      %2951 = vmatprep.subr.bf16.mxu0 0
      %2952 = vmatpush1.bf16.msra.mxu0 0
      %2953 = vmatprep.subr.bf16.mxu0 0
      %2954 = vmatpush1.bf16.msra.mxu0 0
      %2955 = vmatprep.subr.bf16.mxu0 0
      %2956 = vmatpush1.bf16.msra.mxu0 0
      %2957 = vmatprep.subr.bf16.mxu0 0
      %2958 = vmatpush1.bf16.msra.mxu0 0
      %2959 = vmatprep.subr.bf16.mxu0 0
      %2960 = vmatpush1.bf16.msra.mxu0 0
      %2961 = vmatprep.mubr.bf16.mxu0 0
      %2962 = vmatmul.mubr.bf16.gmra.mrb[0].mxu0 %v2927
      %v2963 = vpop.f32.mrb[0].mxu0
      %v2964 = vadd.f32 0.0, %v2963
      %v2965 = vpop.f32.mrb[0].mxu0
      %v2966 = vpop.f32.mrb[0].mxu0
      %v2967 = vadd.f32 0.0, %v2966
      %v2968 = vpop.f32.mrb[0].mxu0
      %2969 = vdwg.mxu0
      %v2970 = vpack.c.bf16 %v2967, %v2964
      %s2971 = scalar_lea.vmem %s4, 240
      %v2972 = vld [vmem:[%s2971] sm:$0xf]
      %v2973 = vld [vmem:[%s2971 + $0x4] sm:$0xf]
      %v2974 = vld [vmem:[%s2971 + $0x8] sm:$0xf]
      %v2975 = vld [vmem:[%s2971 + $0xc] sm:$0xf]
      %v2980 = vunpack.c.l.b16 %v2972
      %v2981 = vunpack.c.l.b16 %v2973
      %v2982 = vunpack.c.l.b16 %v2974
      %v2983 = vunpack.c.l.b16 %v2975
      %v2984 = vpack.c.b16 %v2981, %v2980
      %v2985 = vpack.c.b16 %v2983, %v2982
      %v2989 = vsel %vm1309, %v2970, 0
      %2991 = vmatprep.subr.bf16.mxu0 0
      %2992 = vmatpush1.bf16.msra.mxu0 %v2984
      %2993 = vmatprep.subr.bf16.mxu0 0
      %2994 = vmatpush1.bf16.msra.mxu0 %v2985
      %2995 = vmatprep.subr.bf16.mxu0 0
      %2996 = vmatpush1.bf16.msra.mxu0 0
      %2997 = vmatprep.subr.bf16.mxu0 0
      %2998 = vmatpush1.bf16.msra.mxu0 0
      %2999 = vmatprep.subr.bf16.mxu0 0
      %3000 = vmatpush1.bf16.msra.mxu0 0
      %3001 = vmatprep.subr.bf16.mxu0 0
      %3002 = vmatpush1.bf16.msra.mxu0 0
      %3003 = vmatprep.subr.bf16.mxu0 0
      %3004 = vmatpush1.bf16.msra.mxu0 0
      %3005 = vmatprep.subr.bf16.mxu0 0
      %3006 = vmatpush1.bf16.msra.mxu0 0
      %3007 = vmatprep.subr.bf16.mxu0 0
      %3008 = vmatpush1.bf16.msra.mxu0 0
      %3009 = vmatprep.subr.bf16.mxu0 0
      %3010 = vmatpush1.bf16.msra.mxu0 0
      %3011 = vmatprep.subr.bf16.mxu0 0
      %3012 = vmatpush1.bf16.msra.mxu0 0
      %3013 = vmatprep.subr.bf16.mxu0 0
      %3014 = vmatpush1.bf16.msra.mxu0 0
      %3015 = vmatprep.subr.bf16.mxu0 0
      %3016 = vmatpush1.bf16.msra.mxu0 0
      %3017 = vmatprep.subr.bf16.mxu0 0
      %3018 = vmatpush1.bf16.msra.mxu0 0
      %3019 = vmatprep.subr.bf16.mxu0 0
      %3020 = vmatpush1.bf16.msra.mxu0 0
      %3021 = vmatprep.subr.bf16.mxu0 0
      %3022 = vmatpush1.bf16.msra.mxu0 0
      %3023 = vmatprep.mubr.bf16.mxu0 0
      %3024 = vmatmul.mubr.bf16.gmra.mrb[0].mxu0 %v2989
      %v3025 = vpop.f32.mrb[0].mxu0
      %v3026 = vadd.f32 0.0, %v3025
      %v3027 = vpop.f32.mrb[0].mxu0
      %v3028 = vpop.f32.mrb[0].mxu0
      %v3029 = vadd.f32 0.0, %v3028
      %v3030 = vpop.f32.mrb[0].mxu0
      %3031 = vdwg.mxu0
      %v3032 = vadd.f32 %v2916, %v3026
      %v3033 = vadd.f32 %v2917, %v3029
      %v3034 = vld [vmem:[%s5] sm:$0x1]
      %v3036 = vlaneseq
      %v3037 = vshrl.u32 %v3036, 7
      %v3038 = vsub.s32 0, %v3037
      %v3039 = vrot.slane %v3034, %v3038
      %v3041 = vadd.f32 %v3032, %v3039
      %v3042 = vadd.f32 %v3033, %v3039
      %v3043 = vmax.f32 %v3041, 0.0
      %v3044 = vmax.f32 %v3042, 0.0
      %v3045 = vpack.c.bf16 %v3044, %v3043
      %v3046 = vld [vmem:[%s6] sm:$0x1]
      %vm3047 = vcmask 72704
      %v3049 = vsel %vm3047, %v3046, 0
      %vm3051 = vcmask 1043456
      %vm3052 = vcmask 1044480
      %v3053 = vsel %vm3051, 4294967295, 65535
      %v3054 = vsel %vm3052, %v3053, 0
      %v3056 = vand.u32 %v3045, %v3054
      %3058 = vmatprep.subr.bf16.mxu0 0
      %3059 = vmatpush1.bf16.msra.mxu0 %v3056
      %3060 = vmatprep.subr.bf16.mxu0 0
      %3061 = vmatpush1.bf16.msra.mxu0 0
      %3062 = vmatprep.subr.bf16.mxu0 0
      %3063 = vmatpush1.bf16.msra.mxu0 0
      %3064 = vmatprep.subr.bf16.mxu0 0
      %3065 = vmatpush1.bf16.msra.mxu0 0
      %3066 = vmatprep.subr.bf16.mxu0 0
      %3067 = vmatpush1.bf16.msra.mxu0 0
      %3068 = vmatprep.subr.bf16.mxu0 0
      %3069 = vmatpush1.bf16.msra.mxu0 0
      %3070 = vmatprep.subr.bf16.mxu0 0
      %3071 = vmatpush1.bf16.msra.mxu0 0
      %3072 = vmatprep.subr.bf16.mxu0 0
      %3073 = vmatpush1.bf16.msra.mxu0 0
      %3074 = vmatprep.subr.bf16.mxu0 0
      %3075 = vmatpush1.bf16.msra.mxu0 0
      %3076 = vmatprep.subr.bf16.mxu0 0
      %3077 = vmatpush1.bf16.msra.mxu0 0
      %3078 = vmatprep.subr.bf16.mxu0 0
      %3079 = vmatpush1.bf16.msra.mxu0 0
      %3080 = vmatprep.subr.bf16.mxu0 0
      %3081 = vmatpush1.bf16.msra.mxu0 0
      %3082 = vmatprep.subr.bf16.mxu0 0
      %3083 = vmatpush1.bf16.msra.mxu0 0
      %3084 = vmatprep.subr.bf16.mxu0 0
      %3085 = vmatpush1.bf16.msra.mxu0 0
      %3086 = vmatprep.subr.bf16.mxu0 0
      %3087 = vmatpush1.bf16.msra.mxu0 0
      %3088 = vmatprep.subr.bf16.mxu0 0
      %3089 = vmatpush1.bf16.msra.mxu0 0
      %3090 = vmatprep.mubr.bf16.mxu0 0
      %3091 = vmatmul.mubr.bf16.gmra.mrb[0].mxu0 %v3049
      %v3092 = vpop.f32.mrb[0].mxu0
      %v3093 = vadd.f32 0.0, %v3092
      %v3094 = vpop.f32.mrb[0].mxu0
      %v3095 = vpop.f32.mrb[0].mxu0
      %v3096 = vpop.f32.mrb[0].mxu0
      %3097 = vdwg.mxu0
      %v3098 = vpack.c.bf16 %v3093, %v3093
      %v3099 = vld [vmem:[%s7] sm:$0xf]
      %v3100 = vld [vmem:[%s7 + $0x4] sm:$0xf]
      %v3101 = vld [vmem:[%s7 + $0x8] sm:$0xf]
      %v3102 = vld [vmem:[%s7 + $0xc] sm:$0xf]
      %v3103 = vld [vmem:[%s7 + $0x10] sm:$0xf]
      %v3104 = vld [vmem:[%s7 + $0x14] sm:$0xf]
      %v3105 = vld [vmem:[%s7 + $0x18] sm:$0xf]
      %v3106 = vld [vmem:[%s7 + $0x1c] sm:$0xf]
      %s3107 = scalar_lea.vmem %s6, 1
      %v3108 = vld [vmem:[%s3107] sm:$0x1]
      %v3110 = vsel %vm3047, %v3108, 0
      %3112 = vmatprep.subr.bf16.mxu0 0
      %3113 = vmatpush1.bf16.msra.mxu0 %v3056
      %3114 = vmatprep.subr.bf16.mxu0 0
      %3115 = vmatpush1.bf16.msra.mxu0 0
      %3116 = vmatprep.subr.bf16.mxu0 0
      %3117 = vmatpush1.bf16.msra.mxu0 0
      %3118 = vmatprep.subr.bf16.mxu0 0
      %3119 = vmatpush1.bf16.msra.mxu0 0
      %3120 = vmatprep.subr.bf16.mxu0 0
      %3121 = vmatpush1.bf16.msra.mxu0 0
      %3122 = vmatprep.subr.bf16.mxu0 0
      %3123 = vmatpush1.bf16.msra.mxu0 0
      %3124 = vmatprep.subr.bf16.mxu0 0
      %3125 = vmatpush1.bf16.msra.mxu0 0
      %3126 = vmatprep.subr.bf16.mxu0 0
      %3127 = vmatpush1.bf16.msra.mxu0 0
      %3128 = vmatprep.subr.bf16.mxu0 0
      %3129 = vmatpush1.bf16.msra.mxu0 0
      %3130 = vmatprep.subr.bf16.mxu0 0
      %3131 = vmatpush1.bf16.msra.mxu0 0
      %3132 = vmatprep.subr.bf16.mxu0 0
      %3133 = vmatpush1.bf16.msra.mxu0 0
      %3134 = vmatprep.subr.bf16.mxu0 0
      %3135 = vmatpush1.bf16.msra.mxu0 0
      %3136 = vmatprep.subr.bf16.mxu0 0
      %3137 = vmatpush1.bf16.msra.mxu0 0
      %3138 = vmatprep.subr.bf16.mxu0 0
      %3139 = vmatpush1.bf16.msra.mxu0 0
      %3140 = vmatprep.subr.bf16.mxu0 0
      %3141 = vmatpush1.bf16.msra.mxu0 0
      %3142 = vmatprep.subr.bf16.mxu0 0
      %3143 = vmatpush1.bf16.msra.mxu0 0
      %3144 = vmatprep.mubr.bf16.mxu0 0
      %3145 = vmatmul.mubr.bf16.gmra.mrb[0].mxu0 %v3110
      %v3146 = vpop.f32.mrb[0].mxu0
      %v3147 = vadd.f32 0.0, %v3146
      %v3148 = vpop.f32.mrb[0].mxu0
      %v3149 = vpop.f32.mrb[0].mxu0
      %v3150 = vpop.f32.mrb[0].mxu0
      %3151 = vdwg.mxu0
      %v3152 = vpack.c.bf16 %v3147, %v3147
      %s3153 = scalar_lea.vmem %s7, 32
      %v3154 = vld [vmem:[%s3153] sm:$0xf]
      %v3155 = vld [vmem:[%s3153 + $0x4] sm:$0xf]
      %v3156 = vld [vmem:[%s3153 + $0x8] sm:$0xf]
      %v3157 = vld [vmem:[%s3153 + $0xc] sm:$0xf]
      %v3158 = vld [vmem:[%s3153 + $0x10] sm:$0xf]
      %v3159 = vld [vmem:[%s3153 + $0x14] sm:$0xf]
      %v3160 = vld [vmem:[%s3153 + $0x18] sm:$0xf]
      %v3161 = vld [vmem:[%s3153 + $0x1c] sm:$0xf]
      %v3170 = vunpack.c.l.b16 %v3154
      %v3171 = vunpack.c.l.b16 %v3155
      %v3172 = vunpack.c.l.b16 %v3156
      %v3173 = vunpack.c.l.b16 %v3157
      %v3174 = vunpack.c.l.b16 %v3158
      %v3175 = vunpack.c.l.b16 %v3159
      %v3176 = vunpack.c.l.b16 %v3160
      %v3177 = vunpack.c.l.b16 %v3161
      %v3178 = vpack.c.b16 %v3171, %v3170
      %v3179 = vpack.c.b16 %v3173, %v3172
      %v3180 = vpack.c.b16 %v3175, %v3174
      %v3181 = vpack.c.b16 %v3177, %v3176
      %v3187 = vsel %vm1189, %v3152, 0
      %3189 = vmatprep.subr.bf16.mxu0 0
      %3190 = vmatpush1.bf16.msra.mxu0 %v3178
      %3191 = vmatprep.subr.bf16.mxu0 0
      %3192 = vmatpush1.bf16.msra.mxu0 %v3179
      %3193 = vmatprep.subr.bf16.mxu0 0
      %3194 = vmatpush1.bf16.msra.mxu0 %v3180
      %3195 = vmatprep.subr.bf16.mxu0 0
      %3196 = vmatpush1.bf16.msra.mxu0 %v3181
      %3197 = vmatprep.subr.bf16.mxu0 0
      %3198 = vmatpush1.bf16.msra.mxu0 0
      %3199 = vmatprep.subr.bf16.mxu0 0
      %3200 = vmatpush1.bf16.msra.mxu0 0
      %3201 = vmatprep.subr.bf16.mxu0 0
      %3202 = vmatpush1.bf16.msra.mxu0 0
      %3203 = vmatprep.subr.bf16.mxu0 0
      %3204 = vmatpush1.bf16.msra.mxu0 0
      %3205 = vmatprep.subr.bf16.mxu0 0
      %3206 = vmatpush1.bf16.msra.mxu0 0
      %3207 = vmatprep.subr.bf16.mxu0 0
      %3208 = vmatpush1.bf16.msra.mxu0 0
      %3209 = vmatprep.subr.bf16.mxu0 0
      %3210 = vmatpush1.bf16.msra.mxu0 0
      %3211 = vmatprep.subr.bf16.mxu0 0
      %3212 = vmatpush1.bf16.msra.mxu0 0
      %3213 = vmatprep.subr.bf16.mxu0 0
      %3214 = vmatpush1.bf16.msra.mxu0 0
      %3215 = vmatprep.subr.bf16.mxu0 0
      %3216 = vmatpush1.bf16.msra.mxu0 0
      %3217 = vmatprep.subr.bf16.mxu0 0
      %3218 = vmatpush1.bf16.msra.mxu0 0
      %3219 = vmatprep.subr.bf16.mxu0 0
      %3220 = vmatpush1.bf16.msra.mxu0 0
      %3221 = vmatprep.mubr.bf16.mxu0 0
      %3222 = vmatmul.mubr.bf16.gmra.mrb[0].mxu0 %v3187
      %v3223 = vpop.f32.mrb[0].mxu0
      %v3224 = vadd.f32 0.0, %v3223
      %v3225 = vpop.f32.mrb[0].mxu0
      %v3226 = vpop.f32.mrb[0].mxu0
      %v3227 = vpop.f32.mrb[0].mxu0
      %3228 = vdwg.mxu0
      %v3237 = vunpack.c.l.b16 %v3099
      %v3238 = vunpack.c.l.b16 %v3100
      %v3239 = vunpack.c.l.b16 %v3101
      %v3240 = vunpack.c.l.b16 %v3102
      %v3241 = vunpack.c.l.b16 %v3103
      %v3242 = vunpack.c.l.b16 %v3104
      %v3243 = vunpack.c.l.b16 %v3105
      %v3244 = vunpack.c.l.b16 %v3106
      %v3245 = vpack.c.b16 %v3238, %v3237
      %v3246 = vpack.c.b16 %v3240, %v3239
      %v3247 = vpack.c.b16 %v3242, %v3241
      %v3248 = vpack.c.b16 %v3244, %v3243
      %v3254 = vsel %vm1189, %v3098, 0
      %3256 = vmatprep.subr.bf16.mxu0 0
      %3257 = vmatpush1.bf16.msra.mxu0 %v3245
      %3258 = vmatprep.subr.bf16.mxu0 0
      %3259 = vmatpush1.bf16.msra.mxu0 %v3246
      %3260 = vmatprep.subr.bf16.mxu0 0
      %3261 = vmatpush1.bf16.msra.mxu0 %v3247
      %3262 = vmatprep.subr.bf16.mxu0 0
      %3263 = vmatpush1.bf16.msra.mxu0 %v3248
      %3264 = vmatprep.subr.bf16.mxu0 0
      %3265 = vmatpush1.bf16.msra.mxu0 0
      %3266 = vmatprep.subr.bf16.mxu0 0
      %3267 = vmatpush1.bf16.msra.mxu0 0
      %3268 = vmatprep.subr.bf16.mxu0 0
      %3269 = vmatpush1.bf16.msra.mxu0 0
      %3270 = vmatprep.subr.bf16.mxu0 0
      %3271 = vmatpush1.bf16.msra.mxu0 0
      %3272 = vmatprep.subr.bf16.mxu0 0
      %3273 = vmatpush1.bf16.msra.mxu0 0
      %3274 = vmatprep.subr.bf16.mxu0 0
      %3275 = vmatpush1.bf16.msra.mxu0 0
      %3276 = vmatprep.subr.bf16.mxu0 0
      %3277 = vmatpush1.bf16.msra.mxu0 0
      %3278 = vmatprep.subr.bf16.mxu0 0
      %3279 = vmatpush1.bf16.msra.mxu0 0
      %3280 = vmatprep.subr.bf16.mxu0 0
      %3281 = vmatpush1.bf16.msra.mxu0 0
      %3282 = vmatprep.subr.bf16.mxu0 0
      %3283 = vmatpush1.bf16.msra.mxu0 0
      %3284 = vmatprep.subr.bf16.mxu0 0
      %3285 = vmatpush1.bf16.msra.mxu0 0
      %3286 = vmatprep.subr.bf16.mxu0 0
      %3287 = vmatpush1.bf16.msra.mxu0 0
      %3288 = vmatprep.mubr.bf16.mxu0 0
      %3289 = vmatmul.mubr.bf16.gmra.mrb[0].mxu0 %v3254
      %v3290 = vpop.f32.mrb[0].mxu0
      %v3291 = vadd.f32 %v3224, %v3290
      %v3292 = vpop.f32.mrb[0].mxu0
      %v3293 = vpop.f32.mrb[0].mxu0
      %v3294 = vpop.f32.mrb[0].mxu0
      %3295 = vdwg.mxu0
      %s3296 = scalar_lea.vmem %s6, 2
      %v3297 = vld [vmem:[%s3296] sm:$0x1]
      %v3299 = vsel %vm3047, %v3297, 0
      %3301 = vmatprep.subr.bf16.mxu0 0
      %3302 = vmatpush1.bf16.msra.mxu0 %v3056
      %3303 = vmatprep.subr.bf16.mxu0 0
      %3304 = vmatpush1.bf16.msra.mxu0 0
      %3305 = vmatprep.subr.bf16.mxu0 0
      %3306 = vmatpush1.bf16.msra.mxu0 0
      %3307 = vmatprep.subr.bf16.mxu0 0
      %3308 = vmatpush1.bf16.msra.mxu0 0
      %3309 = vmatprep.subr.bf16.mxu0 0
      %3310 = vmatpush1.bf16.msra.mxu0 0
      %3311 = vmatprep.subr.bf16.mxu0 0
      %3312 = vmatpush1.bf16.msra.mxu0 0
      %3313 = vmatprep.subr.bf16.mxu0 0
      %3314 = vmatpush1.bf16.msra.mxu0 0
      %3315 = vmatprep.subr.bf16.mxu0 0
      %3316 = vmatpush1.bf16.msra.mxu0 0
      %3317 = vmatprep.subr.bf16.mxu0 0
      %3318 = vmatpush1.bf16.msra.mxu0 0
      %3319 = vmatprep.subr.bf16.mxu0 0
      %3320 = vmatpush1.bf16.msra.mxu0 0
      %3321 = vmatprep.subr.bf16.mxu0 0
      %3322 = vmatpush1.bf16.msra.mxu0 0
      %3323 = vmatprep.subr.bf16.mxu0 0
      %3324 = vmatpush1.bf16.msra.mxu0 0
      %3325 = vmatprep.subr.bf16.mxu0 0
      %3326 = vmatpush1.bf16.msra.mxu0 0
      %3327 = vmatprep.subr.bf16.mxu0 0
      %3328 = vmatpush1.bf16.msra.mxu0 0
      %3329 = vmatprep.subr.bf16.mxu0 0
      %3330 = vmatpush1.bf16.msra.mxu0 0
      %3331 = vmatprep.subr.bf16.mxu0 0
      %3332 = vmatpush1.bf16.msra.mxu0 0
      %3333 = vmatprep.mubr.bf16.mxu0 0
      %3334 = vmatmul.mubr.bf16.gmra.mrb[0].mxu0 %v3299
      %v3335 = vpop.f32.mrb[0].mxu0
      %v3336 = vadd.f32 0.0, %v3335
      %v3337 = vpop.f32.mrb[0].mxu0
      %v3338 = vpop.f32.mrb[0].mxu0
      %v3339 = vpop.f32.mrb[0].mxu0
      %3340 = vdwg.mxu0
      %v3341 = vpack.c.bf16 %v3336, %v3336
      %s3342 = scalar_lea.vmem %s7, 64
      %v3343 = vld [vmem:[%s3342] sm:$0xf]
      %v3344 = vld [vmem:[%s3342 + $0x4] sm:$0xf]
      %v3345 = vld [vmem:[%s3342 + $0x8] sm:$0xf]
      %v3346 = vld [vmem:[%s3342 + $0xc] sm:$0xf]
      %v3347 = vld [vmem:[%s3342 + $0x10] sm:$0xf]
      %v3348 = vld [vmem:[%s3342 + $0x14] sm:$0xf]
      %v3349 = vld [vmem:[%s3342 + $0x18] sm:$0xf]
      %v3350 = vld [vmem:[%s3342 + $0x1c] sm:$0xf]
      %v3359 = vunpack.c.l.b16 %v3343
      %v3360 = vunpack.c.l.b16 %v3344
      %v3361 = vunpack.c.l.b16 %v3345
      %v3362 = vunpack.c.l.b16 %v3346
      %v3363 = vunpack.c.l.b16 %v3347
      %v3364 = vunpack.c.l.b16 %v3348
      %v3365 = vunpack.c.l.b16 %v3349
      %v3366 = vunpack.c.l.b16 %v3350
      %v3367 = vpack.c.b16 %v3360, %v3359
      %v3368 = vpack.c.b16 %v3362, %v3361
      %v3369 = vpack.c.b16 %v3364, %v3363
      %v3370 = vpack.c.b16 %v3366, %v3365
      %v3376 = vsel %vm1189, %v3341, 0
      %3378 = vmatprep.subr.bf16.mxu0 0
      %3379 = vmatpush1.bf16.msra.mxu0 %v3367
      %3380 = vmatprep.subr.bf16.mxu0 0
      %3381 = vmatpush1.bf16.msra.mxu0 %v3368
      %3382 = vmatprep.subr.bf16.mxu0 0
      %3383 = vmatpush1.bf16.msra.mxu0 %v3369
      %3384 = vmatprep.subr.bf16.mxu0 0
      %3385 = vmatpush1.bf16.msra.mxu0 %v3370
      %3386 = vmatprep.subr.bf16.mxu0 0
      %3387 = vmatpush1.bf16.msra.mxu0 0
      %3388 = vmatprep.subr.bf16.mxu0 0
      %3389 = vmatpush1.bf16.msra.mxu0 0
      %3390 = vmatprep.subr.bf16.mxu0 0
      %3391 = vmatpush1.bf16.msra.mxu0 0
      %3392 = vmatprep.subr.bf16.mxu0 0
      %3393 = vmatpush1.bf16.msra.mxu0 0
      %3394 = vmatprep.subr.bf16.mxu0 0
      %3395 = vmatpush1.bf16.msra.mxu0 0
      %3396 = vmatprep.subr.bf16.mxu0 0
      %3397 = vmatpush1.bf16.msra.mxu0 0
      %3398 = vmatprep.subr.bf16.mxu0 0
      %3399 = vmatpush1.bf16.msra.mxu0 0
      %3400 = vmatprep.subr.bf16.mxu0 0
      %3401 = vmatpush1.bf16.msra.mxu0 0
      %3402 = vmatprep.subr.bf16.mxu0 0
      %3403 = vmatpush1.bf16.msra.mxu0 0
      %3404 = vmatprep.subr.bf16.mxu0 0
      %3405 = vmatpush1.bf16.msra.mxu0 0
      %3406 = vmatprep.subr.bf16.mxu0 0
      %3407 = vmatpush1.bf16.msra.mxu0 0
      %3408 = vmatprep.subr.bf16.mxu0 0
      %3409 = vmatpush1.bf16.msra.mxu0 0
      %3410 = vmatprep.mubr.bf16.mxu0 0
      %3411 = vmatmul.mubr.bf16.gmra.mrb[0].mxu0 %v3376
      %v3412 = vpop.f32.mrb[0].mxu0
      %v3413 = vadd.f32 0.0, %v3412
      %v3414 = vpop.f32.mrb[0].mxu0
      %v3415 = vpop.f32.mrb[0].mxu0
      %v3416 = vpop.f32.mrb[0].mxu0
      %3417 = vdwg.mxu0
      %v3418 = vadd.f32 %v3291, %v3413
      %s3419 = scalar_lea.vmem %s6, 3
      %v3420 = vld [vmem:[%s3419] sm:$0x1]
      %v3422 = vsel %vm3047, %v3420, 0
      %3424 = vmatprep.subr.bf16.mxu0 0
      %3425 = vmatpush1.bf16.msra.mxu0 %v3056
      %3426 = vmatprep.subr.bf16.mxu0 0
      %3427 = vmatpush1.bf16.msra.mxu0 0
      %3428 = vmatprep.subr.bf16.mxu0 0
      %3429 = vmatpush1.bf16.msra.mxu0 0
      %3430 = vmatprep.subr.bf16.mxu0 0
      %3431 = vmatpush1.bf16.msra.mxu0 0
      %3432 = vmatprep.subr.bf16.mxu0 0
      %3433 = vmatpush1.bf16.msra.mxu0 0
      %3434 = vmatprep.subr.bf16.mxu0 0
      %3435 = vmatpush1.bf16.msra.mxu0 0
      %3436 = vmatprep.subr.bf16.mxu0 0
      %3437 = vmatpush1.bf16.msra.mxu0 0
      %3438 = vmatprep.subr.bf16.mxu0 0
      %3439 = vmatpush1.bf16.msra.mxu0 0
      %3440 = vmatprep.subr.bf16.mxu0 0
      %3441 = vmatpush1.bf16.msra.mxu0 0
      %3442 = vmatprep.subr.bf16.mxu0 0
      %3443 = vmatpush1.bf16.msra.mxu0 0
      %3444 = vmatprep.subr.bf16.mxu0 0
      %3445 = vmatpush1.bf16.msra.mxu0 0
      %3446 = vmatprep.subr.bf16.mxu0 0
      %3447 = vmatpush1.bf16.msra.mxu0 0
      %3448 = vmatprep.subr.bf16.mxu0 0
      %3449 = vmatpush1.bf16.msra.mxu0 0
      %3450 = vmatprep.subr.bf16.mxu0 0
      %3451 = vmatpush1.bf16.msra.mxu0 0
      %3452 = vmatprep.subr.bf16.mxu0 0
      %3453 = vmatpush1.bf16.msra.mxu0 0
      %3454 = vmatprep.subr.bf16.mxu0 0
      %3455 = vmatpush1.bf16.msra.mxu0 0
      %3456 = vmatprep.mubr.bf16.mxu0 0
      %3457 = vmatmul.mubr.bf16.gmra.mrb[0].mxu0 %v3422
      %v3458 = vpop.f32.mrb[0].mxu0
      %v3459 = vadd.f32 0.0, %v3458
      %v3460 = vpop.f32.mrb[0].mxu0
      %v3461 = vpop.f32.mrb[0].mxu0
      %v3462 = vpop.f32.mrb[0].mxu0
      %3463 = vdwg.mxu0
      %v3464 = vpack.c.bf16 %v3459, %v3459
      %s3465 = scalar_lea.vmem %s7, 96
      %v3466 = vld [vmem:[%s3465] sm:$0xf]
      %v3467 = vld [vmem:[%s3465 + $0x4] sm:$0xf]
      %v3468 = vld [vmem:[%s3465 + $0x8] sm:$0xf]
      %v3469 = vld [vmem:[%s3465 + $0xc] sm:$0xf]
      %v3470 = vld [vmem:[%s3465 + $0x10] sm:$0xf]
      %v3471 = vld [vmem:[%s3465 + $0x14] sm:$0xf]
      %v3472 = vld [vmem:[%s3465 + $0x18] sm:$0xf]
      %v3473 = vld [vmem:[%s3465 + $0x1c] sm:$0xf]
      %v3482 = vunpack.c.l.b16 %v3466
      %v3483 = vunpack.c.l.b16 %v3467
      %v3484 = vunpack.c.l.b16 %v3468
      %v3485 = vunpack.c.l.b16 %v3469
      %v3486 = vunpack.c.l.b16 %v3470
      %v3487 = vunpack.c.l.b16 %v3471
      %v3488 = vunpack.c.l.b16 %v3472
      %v3489 = vunpack.c.l.b16 %v3473
      %v3490 = vpack.c.b16 %v3483, %v3482
      %v3491 = vpack.c.b16 %v3485, %v3484
      %v3492 = vpack.c.b16 %v3487, %v3486
      %v3493 = vpack.c.b16 %v3489, %v3488
      %v3499 = vsel %vm1189, %v3464, 0
      %3501 = vmatprep.subr.bf16.mxu0 0
      %3502 = vmatpush1.bf16.msra.mxu0 %v3490
      %3503 = vmatprep.subr.bf16.mxu0 0
      %3504 = vmatpush1.bf16.msra.mxu0 %v3491
      %3505 = vmatprep.subr.bf16.mxu0 0
      %3506 = vmatpush1.bf16.msra.mxu0 %v3492
      %3507 = vmatprep.subr.bf16.mxu0 0
      %3508 = vmatpush1.bf16.msra.mxu0 %v3493
      %3509 = vmatprep.subr.bf16.mxu0 0
      %3510 = vmatpush1.bf16.msra.mxu0 0
      %3511 = vmatprep.subr.bf16.mxu0 0
      %3512 = vmatpush1.bf16.msra.mxu0 0
      %3513 = vmatprep.subr.bf16.mxu0 0
      %3514 = vmatpush1.bf16.msra.mxu0 0
      %3515 = vmatprep.subr.bf16.mxu0 0
      %3516 = vmatpush1.bf16.msra.mxu0 0
      %3517 = vmatprep.subr.bf16.mxu0 0
      %3518 = vmatpush1.bf16.msra.mxu0 0
      %3519 = vmatprep.subr.bf16.mxu0 0
      %3520 = vmatpush1.bf16.msra.mxu0 0
      %3521 = vmatprep.subr.bf16.mxu0 0
      %3522 = vmatpush1.bf16.msra.mxu0 0
      %3523 = vmatprep.subr.bf16.mxu0 0
      %3524 = vmatpush1.bf16.msra.mxu0 0
      %3525 = vmatprep.subr.bf16.mxu0 0
      %3526 = vmatpush1.bf16.msra.mxu0 0
      %3527 = vmatprep.subr.bf16.mxu0 0
      %3528 = vmatpush1.bf16.msra.mxu0 0
      %3529 = vmatprep.subr.bf16.mxu0 0
      %3530 = vmatpush1.bf16.msra.mxu0 0
      %3531 = vmatprep.subr.bf16.mxu0 0
      %3532 = vmatpush1.bf16.msra.mxu0 0
      %3533 = vmatprep.mubr.bf16.mxu0 0
      %3534 = vmatmul.mubr.bf16.gmra.mrb[0].mxu0 %v3499
      %v3535 = vpop.f32.mrb[0].mxu0
      %v3536 = vadd.f32 0.0, %v3535
      %v3537 = vpop.f32.mrb[0].mxu0
      %v3538 = vpop.f32.mrb[0].mxu0
      %v3539 = vpop.f32.mrb[0].mxu0
      %3540 = vdwg.mxu0
      %v3541 = vadd.f32 %v3418, %v3536
      %s3542 = scalar_lea.vmem %s6, 4
      %v3543 = vld [vmem:[%s3542] sm:$0x1]
      %v3545 = vsel %vm3047, %v3543, 0
      %3547 = vmatprep.subr.bf16.mxu0 0
      %3548 = vmatpush1.bf16.msra.mxu0 %v3056
      %3549 = vmatprep.subr.bf16.mxu0 0
      %3550 = vmatpush1.bf16.msra.mxu0 0
      %3551 = vmatprep.subr.bf16.mxu0 0
      %3552 = vmatpush1.bf16.msra.mxu0 0
      %3553 = vmatprep.subr.bf16.mxu0 0
      %3554 = vmatpush1.bf16.msra.mxu0 0
      %3555 = vmatprep.subr.bf16.mxu0 0
      %3556 = vmatpush1.bf16.msra.mxu0 0
      %3557 = vmatprep.subr.bf16.mxu0 0
      %3558 = vmatpush1.bf16.msra.mxu0 0
      %3559 = vmatprep.subr.bf16.mxu0 0
      %3560 = vmatpush1.bf16.msra.mxu0 0
      %3561 = vmatprep.subr.bf16.mxu0 0
      %3562 = vmatpush1.bf16.msra.mxu0 0
      %3563 = vmatprep.subr.bf16.mxu0 0
      %3564 = vmatpush1.bf16.msra.mxu0 0
      %3565 = vmatprep.subr.bf16.mxu0 0
      %3566 = vmatpush1.bf16.msra.mxu0 0
      %3567 = vmatprep.subr.bf16.mxu0 0
      %3568 = vmatpush1.bf16.msra.mxu0 0
      %3569 = vmatprep.subr.bf16.mxu0 0
      %3570 = vmatpush1.bf16.msra.mxu0 0
      %3571 = vmatprep.subr.bf16.mxu0 0
      %3572 = vmatpush1.bf16.msra.mxu0 0
      %3573 = vmatprep.subr.bf16.mxu0 0
      %3574 = vmatpush1.bf16.msra.mxu0 0
      %3575 = vmatprep.subr.bf16.mxu0 0
      %3576 = vmatpush1.bf16.msra.mxu0 0
      %3577 = vmatprep.subr.bf16.mxu0 0
      %3578 = vmatpush1.bf16.msra.mxu0 0
      %3579 = vmatprep.mubr.bf16.mxu0 0
      %3580 = vmatmul.mubr.bf16.gmra.mrb[0].mxu0 %v3545
      %v3581 = vpop.f32.mrb[0].mxu0
      %v3582 = vadd.f32 0.0, %v3581
      %v3583 = vpop.f32.mrb[0].mxu0
      %v3584 = vpop.f32.mrb[0].mxu0
      %v3585 = vpop.f32.mrb[0].mxu0
      %3586 = vdwg.mxu0
      %v3587 = vpack.c.bf16 %v3582, %v3582
      %s3588 = scalar_lea.vmem %s7, 128
      %v3589 = vld [vmem:[%s3588] sm:$0xf]
      %v3590 = vld [vmem:[%s3588 + $0x4] sm:$0xf]
      %v3591 = vld [vmem:[%s3588 + $0x8] sm:$0xf]
      %v3592 = vld [vmem:[%s3588 + $0xc] sm:$0xf]
      %v3593 = vld [vmem:[%s3588 + $0x10] sm:$0xf]
      %v3594 = vld [vmem:[%s3588 + $0x14] sm:$0xf]
      %v3595 = vld [vmem:[%s3588 + $0x18] sm:$0xf]
      %v3596 = vld [vmem:[%s3588 + $0x1c] sm:$0xf]
      %v3605 = vunpack.c.l.b16 %v3589
      %v3606 = vunpack.c.l.b16 %v3590
      %v3607 = vunpack.c.l.b16 %v3591
      %v3608 = vunpack.c.l.b16 %v3592
      %v3609 = vunpack.c.l.b16 %v3593
      %v3610 = vunpack.c.l.b16 %v3594
      %v3611 = vunpack.c.l.b16 %v3595
      %v3612 = vunpack.c.l.b16 %v3596
      %v3613 = vpack.c.b16 %v3606, %v3605
      %v3614 = vpack.c.b16 %v3608, %v3607
      %v3615 = vpack.c.b16 %v3610, %v3609
      %v3616 = vpack.c.b16 %v3612, %v3611
      %v3622 = vsel %vm1189, %v3587, 0
      %3624 = vmatprep.subr.bf16.mxu0 0
      %3625 = vmatpush1.bf16.msra.mxu0 %v3613
      %3626 = vmatprep.subr.bf16.mxu0 0
      %3627 = vmatpush1.bf16.msra.mxu0 %v3614
      %3628 = vmatprep.subr.bf16.mxu0 0
      %3629 = vmatpush1.bf16.msra.mxu0 %v3615
      %3630 = vmatprep.subr.bf16.mxu0 0
      %3631 = vmatpush1.bf16.msra.mxu0 %v3616
      %3632 = vmatprep.subr.bf16.mxu0 0
      %3633 = vmatpush1.bf16.msra.mxu0 0
      %3634 = vmatprep.subr.bf16.mxu0 0
      %3635 = vmatpush1.bf16.msra.mxu0 0
      %3636 = vmatprep.subr.bf16.mxu0 0
      %3637 = vmatpush1.bf16.msra.mxu0 0
      %3638 = vmatprep.subr.bf16.mxu0 0
      %3639 = vmatpush1.bf16.msra.mxu0 0
      %3640 = vmatprep.subr.bf16.mxu0 0
      %3641 = vmatpush1.bf16.msra.mxu0 0
      %3642 = vmatprep.subr.bf16.mxu0 0
      %3643 = vmatpush1.bf16.msra.mxu0 0
      %3644 = vmatprep.subr.bf16.mxu0 0
      %3645 = vmatpush1.bf16.msra.mxu0 0
      %3646 = vmatprep.subr.bf16.mxu0 0
      %3647 = vmatpush1.bf16.msra.mxu0 0
      %3648 = vmatprep.subr.bf16.mxu0 0
      %3649 = vmatpush1.bf16.msra.mxu0 0
      %3650 = vmatprep.subr.bf16.mxu0 0
      %3651 = vmatpush1.bf16.msra.mxu0 0
      %3652 = vmatprep.subr.bf16.mxu0 0
      %3653 = vmatpush1.bf16.msra.mxu0 0
      %3654 = vmatprep.subr.bf16.mxu0 0
      %3655 = vmatpush1.bf16.msra.mxu0 0
      %3656 = vmatprep.mubr.bf16.mxu0 0
      %3657 = vmatmul.mubr.bf16.gmra.mrb[0].mxu0 %v3622
      %v3658 = vpop.f32.mrb[0].mxu0
      %v3659 = vadd.f32 0.0, %v3658
      %v3660 = vpop.f32.mrb[0].mxu0
      %v3661 = vpop.f32.mrb[0].mxu0
      %v3662 = vpop.f32.mrb[0].mxu0
      %3663 = vdwg.mxu0
      %v3664 = vadd.f32 %v3541, %v3659
      %s3665 = scalar_lea.vmem %s6, 5
      %v3666 = vld [vmem:[%s3665] sm:$0x1]
      %v3668 = vsel %vm3047, %v3666, 0
      %3670 = vmatprep.subr.bf16.mxu0 0
      %3671 = vmatpush1.bf16.msra.mxu0 %v3056
      %3672 = vmatprep.subr.bf16.mxu0 0
      %3673 = vmatpush1.bf16.msra.mxu0 0
      %3674 = vmatprep.subr.bf16.mxu0 0
      %3675 = vmatpush1.bf16.msra.mxu0 0
      %3676 = vmatprep.subr.bf16.mxu0 0
      %3677 = vmatpush1.bf16.msra.mxu0 0
      %3678 = vmatprep.subr.bf16.mxu0 0
      %3679 = vmatpush1.bf16.msra.mxu0 0
      %3680 = vmatprep.subr.bf16.mxu0 0
      %3681 = vmatpush1.bf16.msra.mxu0 0
      %3682 = vmatprep.subr.bf16.mxu0 0
      %3683 = vmatpush1.bf16.msra.mxu0 0
      %3684 = vmatprep.subr.bf16.mxu0 0
      %3685 = vmatpush1.bf16.msra.mxu0 0
      %3686 = vmatprep.subr.bf16.mxu0 0
      %3687 = vmatpush1.bf16.msra.mxu0 0
      %3688 = vmatprep.subr.bf16.mxu0 0
      %3689 = vmatpush1.bf16.msra.mxu0 0
      %3690 = vmatprep.subr.bf16.mxu0 0
      %3691 = vmatpush1.bf16.msra.mxu0 0
      %3692 = vmatprep.subr.bf16.mxu0 0
      %3693 = vmatpush1.bf16.msra.mxu0 0
      %3694 = vmatprep.subr.bf16.mxu0 0
      %3695 = vmatpush1.bf16.msra.mxu0 0
      %3696 = vmatprep.subr.bf16.mxu0 0
      %3697 = vmatpush1.bf16.msra.mxu0 0
      %3698 = vmatprep.subr.bf16.mxu0 0
      %3699 = vmatpush1.bf16.msra.mxu0 0
      %3700 = vmatprep.subr.bf16.mxu0 0
      %3701 = vmatpush1.bf16.msra.mxu0 0
      %3702 = vmatprep.mubr.bf16.mxu0 0
      %3703 = vmatmul.mubr.bf16.gmra.mrb[0].mxu0 %v3668
      %v3704 = vpop.f32.mrb[0].mxu0
      %v3705 = vadd.f32 0.0, %v3704
      %v3706 = vpop.f32.mrb[0].mxu0
      %v3707 = vpop.f32.mrb[0].mxu0
      %v3708 = vpop.f32.mrb[0].mxu0
      %3709 = vdwg.mxu0
      %v3710 = vpack.c.bf16 %v3705, %v3705
      %s3711 = scalar_lea.vmem %s7, 160
      %v3712 = vld [vmem:[%s3711] sm:$0xf]
      %v3713 = vld [vmem:[%s3711 + $0x4] sm:$0xf]
      %v3714 = vld [vmem:[%s3711 + $0x8] sm:$0xf]
      %v3715 = vld [vmem:[%s3711 + $0xc] sm:$0xf]
      %v3716 = vld [vmem:[%s3711 + $0x10] sm:$0xf]
      %v3717 = vld [vmem:[%s3711 + $0x14] sm:$0xf]
      %v3718 = vld [vmem:[%s3711 + $0x18] sm:$0xf]
      %v3719 = vld [vmem:[%s3711 + $0x1c] sm:$0xf]
      %v3728 = vunpack.c.l.b16 %v3712
      %v3729 = vunpack.c.l.b16 %v3713
      %v3730 = vunpack.c.l.b16 %v3714
      %v3731 = vunpack.c.l.b16 %v3715
      %v3732 = vunpack.c.l.b16 %v3716
      %v3733 = vunpack.c.l.b16 %v3717
      %v3734 = vunpack.c.l.b16 %v3718
      %v3735 = vunpack.c.l.b16 %v3719
      %v3736 = vpack.c.b16 %v3729, %v3728
      %v3737 = vpack.c.b16 %v3731, %v3730
      %v3738 = vpack.c.b16 %v3733, %v3732
      %v3739 = vpack.c.b16 %v3735, %v3734
      %v3745 = vsel %vm1189, %v3710, 0
      %3747 = vmatprep.subr.bf16.mxu0 0
      %3748 = vmatpush1.bf16.msra.mxu0 %v3736
      %3749 = vmatprep.subr.bf16.mxu0 0
      %3750 = vmatpush1.bf16.msra.mxu0 %v3737
      %3751 = vmatprep.subr.bf16.mxu0 0
      %3752 = vmatpush1.bf16.msra.mxu0 %v3738
      %3753 = vmatprep.subr.bf16.mxu0 0
      %3754 = vmatpush1.bf16.msra.mxu0 %v3739
      %3755 = vmatprep.subr.bf16.mxu0 0
      %3756 = vmatpush1.bf16.msra.mxu0 0
      %3757 = vmatprep.subr.bf16.mxu0 0
      %3758 = vmatpush1.bf16.msra.mxu0 0
      %3759 = vmatprep.subr.bf16.mxu0 0
      %3760 = vmatpush1.bf16.msra.mxu0 0
      %3761 = vmatprep.subr.bf16.mxu0 0
      %3762 = vmatpush1.bf16.msra.mxu0 0
      %3763 = vmatprep.subr.bf16.mxu0 0
      %3764 = vmatpush1.bf16.msra.mxu0 0
      %3765 = vmatprep.subr.bf16.mxu0 0
      %3766 = vmatpush1.bf16.msra.mxu0 0
      %3767 = vmatprep.subr.bf16.mxu0 0
      %3768 = vmatpush1.bf16.msra.mxu0 0
      %3769 = vmatprep.subr.bf16.mxu0 0
      %3770 = vmatpush1.bf16.msra.mxu0 0
      %3771 = vmatprep.subr.bf16.mxu0 0
      %3772 = vmatpush1.bf16.msra.mxu0 0
      %3773 = vmatprep.subr.bf16.mxu0 0
      %3774 = vmatpush1.bf16.msra.mxu0 0
      %3775 = vmatprep.subr.bf16.mxu0 0
      %3776 = vmatpush1.bf16.msra.mxu0 0
      %3777 = vmatprep.subr.bf16.mxu0 0
      %3778 = vmatpush1.bf16.msra.mxu0 0
      %3779 = vmatprep.mubr.bf16.mxu0 0
      %3780 = vmatmul.mubr.bf16.gmra.mrb[0].mxu0 %v3745
      %v3781 = vpop.f32.mrb[0].mxu0
      %v3782 = vadd.f32 0.0, %v3781
      %v3783 = vpop.f32.mrb[0].mxu0
      %v3784 = vpop.f32.mrb[0].mxu0
      %v3785 = vpop.f32.mrb[0].mxu0
      %3786 = vdwg.mxu0
      %v3787 = vadd.f32 %v3664, %v3782
      %s3788 = scalar_lea.vmem %s6, 6
      %v3789 = vld [vmem:[%s3788] sm:$0x1]
      %v3791 = vsel %vm3047, %v3789, 0
      %3793 = vmatprep.subr.bf16.mxu0 0
      %3794 = vmatpush1.bf16.msra.mxu0 %v3056
      %3795 = vmatprep.subr.bf16.mxu0 0
      %3796 = vmatpush1.bf16.msra.mxu0 0
      %3797 = vmatprep.subr.bf16.mxu0 0
      %3798 = vmatpush1.bf16.msra.mxu0 0
      %3799 = vmatprep.subr.bf16.mxu0 0
      %3800 = vmatpush1.bf16.msra.mxu0 0
      %3801 = vmatprep.subr.bf16.mxu0 0
      %3802 = vmatpush1.bf16.msra.mxu0 0
      %3803 = vmatprep.subr.bf16.mxu0 0
      %3804 = vmatpush1.bf16.msra.mxu0 0
      %3805 = vmatprep.subr.bf16.mxu0 0
      %3806 = vmatpush1.bf16.msra.mxu0 0
      %3807 = vmatprep.subr.bf16.mxu0 0
      %3808 = vmatpush1.bf16.msra.mxu0 0
      %3809 = vmatprep.subr.bf16.mxu0 0
      %3810 = vmatpush1.bf16.msra.mxu0 0
      %3811 = vmatprep.subr.bf16.mxu0 0
      %3812 = vmatpush1.bf16.msra.mxu0 0
      %3813 = vmatprep.subr.bf16.mxu0 0
      %3814 = vmatpush1.bf16.msra.mxu0 0
      %3815 = vmatprep.subr.bf16.mxu0 0
      %3816 = vmatpush1.bf16.msra.mxu0 0
      %3817 = vmatprep.subr.bf16.mxu0 0
      %3818 = vmatpush1.bf16.msra.mxu0 0
      %3819 = vmatprep.subr.bf16.mxu0 0
      %3820 = vmatpush1.bf16.msra.mxu0 0
      %3821 = vmatprep.subr.bf16.mxu0 0
      %3822 = vmatpush1.bf16.msra.mxu0 0
      %3823 = vmatprep.subr.bf16.mxu0 0
      %3824 = vmatpush1.bf16.msra.mxu0 0
      %3825 = vmatprep.mubr.bf16.mxu0 0
      %3826 = vmatmul.mubr.bf16.gmra.mrb[0].mxu0 %v3791
      %v3827 = vpop.f32.mrb[0].mxu0
      %v3828 = vadd.f32 0.0, %v3827
      %v3829 = vpop.f32.mrb[0].mxu0
      %v3830 = vpop.f32.mrb[0].mxu0
      %v3831 = vpop.f32.mrb[0].mxu0
      %3832 = vdwg.mxu0
      %v3833 = vpack.c.bf16 %v3828, %v3828
      %s3834 = scalar_lea.vmem %s7, 192
      %v3835 = vld [vmem:[%s3834] sm:$0xf]
      %v3836 = vld [vmem:[%s3834 + $0x4] sm:$0xf]
      %v3837 = vld [vmem:[%s3834 + $0x8] sm:$0xf]
      %v3838 = vld [vmem:[%s3834 + $0xc] sm:$0xf]
      %v3839 = vld [vmem:[%s3834 + $0x10] sm:$0xf]
      %v3840 = vld [vmem:[%s3834 + $0x14] sm:$0xf]
      %v3841 = vld [vmem:[%s3834 + $0x18] sm:$0xf]
      %v3842 = vld [vmem:[%s3834 + $0x1c] sm:$0xf]
      %v3851 = vunpack.c.l.b16 %v3835
      %v3852 = vunpack.c.l.b16 %v3836
      %v3853 = vunpack.c.l.b16 %v3837
      %v3854 = vunpack.c.l.b16 %v3838
      %v3855 = vunpack.c.l.b16 %v3839
      %v3856 = vunpack.c.l.b16 %v3840
      %v3857 = vunpack.c.l.b16 %v3841
      %v3858 = vunpack.c.l.b16 %v3842
      %v3859 = vpack.c.b16 %v3852, %v3851
      %v3860 = vpack.c.b16 %v3854, %v3853
      %v3861 = vpack.c.b16 %v3856, %v3855
      %v3862 = vpack.c.b16 %v3858, %v3857
      %v3868 = vsel %vm1189, %v3833, 0
      %3870 = vmatprep.subr.bf16.mxu0 0
      %3871 = vmatpush1.bf16.msra.mxu0 %v3859
      %3872 = vmatprep.subr.bf16.mxu0 0
      %3873 = vmatpush1.bf16.msra.mxu0 %v3860
      %3874 = vmatprep.subr.bf16.mxu0 0
      %3875 = vmatpush1.bf16.msra.mxu0 %v3861
      %3876 = vmatprep.subr.bf16.mxu0 0
      %3877 = vmatpush1.bf16.msra.mxu0 %v3862
      %3878 = vmatprep.subr.bf16.mxu0 0
      %3879 = vmatpush1.bf16.msra.mxu0 0
      %3880 = vmatprep.subr.bf16.mxu0 0
      %3881 = vmatpush1.bf16.msra.mxu0 0
      %3882 = vmatprep.subr.bf16.mxu0 0
      %3883 = vmatpush1.bf16.msra.mxu0 0
      %3884 = vmatprep.subr.bf16.mxu0 0
      %3885 = vmatpush1.bf16.msra.mxu0 0
      %3886 = vmatprep.subr.bf16.mxu0 0
      %3887 = vmatpush1.bf16.msra.mxu0 0
      %3888 = vmatprep.subr.bf16.mxu0 0
      %3889 = vmatpush1.bf16.msra.mxu0 0
      %3890 = vmatprep.subr.bf16.mxu0 0
      %3891 = vmatpush1.bf16.msra.mxu0 0
      %3892 = vmatprep.subr.bf16.mxu0 0
      %3893 = vmatpush1.bf16.msra.mxu0 0
      %3894 = vmatprep.subr.bf16.mxu0 0
      %3895 = vmatpush1.bf16.msra.mxu0 0
      %3896 = vmatprep.subr.bf16.mxu0 0
      %3897 = vmatpush1.bf16.msra.mxu0 0
      %3898 = vmatprep.subr.bf16.mxu0 0
      %3899 = vmatpush1.bf16.msra.mxu0 0
      %3900 = vmatprep.subr.bf16.mxu0 0
      %3901 = vmatpush1.bf16.msra.mxu0 0
      %3902 = vmatprep.mubr.bf16.mxu0 0
      %3903 = vmatmul.mubr.bf16.gmra.mrb[0].mxu0 %v3868
      %v3904 = vpop.f32.mrb[0].mxu0
      %v3905 = vadd.f32 0.0, %v3904
      %v3906 = vpop.f32.mrb[0].mxu0
      %v3907 = vpop.f32.mrb[0].mxu0
      %v3908 = vpop.f32.mrb[0].mxu0
      %3909 = vdwg.mxu0
      %v3910 = vadd.f32 %v3787, %v3905
      %s3911 = scalar_lea.vmem %s6, 7
      %v3912 = vld [vmem:[%s3911] sm:$0x1]
      %v3914 = vsel %vm3047, %v3912, 0
      %3916 = vmatprep.subr.bf16.mxu0 0
      %3917 = vmatpush1.bf16.msra.mxu0 %v3056
      %3918 = vmatprep.subr.bf16.mxu0 0
      %3919 = vmatpush1.bf16.msra.mxu0 0
      %3920 = vmatprep.subr.bf16.mxu0 0
      %3921 = vmatpush1.bf16.msra.mxu0 0
      %3922 = vmatprep.subr.bf16.mxu0 0
      %3923 = vmatpush1.bf16.msra.mxu0 0
      %3924 = vmatprep.subr.bf16.mxu0 0
      %3925 = vmatpush1.bf16.msra.mxu0 0
      %3926 = vmatprep.subr.bf16.mxu0 0
      %3927 = vmatpush1.bf16.msra.mxu0 0
      %3928 = vmatprep.subr.bf16.mxu0 0
      %3929 = vmatpush1.bf16.msra.mxu0 0
      %3930 = vmatprep.subr.bf16.mxu0 0
      %3931 = vmatpush1.bf16.msra.mxu0 0
      %3932 = vmatprep.subr.bf16.mxu0 0
      %3933 = vmatpush1.bf16.msra.mxu0 0
      %3934 = vmatprep.subr.bf16.mxu0 0
      %3935 = vmatpush1.bf16.msra.mxu0 0
      %3936 = vmatprep.subr.bf16.mxu0 0
      %3937 = vmatpush1.bf16.msra.mxu0 0
      %3938 = vmatprep.subr.bf16.mxu0 0
      %3939 = vmatpush1.bf16.msra.mxu0 0
      %3940 = vmatprep.subr.bf16.mxu0 0
      %3941 = vmatpush1.bf16.msra.mxu0 0
      %3942 = vmatprep.subr.bf16.mxu0 0
      %3943 = vmatpush1.bf16.msra.mxu0 0
      %3944 = vmatprep.subr.bf16.mxu0 0
      %3945 = vmatpush1.bf16.msra.mxu0 0
      %3946 = vmatprep.subr.bf16.mxu0 0
      %3947 = vmatpush1.bf16.msra.mxu0 0
      %3948 = vmatprep.mubr.bf16.mxu0 0
      %3949 = vmatmul.mubr.bf16.gmra.mrb[0].mxu0 %v3914
      %v3950 = vpop.f32.mrb[0].mxu0
      %v3951 = vadd.f32 0.0, %v3950
      %v3952 = vpop.f32.mrb[0].mxu0
      %v3953 = vpop.f32.mrb[0].mxu0
      %v3954 = vpop.f32.mrb[0].mxu0
      %3955 = vdwg.mxu0
      %v3956 = vpack.c.bf16 %v3951, %v3951
      %s3957 = scalar_lea.vmem %s7, 224
      %v3958 = vld [vmem:[%s3957] sm:$0xf]
      %v3959 = vld [vmem:[%s3957 + $0x4] sm:$0xf]
      %v3960 = vld [vmem:[%s3957 + $0x8] sm:$0xf]
      %v3961 = vld [vmem:[%s3957 + $0xc] sm:$0xf]
      %v3962 = vld [vmem:[%s3957 + $0x10] sm:$0xf]
      %v3963 = vld [vmem:[%s3957 + $0x14] sm:$0xf]
      %v3964 = vld [vmem:[%s3957 + $0x18] sm:$0xf]
      %v3965 = vld [vmem:[%s3957 + $0x1c] sm:$0xf]
      %v3974 = vunpack.c.l.b16 %v3958
      %v3975 = vunpack.c.l.b16 %v3959
      %v3976 = vunpack.c.l.b16 %v3960
      %v3977 = vunpack.c.l.b16 %v3961
      %v3978 = vunpack.c.l.b16 %v3962
      %v3979 = vunpack.c.l.b16 %v3963
      %v3980 = vunpack.c.l.b16 %v3964
      %v3981 = vunpack.c.l.b16 %v3965
      %v3982 = vpack.c.b16 %v3975, %v3974
      %v3983 = vpack.c.b16 %v3977, %v3976
      %v3984 = vpack.c.b16 %v3979, %v3978
      %v3985 = vpack.c.b16 %v3981, %v3980
      %v3991 = vsel %vm1189, %v3956, 0
      %3993 = vmatprep.subr.bf16.mxu0 0
      %3994 = vmatpush1.bf16.msra.mxu0 %v3982
      %3995 = vmatprep.subr.bf16.mxu0 0
      %3996 = vmatpush1.bf16.msra.mxu0 %v3983
      %3997 = vmatprep.subr.bf16.mxu0 0
      %3998 = vmatpush1.bf16.msra.mxu0 %v3984
      %3999 = vmatprep.subr.bf16.mxu0 0
      %4000 = vmatpush1.bf16.msra.mxu0 %v3985
      %4001 = vmatprep.subr.bf16.mxu0 0
      %4002 = vmatpush1.bf16.msra.mxu0 0
      %4003 = vmatprep.subr.bf16.mxu0 0
      %4004 = vmatpush1.bf16.msra.mxu0 0
      %4005 = vmatprep.subr.bf16.mxu0 0
      %4006 = vmatpush1.bf16.msra.mxu0 0
      %4007 = vmatprep.subr.bf16.mxu0 0
      %4008 = vmatpush1.bf16.msra.mxu0 0
      %4009 = vmatprep.subr.bf16.mxu0 0
      %4010 = vmatpush1.bf16.msra.mxu0 0
      %4011 = vmatprep.subr.bf16.mxu0 0
      %4012 = vmatpush1.bf16.msra.mxu0 0
      %4013 = vmatprep.subr.bf16.mxu0 0
      %4014 = vmatpush1.bf16.msra.mxu0 0
      %4015 = vmatprep.subr.bf16.mxu0 0
      %4016 = vmatpush1.bf16.msra.mxu0 0
      %4017 = vmatprep.subr.bf16.mxu0 0
      %4018 = vmatpush1.bf16.msra.mxu0 0
      %4019 = vmatprep.subr.bf16.mxu0 0
      %4020 = vmatpush1.bf16.msra.mxu0 0
      %4021 = vmatprep.subr.bf16.mxu0 0
      %4022 = vmatpush1.bf16.msra.mxu0 0
      %4023 = vmatprep.subr.bf16.mxu0 0
      %4024 = vmatpush1.bf16.msra.mxu0 0
      %4025 = vmatprep.mubr.bf16.mxu0 0
      %4026 = vmatmul.mubr.bf16.gmra.mrb[0].mxu0 %v3991
      %v4027 = vpop.f32.mrb[0].mxu0
      %v4028 = vadd.f32 0.0, %v4027
      %v4029 = vpop.f32.mrb[0].mxu0
      %v4030 = vpop.f32.mrb[0].mxu0
      %v4031 = vpop.f32.mrb[0].mxu0
      %4032 = vdwg.mxu0
      %v4033 = vadd.f32 %v3910, %v4028
      %s4034 = scalar_lea.vmem %s6, 8
      %v4035 = vld [vmem:[%s4034] sm:$0x1]
      %v4037 = vsel %vm3047, %v4035, 0
      %4039 = vmatprep.subr.bf16.mxu0 0
      %4040 = vmatpush1.bf16.msra.mxu0 %v3056
      %4041 = vmatprep.subr.bf16.mxu0 0
      %4042 = vmatpush1.bf16.msra.mxu0 0
      %4043 = vmatprep.subr.bf16.mxu0 0
      %4044 = vmatpush1.bf16.msra.mxu0 0
      %4045 = vmatprep.subr.bf16.mxu0 0
      %4046 = vmatpush1.bf16.msra.mxu0 0
      %4047 = vmatprep.subr.bf16.mxu0 0
      %4048 = vmatpush1.bf16.msra.mxu0 0
      %4049 = vmatprep.subr.bf16.mxu0 0
      %4050 = vmatpush1.bf16.msra.mxu0 0
      %4051 = vmatprep.subr.bf16.mxu0 0
      %4052 = vmatpush1.bf16.msra.mxu0 0
      %4053 = vmatprep.subr.bf16.mxu0 0
      %4054 = vmatpush1.bf16.msra.mxu0 0
      %4055 = vmatprep.subr.bf16.mxu0 0
      %4056 = vmatpush1.bf16.msra.mxu0 0
      %4057 = vmatprep.subr.bf16.mxu0 0
      %4058 = vmatpush1.bf16.msra.mxu0 0
      %4059 = vmatprep.subr.bf16.mxu0 0
      %4060 = vmatpush1.bf16.msra.mxu0 0
      %4061 = vmatprep.subr.bf16.mxu0 0
      %4062 = vmatpush1.bf16.msra.mxu0 0
      %4063 = vmatprep.subr.bf16.mxu0 0
      %4064 = vmatpush1.bf16.msra.mxu0 0
      %4065 = vmatprep.subr.bf16.mxu0 0
      %4066 = vmatpush1.bf16.msra.mxu0 0
      %4067 = vmatprep.subr.bf16.mxu0 0
      %4068 = vmatpush1.bf16.msra.mxu0 0
      %4069 = vmatprep.subr.bf16.mxu0 0
      %4070 = vmatpush1.bf16.msra.mxu0 0
      %4071 = vmatprep.mubr.bf16.mxu0 0
      %4072 = vmatmul.mubr.bf16.gmra.mrb[0].mxu0 %v4037
      %v4073 = vpop.f32.mrb[0].mxu0
      %v4074 = vadd.f32 0.0, %v4073
      %v4075 = vpop.f32.mrb[0].mxu0
      %v4076 = vpop.f32.mrb[0].mxu0
      %v4077 = vpop.f32.mrb[0].mxu0
      %4078 = vdwg.mxu0
      %v4079 = vpack.c.bf16 %v4074, %v4074
      %s4080 = scalar_lea.vmem %s7, 256
      %v4081 = vld [vmem:[%s4080] sm:$0xf]
      %v4082 = vld [vmem:[%s4080 + $0x4] sm:$0xf]
      %v4083 = vld [vmem:[%s4080 + $0x8] sm:$0xf]
      %v4084 = vld [vmem:[%s4080 + $0xc] sm:$0xf]
      %v4085 = vld [vmem:[%s4080 + $0x10] sm:$0xf]
      %v4086 = vld [vmem:[%s4080 + $0x14] sm:$0xf]
      %v4087 = vld [vmem:[%s4080 + $0x18] sm:$0xf]
      %v4088 = vld [vmem:[%s4080 + $0x1c] sm:$0xf]
      %v4097 = vunpack.c.l.b16 %v4081
      %v4098 = vunpack.c.l.b16 %v4082
      %v4099 = vunpack.c.l.b16 %v4083
      %v4100 = vunpack.c.l.b16 %v4084
      %v4101 = vunpack.c.l.b16 %v4085
      %v4102 = vunpack.c.l.b16 %v4086
      %v4103 = vunpack.c.l.b16 %v4087
      %v4104 = vunpack.c.l.b16 %v4088
      %v4105 = vpack.c.b16 %v4098, %v4097
      %v4106 = vpack.c.b16 %v4100, %v4099
      %v4107 = vpack.c.b16 %v4102, %v4101
      %v4108 = vpack.c.b16 %v4104, %v4103
      %v4114 = vsel %vm1189, %v4079, 0
      %4116 = vmatprep.subr.bf16.mxu0 0
      %4117 = vmatpush1.bf16.msra.mxu0 %v4105
      %4118 = vmatprep.subr.bf16.mxu0 0
      %4119 = vmatpush1.bf16.msra.mxu0 %v4106
      %4120 = vmatprep.subr.bf16.mxu0 0
      %4121 = vmatpush1.bf16.msra.mxu0 %v4107
      %4122 = vmatprep.subr.bf16.mxu0 0
      %4123 = vmatpush1.bf16.msra.mxu0 %v4108
      %4124 = vmatprep.subr.bf16.mxu0 0
      %4125 = vmatpush1.bf16.msra.mxu0 0
      %4126 = vmatprep.subr.bf16.mxu0 0
      %4127 = vmatpush1.bf16.msra.mxu0 0
      %4128 = vmatprep.subr.bf16.mxu0 0
      %4129 = vmatpush1.bf16.msra.mxu0 0
      %4130 = vmatprep.subr.bf16.mxu0 0
      %4131 = vmatpush1.bf16.msra.mxu0 0
      %4132 = vmatprep.subr.bf16.mxu0 0
      %4133 = vmatpush1.bf16.msra.mxu0 0
      %4134 = vmatprep.subr.bf16.mxu0 0
      %4135 = vmatpush1.bf16.msra.mxu0 0
      %4136 = vmatprep.subr.bf16.mxu0 0
      %4137 = vmatpush1.bf16.msra.mxu0 0
      %4138 = vmatprep.subr.bf16.mxu0 0
      %4139 = vmatpush1.bf16.msra.mxu0 0
      %4140 = vmatprep.subr.bf16.mxu0 0
      %4141 = vmatpush1.bf16.msra.mxu0 0
      %4142 = vmatprep.subr.bf16.mxu0 0
      %4143 = vmatpush1.bf16.msra.mxu0 0
      %4144 = vmatprep.subr.bf16.mxu0 0
      %4145 = vmatpush1.bf16.msra.mxu0 0
      %4146 = vmatprep.subr.bf16.mxu0 0
      %4147 = vmatpush1.bf16.msra.mxu0 0
      %4148 = vmatprep.mubr.bf16.mxu0 0
      %4149 = vmatmul.mubr.bf16.gmra.mrb[0].mxu0 %v4114
      %v4150 = vpop.f32.mrb[0].mxu0
      %v4151 = vadd.f32 0.0, %v4150
      %v4152 = vpop.f32.mrb[0].mxu0
      %v4153 = vpop.f32.mrb[0].mxu0
      %v4154 = vpop.f32.mrb[0].mxu0
      %4155 = vdwg.mxu0
      %v4156 = vadd.f32 %v4033, %v4151
      %v4157 = vld [vmem:[%s8] sm:$0x1]
      %v4158 = vadd.f32 %v4156, %v4157
      %v4159 = vmax.f32 %v4158, 0.0
      %v4160 = vpack.c.bf16 %v4159, %v4159
      %v4161 = vld [vmem:[%s9] sm:$0xff]
      %v4162 = vld [vmem:[%s9 + $0x8] sm:$0xff]
      %v4163 = vld [vmem:[%s9 + $0x10] sm:$0xff]
      %v4164 = vld [vmem:[%s9 + $0x18] sm:$0xff]
      %v4165 = vld [vmem:[%s9 + $0x20] sm:$0xff]
      %v4166 = vld [vmem:[%s9 + $0x28] sm:$0xff]
      %v4167 = vld [vmem:[%s9 + $0x30] sm:$0xff]
      %v4168 = vld [vmem:[%s9 + $0x38] sm:$0xff]
      %v4169 = vld [vmem:[%s9 + $0x40] sm:$0xff]
      %v4170 = vld [vmem:[%s9 + $0x48] sm:$0xff]
      %v4171 = vld [vmem:[%s9 + $0x50] sm:$0xff]
      %v4172 = vld [vmem:[%s9 + $0x58] sm:$0xff]
      %v4173 = vld [vmem:[%s9 + $0x60] sm:$0xff]
      %v4174 = vld [vmem:[%s9 + $0x68] sm:$0xff]
      %v4175 = vld [vmem:[%s9 + $0x70] sm:$0xff]
      %v4176 = vld [vmem:[%s9 + $0x78] sm:$0xff]
      %v4177 = vld [vmem:[%s10] sm:$0xf]
      %v4194 = vunpack.c.l.b16 %v4161
      %v4195 = vunpack.c.h.b16 %v4161
      %v4196 = vunpack.c.l.b16 %v4162
      %v4197 = vunpack.c.h.b16 %v4162
      %v4198 = vunpack.c.l.b16 %v4163
      %v4199 = vunpack.c.h.b16 %v4163
      %v4200 = vunpack.c.l.b16 %v4164
      %v4201 = vunpack.c.h.b16 %v4164
      %v4202 = vunpack.c.l.b16 %v4165
      %v4203 = vunpack.c.h.b16 %v4165
      %v4204 = vunpack.c.l.b16 %v4166
      %v4205 = vunpack.c.h.b16 %v4166
      %v4206 = vunpack.c.l.b16 %v4167
      %v4207 = vunpack.c.h.b16 %v4167
      %v4208 = vunpack.c.l.b16 %v4168
      %v4209 = vunpack.c.h.b16 %v4168
      %v4210 = vunpack.c.l.b16 %v4169
      %v4211 = vunpack.c.h.b16 %v4169
      %v4212 = vunpack.c.l.b16 %v4170
      %v4213 = vunpack.c.h.b16 %v4170
      %v4214 = vunpack.c.l.b16 %v4171
      %v4215 = vunpack.c.h.b16 %v4171
      %v4216 = vunpack.c.l.b16 %v4172
      %v4217 = vunpack.c.h.b16 %v4172
      %v4218 = vunpack.c.l.b16 %v4173
      %v4219 = vunpack.c.h.b16 %v4173
      %v4220 = vunpack.c.l.b16 %v4174
      %v4221 = vunpack.c.h.b16 %v4174
      %v4222 = vunpack.c.l.b16 %v4175
      %v4223 = vunpack.c.h.b16 %v4175
      %v4224 = vunpack.c.l.b16 %v4176
      %v4225 = vunpack.c.h.b16 %v4176
      %v4226 = vpack.c.b16 %v4198, %v4194
      %v4227 = vpack.c.b16 %v4199, %v4195
      %v4228 = vpack.c.b16 %v4200, %v4196
      %v4229 = vpack.c.b16 %v4201, %v4197
      %v4230 = vpack.c.b16 %v4206, %v4202
      %v4231 = vpack.c.b16 %v4207, %v4203
      %v4232 = vpack.c.b16 %v4208, %v4204
      %v4233 = vpack.c.b16 %v4209, %v4205
      %v4234 = vpack.c.b16 %v4214, %v4210
      %v4235 = vpack.c.b16 %v4215, %v4211
      %v4236 = vpack.c.b16 %v4216, %v4212
      %v4237 = vpack.c.b16 %v4217, %v4213
      %v4238 = vpack.c.b16 %v4222, %v4218
      %v4239 = vpack.c.b16 %v4223, %v4219
      %v4240 = vpack.c.b16 %v4224, %v4220
      %v4241 = vpack.c.b16 %v4225, %v4221
      %v4259 = vlaneseq
      %v4260 = vshrl.u32 %v4259, 7
      %v4261 = vsub.s32 0, %v4260
      %v4262 = vrot.slane %v4177, %v4261
      %v4263 = vlaneseq
      %v4264 = vshrl.u32 %v4263, 7
      %v4265 = vsub.s32 1, %v4264
      %v4266 = vrot.slane %v4177, %v4265
      %v4267 = vlaneseq
      %v4268 = vshrl.u32 %v4267, 7
      %v4269 = vsub.s32 2, %v4268
      %v4270 = vrot.slane %v4177, %v4269
      %v4271 = vlaneseq
      %v4272 = vshrl.u32 %v4271, 7
      %v4273 = vsub.s32 3, %v4272
      %v4274 = vrot.slane %v4177, %v4273
      %v4280 = vsel %vm1189, %v4160, 0
      %4282 = vmatprep.subr.bf16.mxu0 %v4227
      %4283 = vmatpush1.bf16.msra.mxu0 %v4226
      %4284 = vmatprep.subr.bf16.mxu0 %v4231
      %4285 = vmatpush1.bf16.msra.mxu0 %v4230
      %4286 = vmatprep.subr.bf16.mxu0 %v4235
      %4287 = vmatpush1.bf16.msra.mxu0 %v4234
      %4288 = vmatprep.subr.bf16.mxu0 %v4239
      %4289 = vmatpush1.bf16.msra.mxu0 %v4238
      %4290 = vmatprep.subr.bf16.mxu0 0
      %4291 = vmatpush1.bf16.msra.mxu0 0
      %4292 = vmatprep.subr.bf16.mxu0 0
      %4293 = vmatpush1.bf16.msra.mxu0 0
      %4294 = vmatprep.subr.bf16.mxu0 0
      %4295 = vmatpush1.bf16.msra.mxu0 0
      %4296 = vmatprep.subr.bf16.mxu0 0
      %4297 = vmatpush1.bf16.msra.mxu0 0
      %4298 = vmatprep.subr.bf16.mxu0 0
      %4299 = vmatpush1.bf16.msra.mxu0 0
      %4300 = vmatprep.subr.bf16.mxu0 0
      %4301 = vmatpush1.bf16.msra.mxu0 0
      %4302 = vmatprep.subr.bf16.mxu0 0
      %4303 = vmatpush1.bf16.msra.mxu0 0
      %4304 = vmatprep.subr.bf16.mxu0 0
      %4305 = vmatpush1.bf16.msra.mxu0 0
      %4306 = vmatprep.subr.bf16.mxu0 0
      %4307 = vmatpush1.bf16.msra.mxu0 0
      %4308 = vmatprep.subr.bf16.mxu0 0
      %4309 = vmatpush1.bf16.msra.mxu0 0
      %4310 = vmatprep.subr.bf16.mxu0 0
      %4311 = vmatpush1.bf16.msra.mxu0 0
      %4312 = vmatprep.subr.bf16.mxu0 0
      %4313 = vmatpush1.bf16.msra.mxu0 0
      %4314 = vmatprep.mubr.bf16.mxu0 0
      %4315 = vmatmul.mubr.bf16.gmra.mrb[0].mxu0 %v4280
      %v4316 = vpop.f32.mrb[0].mxu0
      %v4317 = vadd.f32 %v4262, %v4316
      %v4318 = vpop.f32.mrb[0].mxu0
      %v4319 = vadd.f32 %v4266, %v4318
      %v4320 = vpop.f32.mrb[0].mxu0
      %v4321 = vpop.f32.mrb[0].mxu0
      %4322 = vdwg.mxu0
      %4323 = vmatprep.subr.bf16.mxu0 %v4229
      %4324 = vmatpush1.bf16.msra.mxu0 %v4228
      %4325 = vmatprep.subr.bf16.mxu0 %v4233
      %4326 = vmatpush1.bf16.msra.mxu0 %v4232
      %4327 = vmatprep.subr.bf16.mxu0 %v4237
      %4328 = vmatpush1.bf16.msra.mxu0 %v4236
      %4329 = vmatprep.subr.bf16.mxu0 %v4241
      %4330 = vmatpush1.bf16.msra.mxu0 %v4240
      %4331 = vmatprep.subr.bf16.mxu0 0
      %4332 = vmatpush1.bf16.msra.mxu0 0
      %4333 = vmatprep.subr.bf16.mxu0 0
      %4334 = vmatpush1.bf16.msra.mxu0 0
      %4335 = vmatprep.subr.bf16.mxu0 0
      %4336 = vmatpush1.bf16.msra.mxu0 0
      %4337 = vmatprep.subr.bf16.mxu0 0
      %4338 = vmatpush1.bf16.msra.mxu0 0
      %4339 = vmatprep.subr.bf16.mxu0 0
      %4340 = vmatpush1.bf16.msra.mxu0 0
      %4341 = vmatprep.subr.bf16.mxu0 0
      %4342 = vmatpush1.bf16.msra.mxu0 0
      %4343 = vmatprep.subr.bf16.mxu0 0
      %4344 = vmatpush1.bf16.msra.mxu0 0
      %4345 = vmatprep.subr.bf16.mxu0 0
      %4346 = vmatpush1.bf16.msra.mxu0 0
      %4347 = vmatprep.subr.bf16.mxu0 0
      %4348 = vmatpush1.bf16.msra.mxu0 0
      %4349 = vmatprep.subr.bf16.mxu0 0
      %4350 = vmatpush1.bf16.msra.mxu0 0
      %4351 = vmatprep.subr.bf16.mxu0 0
      %4352 = vmatpush1.bf16.msra.mxu0 0
      %4353 = vmatprep.subr.bf16.mxu0 0
      %4354 = vmatpush1.bf16.msra.mxu0 0
      %4355 = vmatprep.mubr.bf16.mxu0 0
      %4356 = vmatmul.mubr.bf16.gmra.mrb[0].mxu0 %v4280
      %v4357 = vpop.f32.mrb[0].mxu0
      %v4358 = vadd.f32 %v4270, %v4357
      %v4359 = vpop.f32.mrb[0].mxu0
      %v4360 = vadd.f32 %v4274, %v4359
      %v4361 = vpop.f32.mrb[0].mxu0
      %v4362 = vpop.f32.mrb[0].mxu0
      %4363 = vdwg.mxu0
      %v4364 = vmax.f32 %v4317, 0.0
      %v4365 = vmax.f32 %v4319, 0.0
      %v4366 = vmax.f32 %v4358, 0.0
      %v4367 = vmax.f32 %v4360, 0.0
      %v4368 = vpack.c.bf16 %v4364, %v4364
      %v4369 = vpack.c.bf16 %v4365, %v4365
      %v4370 = vpack.c.bf16 %v4366, %v4366
      %v4371 = vpack.c.bf16 %v4367, %v4367
      %v4372 = vld [vmem:[%s11] sm:$0xf]
      %v4373 = vld [vmem:[%s11 + $0x4] sm:$0xf]
      %v4374 = vld [vmem:[%s11 + $0x8] sm:$0xf]
      %v4375 = vld [vmem:[%s11 + $0xc] sm:$0xf]
      %v4376 = vld [vmem:[%s11 + $0x10] sm:$0xf]
      %v4377 = vld [vmem:[%s11 + $0x14] sm:$0xf]
      %v4378 = vld [vmem:[%s11 + $0x18] sm:$0xf]
      %v4379 = vld [vmem:[%s11 + $0x1c] sm:$0xf]
      %v4380 = vld [vmem:[%s11 + $0x20] sm:$0xf]
      %v4381 = vld [vmem:[%s11 + $0x24] sm:$0xf]
      %v4382 = vld [vmem:[%s11 + $0x28] sm:$0xf]
      %v4383 = vld [vmem:[%s11 + $0x2c] sm:$0xf]
      %v4384 = vld [vmem:[%s11 + $0x30] sm:$0xf]
      %v4385 = vld [vmem:[%s11 + $0x34] sm:$0xf]
      %v4386 = vld [vmem:[%s11 + $0x38] sm:$0xf]
      %v4387 = vld [vmem:[%s11 + $0x3c] sm:$0xf]
      %v4388 = vld [vmem:[%s11 + $0x40] sm:$0xf]
      %v4389 = vld [vmem:[%s11 + $0x44] sm:$0xf]
      %v4390 = vld [vmem:[%s11 + $0x48] sm:$0xf]
      %v4391 = vld [vmem:[%s11 + $0x4c] sm:$0xf]
      %v4392 = vld [vmem:[%s11 + $0x50] sm:$0xf]
      %v4393 = vld [vmem:[%s11 + $0x54] sm:$0xf]
      %v4394 = vld [vmem:[%s11 + $0x58] sm:$0xf]
      %v4395 = vld [vmem:[%s11 + $0x5c] sm:$0xf]
      %v4396 = vld [vmem:[%s11 + $0x60] sm:$0xf]
      %v4397 = vld [vmem:[%s11 + $0x64] sm:$0xf]
      %v4398 = vld [vmem:[%s11 + $0x68] sm:$0xf]
      %v4399 = vld [vmem:[%s11 + $0x6c] sm:$0xf]
      %v4400 = vld [vmem:[%s11 + $0x70] sm:$0xf]
      %v4401 = vld [vmem:[%s11 + $0x74] sm:$0xf]
      %v4402 = vld [vmem:[%s11 + $0x78] sm:$0xf]
      %v4403 = vld [vmem:[%s11 + $0x7c] sm:$0xf]
      %v4404 = vld [vmem:[%s11 + $0x80] sm:$0xf]
      %v4405 = vld [vmem:[%s11 + $0x84] sm:$0xf]
      %v4406 = vld [vmem:[%s11 + $0x88] sm:$0xf]
      %v4407 = vld [vmem:[%s11 + $0x8c] sm:$0xf]
      %v4408 = vld [vmem:[%s11 + $0x90] sm:$0xf]
      %v4409 = vld [vmem:[%s11 + $0x94] sm:$0xf]
      %v4410 = vld [vmem:[%s11 + $0x98] sm:$0xf]
      %v4411 = vld [vmem:[%s11 + $0x9c] sm:$0xf]
      %v4412 = vld [vmem:[%s11 + $0xa0] sm:$0xf]
      %v4413 = vld [vmem:[%s11 + $0xa4] sm:$0xf]
      %v4414 = vld [vmem:[%s11 + $0xa8] sm:$0xf]
      %v4415 = vld [vmem:[%s11 + $0xac] sm:$0xf]
      %v4416 = vld [vmem:[%s11 + $0xb0] sm:$0xf]
      %v4417 = vld [vmem:[%s11 + $0xb4] sm:$0xf]
      %v4418 = vld [vmem:[%s11 + $0xb8] sm:$0xf]
      %v4419 = vld [vmem:[%s11 + $0xbc] sm:$0xf]
      %v4420 = vld [vmem:[%s11 + $0xc0] sm:$0xf]
      %v4421 = vld [vmem:[%s11 + $0xc4] sm:$0xf]
      %v4422 = vld [vmem:[%s11 + $0xc8] sm:$0xf]
      %v4423 = vld [vmem:[%s11 + $0xcc] sm:$0xf]
      %v4424 = vld [vmem:[%s11 + $0xd0] sm:$0xf]
      %v4425 = vld [vmem:[%s11 + $0xd4] sm:$0xf]
      %v4426 = vld [vmem:[%s11 + $0xd8] sm:$0xf]
      %v4427 = vld [vmem:[%s11 + $0xdc] sm:$0xf]
      %v4428 = vld [vmem:[%s11 + $0xe0] sm:$0xf]
      %v4429 = vld [vmem:[%s11 + $0xe4] sm:$0xf]
      %v4430 = vld [vmem:[%s11 + $0xe8] sm:$0xf]
      %v4431 = vld [vmem:[%s11 + $0xec] sm:$0xf]
      %v4432 = vld [vmem:[%s11 + $0xf0] sm:$0xf]
      %v4433 = vld [vmem:[%s11 + $0xf4] sm:$0xf]
      %v4434 = vld [vmem:[%s11 + $0xf8] sm:$0xf]
      %v4435 = vld [vmem:[%s11 + $0xfc] sm:$0xf]
      %v4436 = vld [vmem:[#allocation2] sm:$0x1]
      %v4501 = vunpack.c.l.b16 %v4372
      %v4502 = vunpack.c.l.b16 %v4373
      %v4503 = vunpack.c.l.b16 %v4374
      %v4504 = vunpack.c.l.b16 %v4375
      %v4505 = vunpack.c.l.b16 %v4376
      %v4506 = vunpack.c.l.b16 %v4377
      %v4507 = vunpack.c.l.b16 %v4378
      %v4508 = vunpack.c.l.b16 %v4379
      %v4509 = vunpack.c.l.b16 %v4380
      %v4510 = vunpack.c.l.b16 %v4381
      %v4511 = vunpack.c.l.b16 %v4382
      %v4512 = vunpack.c.l.b16 %v4383
      %v4513 = vunpack.c.l.b16 %v4384
      %v4514 = vunpack.c.l.b16 %v4385
      %v4515 = vunpack.c.l.b16 %v4386
      %v4516 = vunpack.c.l.b16 %v4387
      %v4517 = vunpack.c.l.b16 %v4388
      %v4518 = vunpack.c.l.b16 %v4389
      %v4519 = vunpack.c.l.b16 %v4390
      %v4520 = vunpack.c.l.b16 %v4391
      %v4521 = vunpack.c.l.b16 %v4392
      %v4522 = vunpack.c.l.b16 %v4393
      %v4523 = vunpack.c.l.b16 %v4394
      %v4524 = vunpack.c.l.b16 %v4395
      %v4525 = vunpack.c.l.b16 %v4396
      %v4526 = vunpack.c.l.b16 %v4397
      %v4527 = vunpack.c.l.b16 %v4398
      %v4528 = vunpack.c.l.b16 %v4399
      %v4529 = vunpack.c.l.b16 %v4400
      %v4530 = vunpack.c.l.b16 %v4401
      %v4531 = vunpack.c.l.b16 %v4402
      %v4532 = vunpack.c.l.b16 %v4403
      %v4533 = vunpack.c.l.b16 %v4404
      %v4534 = vunpack.c.l.b16 %v4405
      %v4535 = vunpack.c.l.b16 %v4406
      %v4536 = vunpack.c.l.b16 %v4407
      %v4537 = vunpack.c.l.b16 %v4408
      %v4538 = vunpack.c.l.b16 %v4409
      %v4539 = vunpack.c.l.b16 %v4410
      %v4540 = vunpack.c.l.b16 %v4411
      %v4541 = vunpack.c.l.b16 %v4412
      %v4542 = vunpack.c.l.b16 %v4413
      %v4543 = vunpack.c.l.b16 %v4414
      %v4544 = vunpack.c.l.b16 %v4415
      %v4545 = vunpack.c.l.b16 %v4416
      %v4546 = vunpack.c.l.b16 %v4417
      %v4547 = vunpack.c.l.b16 %v4418
      %v4548 = vunpack.c.l.b16 %v4419
      %v4549 = vunpack.c.l.b16 %v4420
      %v4550 = vunpack.c.l.b16 %v4421
      %v4551 = vunpack.c.l.b16 %v4422
      %v4552 = vunpack.c.l.b16 %v4423
      %v4553 = vunpack.c.l.b16 %v4424
      %v4554 = vunpack.c.l.b16 %v4425
      %v4555 = vunpack.c.l.b16 %v4426
      %v4556 = vunpack.c.l.b16 %v4427
      %v4557 = vunpack.c.l.b16 %v4428
      %v4558 = vunpack.c.l.b16 %v4429
      %v4559 = vunpack.c.l.b16 %v4430
      %v4560 = vunpack.c.l.b16 %v4431
      %v4561 = vunpack.c.l.b16 %v4432
      %v4562 = vunpack.c.l.b16 %v4433
      %v4563 = vunpack.c.l.b16 %v4434
      %v4564 = vunpack.c.l.b16 %v4435
      %v4565 = vpack.c.b16 %v4502, %v4501
      %v4566 = vpack.c.b16 %v4504, %v4503
      %v4567 = vpack.c.b16 %v4506, %v4505
      %v4568 = vpack.c.b16 %v4508, %v4507
      %v4569 = vpack.c.b16 %v4510, %v4509
      %v4570 = vpack.c.b16 %v4512, %v4511
      %v4571 = vpack.c.b16 %v4514, %v4513
      %v4572 = vpack.c.b16 %v4516, %v4515
      %v4573 = vpack.c.b16 %v4518, %v4517
      %v4574 = vpack.c.b16 %v4520, %v4519
      %v4575 = vpack.c.b16 %v4522, %v4521
      %v4576 = vpack.c.b16 %v4524, %v4523
      %v4577 = vpack.c.b16 %v4526, %v4525
      %v4578 = vpack.c.b16 %v4528, %v4527
      %v4579 = vpack.c.b16 %v4530, %v4529
      %v4580 = vpack.c.b16 %v4532, %v4531
      %v4581 = vpack.c.b16 %v4534, %v4533
      %v4582 = vpack.c.b16 %v4536, %v4535
      %v4583 = vpack.c.b16 %v4538, %v4537
      %v4584 = vpack.c.b16 %v4540, %v4539
      %v4585 = vpack.c.b16 %v4542, %v4541
      %v4586 = vpack.c.b16 %v4544, %v4543
      %v4587 = vpack.c.b16 %v4546, %v4545
      %v4588 = vpack.c.b16 %v4548, %v4547
      %v4589 = vpack.c.b16 %v4550, %v4549
      %v4590 = vpack.c.b16 %v4552, %v4551
      %v4591 = vpack.c.b16 %v4554, %v4553
      %v4592 = vpack.c.b16 %v4556, %v4555
      %v4593 = vpack.c.b16 %v4558, %v4557
      %v4594 = vpack.c.b16 %v4560, %v4559
      %v4595 = vpack.c.b16 %v4562, %v4561
      %v4596 = vpack.c.b16 %v4564, %v4563
      %4629 = vmatprep.subr.bf16.mxu0 0
      %4630 = vmatpush1.bf16.msra.mxu0 %v4565
      %4631 = vmatprep.subr.bf16.mxu0 0
      %4632 = vmatpush1.bf16.msra.mxu0 %v4566
      %4633 = vmatprep.subr.bf16.mxu0 0
      %4634 = vmatpush1.bf16.msra.mxu0 %v4567
      %4635 = vmatprep.subr.bf16.mxu0 0
      %4636 = vmatpush1.bf16.msra.mxu0 %v4568
      %4637 = vmatprep.subr.bf16.mxu0 0
      %4638 = vmatpush1.bf16.msra.mxu0 %v4569
      %4639 = vmatprep.subr.bf16.mxu0 0
      %4640 = vmatpush1.bf16.msra.mxu0 %v4570
      %4641 = vmatprep.subr.bf16.mxu0 0
      %4642 = vmatpush1.bf16.msra.mxu0 %v4571
      %4643 = vmatprep.subr.bf16.mxu0 0
      %4644 = vmatpush1.bf16.msra.mxu0 %v4572
      %4645 = vmatprep.subr.bf16.mxu0 0
      %4646 = vmatpush1.bf16.msra.mxu0 %v4573
      %4647 = vmatprep.subr.bf16.mxu0 0
      %4648 = vmatpush1.bf16.msra.mxu0 %v4574
      %4649 = vmatprep.subr.bf16.mxu0 0
      %4650 = vmatpush1.bf16.msra.mxu0 %v4575
      %4651 = vmatprep.subr.bf16.mxu0 0
      %4652 = vmatpush1.bf16.msra.mxu0 %v4576
      %4653 = vmatprep.subr.bf16.mxu0 0
      %4654 = vmatpush1.bf16.msra.mxu0 %v4577
      %4655 = vmatprep.subr.bf16.mxu0 0
      %4656 = vmatpush1.bf16.msra.mxu0 %v4578
      %4657 = vmatprep.subr.bf16.mxu0 0
      %4658 = vmatpush1.bf16.msra.mxu0 %v4579
      %4659 = vmatprep.subr.bf16.mxu0 0
      %4660 = vmatpush1.bf16.msra.mxu0 %v4580
      %4661 = vmatprep.mubr.bf16.mxu0 %v4369
      %4662 = vmatmul.mubr.bf16.gmra.mrb[0].mxu0 %v4368
      %v4663 = vpop.f32.mrb[0].mxu0
      %v4664 = vadd.f32 %v4436, %v4663
      %v4665 = vpop.f32.mrb[0].mxu0
      %v4666 = vpop.f32.mrb[0].mxu0
      %v4667 = vpop.f32.mrb[0].mxu0
      %4668 = vdwg.mxu0
      %4669 = vmatprep.subr.bf16.mxu0 0
      %4670 = vmatpush1.bf16.msra.mxu0 %v4581
      %4671 = vmatprep.subr.bf16.mxu0 0
      %4672 = vmatpush1.bf16.msra.mxu0 %v4582
      %4673 = vmatprep.subr.bf16.mxu0 0
      %4674 = vmatpush1.bf16.msra.mxu0 %v4583
      %4675 = vmatprep.subr.bf16.mxu0 0
      %4676 = vmatpush1.bf16.msra.mxu0 %v4584
      %4677 = vmatprep.subr.bf16.mxu0 0
      %4678 = vmatpush1.bf16.msra.mxu0 %v4585
      %4679 = vmatprep.subr.bf16.mxu0 0
      %4680 = vmatpush1.bf16.msra.mxu0 %v4586
      %4681 = vmatprep.subr.bf16.mxu0 0
      %4682 = vmatpush1.bf16.msra.mxu0 %v4587
      %4683 = vmatprep.subr.bf16.mxu0 0
      %4684 = vmatpush1.bf16.msra.mxu0 %v4588
      %4685 = vmatprep.subr.bf16.mxu0 0
      %4686 = vmatpush1.bf16.msra.mxu0 %v4589
      %4687 = vmatprep.subr.bf16.mxu0 0
      %4688 = vmatpush1.bf16.msra.mxu0 %v4590
      %4689 = vmatprep.subr.bf16.mxu0 0
      %4690 = vmatpush1.bf16.msra.mxu0 %v4591
      %4691 = vmatprep.subr.bf16.mxu0 0
      %4692 = vmatpush1.bf16.msra.mxu0 %v4592
      %4693 = vmatprep.subr.bf16.mxu0 0
      %4694 = vmatpush1.bf16.msra.mxu0 %v4593
      %4695 = vmatprep.subr.bf16.mxu0 0
      %4696 = vmatpush1.bf16.msra.mxu0 %v4594
      %4697 = vmatprep.subr.bf16.mxu0 0
      %4698 = vmatpush1.bf16.msra.mxu0 %v4595
      %4699 = vmatprep.subr.bf16.mxu0 0
      %4700 = vmatpush1.bf16.msra.mxu0 %v4596
      %4701 = vmatprep.mubr.bf16.mxu0 %v4371
      %4702 = vmatmul.mubr.bf16.gmra.mrb[0].mxu0 %v4370
      %v4703 = vpop.f32.mrb[0].mxu0
      %v4704 = vadd.f32 %v4664, %v4703
      %v4705 = vpop.f32.mrb[0].mxu0
      %v4706 = vpop.f32.mrb[0].mxu0
      %v4707 = vpop.f32.mrb[0].mxu0
      %4708 = vdwg.mxu0
      %vm4709 = vcmask 0
      %4710 = vst.msk [vmem:[%s438] sm:$0x1] %vm4709, %v4704
      %p4711 = scmp.lt.s32.totalorder %s26, 1
      %s4712 = scalar_select %p4711, %s26, 1
      %s4713 = scalar_lea.vmem %s13, %s4712
      // Predicated region
      $region73: #{critic_forward.1} parent=71 // pred_check
        %p4714 = pneg %p322
      $region74: #{critic_forward.1} parent=71 // pred_check_branch
        %4716 = sbr.rel (%p4714) target = $region76
      $region75: #{critic_forward.1} parent=71 // pred_region
        _
      $region76: #{critic_forward.1} parent=71 // pred_fallthru
        _
    $region72: #{critic_forward.1} parent=5 // pred_fallthru
      _
    %p4717 = scmp.le.s32.totalorder 2, %s21
    // Predicated region
    $region77: #{critic_forward.1} parent=5 // pred_check
      %p4718 = pneg %p4717
    $region78: #{critic_forward.1} parent=5 // pred_check_branch
      %4720 = sbr.rel (%p4718) target = $region80
    $region79: #{critic_forward.1} parent=5 // pred_region
      %s4721 = ssub.s32 %s21, 2
      // Predicated region
      $region81: #{critic_forward.1} parent=79 // pred_check
        %p4722 = pneg %p328
      $region82: #{critic_forward.1} parent=79 // pred_check_branch
        %4724 = sbr.rel (%p4722) target = $region84
      $region83: #{critic_forward.1} parent=79 // pred_region
        %p4725 = scmp.lt.s32.totalorder %s27, 1
        %s4726 = scalar_select %p4725, %s27, 1
        %s4727 = scalar_lea.vmem %s13, %s4726
      $region84: #{critic_forward.1} parent=79 // pred_fallthru
        _
    $region80: #{critic_forward.1} parent=5 // pred_fallthru
      _
  $region6: #{critic_forward.1} parent=0 // loop_footer
    %s25 = sadd.s32 1, %s21
  $region7: #{critic_forward.1} parent=0 // loop_footer_branch
    %20 = sbr.rel target = $region3
  $region8: #{critic_forward.1} parent=0 // loop_exit
    _

</llo_original>
